<compile_context>
chip_gen: v6e
topology: v6e:2x2x1
jax: 0.10.0
libtpu: 0.0.40
codegen_flags: <defaults>
</compile_context>

<pallas_src>
import functools

import jax
import jax.numpy as jnp
from jax import lax
from jax.experimental import pallas as pl
from jax.experimental.pallas import tpu as pltpu

_INV_SQRT2 = 0.7071067811865476
_LANE = 128    # pad channel dims to multiples of the lane width
_GUARD = 8     # 8-aligned column offset of the real data inside the dwconv scratch


def _round_up(n, m):
    return ((n + m - 1) // m) * m


def _vmem_budget_bytes(TH, W, Cp, hp, Dp, pad_w):
    f32, bf16 = 4, 2
    band_in = (TH + 2) * W * Cp * bf16                       # x band + 2 halo rows
    weights = ((Cp * 2 * hp + hp * Dp) * bf16
               + (4 * hp + Dp) * f32 + 2 * 9 * hp * f32)
    out_blk = TH * W * Dp * f32
    scratch = 2 * (TH + 2) * pad_w * hp * f32
    temps = (TH + 2) * W * 2 * hp * f32 + 3 * TH * W * hp * f32
    est = 2 * (band_in + weights + out_blk) + scratch + temps  # 2x: double-buffering
    return int(min(max(2 * est, 32 * 1024 * 1024), 64 * 1024 * 1024))


def _gdfn_kernel(xb_ref, xt_ref, xbt_ref,
                 w_in_ref, b_in_ref,
                 w_dw1_ref, w_dw2_ref, b_dw1_ref, b_dw2_ref,
                 w_out_ref, b_out_ref,
                 o_ref, pad1_ref, pad2_ref, *, img_h):
    # xb_ref   : (1, TH, W, Cp) bf16   row band of one batch element
    # xt_ref   : (1, 1, W, Cp)  bf16   row above the band (clamped at the top)
    # xbt_ref  : (1, 1, W, Cp)  bf16   row below the band (clamped at the bottom)
    # w_in     : (Cp, 2hp) bf16        b_in  : (1, 2hp) f32
    # w_dw*    : (3, 3, hp) f32        b_dw* : (1, hp)  f32
    # w_out    : (hp, Dp) bf16 (pre-scaled by 0.5)   b_out : (1, Dp) f32
    # o_ref    : (1, TH, W, Dp) f32
    # pad*_ref : (TH + 2, _GUARD + W + 8, hp) f32 scratch (padded dwconv input)
    TH, W, Dp = o_ref.shape[1], o_ref.shape[2], o_ref.shape[3]
    Cp = xb_ref.shape[3]
    hp = w_dw1_ref.shape[2]
    G = _GUARD

    t = pl.program_id(1)
    nt = pl.num_programs(1)

    # Hoisted weight / bias loads.
    w_in = w_in_ref[...]                          # (Cp, 2hp) bf16
    b_in = b_in_ref[...]                          # (1, 2hp) f32

    def proj(x_rows):
        # Fused 1x1 conv for both halves on the MXU: (R, W, Cp) bf16 -> (R, W, 2hp) f32
        R = x_rows.shape[0]
        y = jnp.dot(x_rows.reshape(R * W, Cp), w_in,
                    preferred_element_type=jnp.float32)
        return (y + b_in).reshape(R, W, 2 * hp)

    top_scale = (t > 0).astype(jnp.float32)       # zero halo at the image top
    bot_scale = (t < nt - 1).astype(jnp.float32)  # zero halo at the image bottom

    y_mid = proj(xb_ref[0])                       # (TH, W, 2hp)
    y_top = proj(xt_ref[0]) * top_scale           # (1, W, 2hp)
    y_bot = proj(xbt_ref[0]) * bot_scale          # (1, W, 2hp)

    for pad_ref, lo in ((pad1_ref, 0), (pad2_ref, hp)):
        # Zero only the two 1-column halos (not the whole scratch).
        pad_ref[:, G - 1:G, :] = jnp.zeros((TH + 2, 1, hp), jnp.float32)
        pad_ref[:, G + W:G + W + 1, :] = jnp.zeros((TH + 2, 1, hp), jnp.float32)
        # hp is a multiple of 128, so the lane split lo:lo+hp is aligned and free.
        pad_ref[1:TH + 1, G:G + W, :] = y_mid[:, :, lo:lo + hp]
        pad_ref[0:1, G:G + W, :] = y_top[:, :, lo:lo + hp]
        pad_ref[TH + 1:TH + 2, G:G + W, :] = y_bot[:, :, lo:lo + hp]

    # If H was padded up to a multiple of TH, the dwconv input at image row `img_h`
    # (the zero-pad row just below the last real row) must be exactly zero; it lands in
    # this tile's interior, so overwrite that single scratch row. Static, cheap, gated.
    if img_h % TH != 0:
        t_fix = img_h // TH
        row_fix = img_h % TH + 1

        @pl.when(t == t_fix)
        def _():
            z = jnp.zeros((1, W, hp), jnp.float32)
            pad1_ref[row_fix:row_fix + 1, G:G + W, :] = z
            pad2_ref[row_fix:row_fix + 1, G:G + W, :] = z

    # ---- depthwise 3x3 conv (padding = 1), f32 elementwise ----
    def dwconv(pad_ref, w_dw, b_dw):
        # Initialize with the first tap (saves one full-tile add pass).
        acc = pad_ref[0:TH, G - 1:G - 1 + W, :] * w_dw[0, 0] + b_dw
        for kh in range(3):
            for kw in range(3):
                if kh == 0 and kw == 0:
                    continue
                c0 = G - 1 + kw
                acc = acc + pad_ref[kh:kh + TH, c0:c0 + W, :] * w_dw[kh, kw]
        return acc

    a1 = dwconv(pad1_ref, w_dw1_ref[...], b_dw1_ref[...])
    # 2*gelu(a1): the 0.5 is folded into w_out (exact power-of-two scale).
    g = a1 * (1.0 + lax.erf(a1 * _INV_SQRT2))
    a2 = dwconv(pad2_ref, w_dw2_ref[...], b_dw2_ref[...])
    gated = g * a2                                # (TH, W, hp) f32

    # ---- project_out: 1x1 conv on the MXU, lane-dense (Dp) output store ----
    out = jnp.dot(gated.reshape(TH * W, hp).astype(jnp.bfloat16), w_out_ref[...],
                  preferred_element_type=jnp.float32) + b_out_ref[...]
    o_ref[0] = out.reshape(TH, W, Dp).astype(o_ref.dtype)


def gdfn_forward(x_nchw, kparams, out_dim, *, tile_h=16):
    """x_nchw: (N, dim, H, W) float32. Returns (N, out_dim, H, W) float32."""
    (w_in, b_in, w_dw1, w_dw2, b_dw1, b_dw2, w_out, b_out) = kparams
    x = jnp.transpose(x_nchw, (0, 2, 3, 1))                      # NCHW -> NHWC
    N, H, W, C = x.shape
    Cp, hp2 = w_in.shape
    hp = hp2 // 2
    Dp = w_out.shape[1]

    TH = tile_h                                                  # row-tile height
    Hp = _round_up(H, TH)                                        # pad rows, never TH=H
    n_tiles = Hp // TH
    pad_w = _GUARD + W + 8

    x = jnp.pad(x, ((0, 0), (0, Hp - H), (0, 0), (0, Cp - C))).astype(jnp.bfloat16)

    kernel = functools.partial(_gdfn_kernel, img_h=H)
    vmem_limit = _vmem_budget_bytes(TH, W, Cp, hp, Dp, pad_w)

    out_nhwc = pl.pallas_call(
        kernel,
        out_shape=jax.ShapeDtypeStruct((N, Hp, W, Dp), jnp.float32),
        grid_spec=pltpu.PrefetchScalarGridSpec(
            num_scalar_prefetch=0,
            grid=(N, n_tiles),
            in_specs=[
                # x row band + clamped 1-row halos (same array, three streams).
                pl.BlockSpec((1, TH, W, Cp), lambda n, t: (n, t, 0, 0)),
                pl.BlockSpec((1, 1, W, Cp),
                             lambda n, t: (n, jnp.maximum(t * TH - 1, 0), 0, 0)),
                pl.BlockSpec((1, 1, W, Cp),
                             lambda n, t: (n, jnp.minimum(t * TH + TH, Hp - 1), 0, 0)),
                pl.BlockSpec((Cp, hp2), lambda n, t: (0, 0)),             # w_in (fused)
                pl.BlockSpec((1, hp2), lambda n, t: (0, 0)),              # b_in
                pl.BlockSpec((3, 3, hp), lambda n, t: (0, 0, 0)),         # w_dw1
                pl.BlockSpec((3, 3, hp), lambda n, t: (0, 0, 0)),         # w_dw2
                pl.BlockSpec((1, hp), lambda n, t: (0, 0)),               # b_dw1
                pl.BlockSpec((1, hp), lambda n, t: (0, 0)),               # b_dw2
                pl.BlockSpec((hp, Dp), lambda n, t: (0, 0)),              # w_out
                pl.BlockSpec((1, Dp), lambda n, t: (0, 0)),               # b_out
            ],
            out_specs=pl.BlockSpec((1, TH, W, Dp), lambda n, t: (n, t, 0, 0)),
            scratch_shapes=[pltpu.VMEM((TH + 2, pad_w, hp), jnp.float32),
                            pltpu.VMEM((TH + 2, pad_w, hp), jnp.float32)],
        ),
        compiler_params=pltpu.CompilerParams(
            dimension_semantics=("parallel", "parallel"),
            vmem_limit_bytes=vmem_limit),
    )(x, x, x, w_in, b_in, w_dw1, w_dw2, b_dw1, b_dw2, w_out, b_out)

    out = out_nhwc[:, :H, :, :out_dim]
    return jnp.transpose(out, (0, 3, 1, 2))                      # NHWC -> NCHW


def make_torch_params(key, dim, ffn_expansion_factor):
    """Deterministic synthetic parameters in PyTorch layout (f32)."""
    hidden = int(dim * ffn_expansion_factor)
    h2 = 2 * hidden
    ks = jax.random.split(key, 6)
    s = 0.5
    w_in = jax.random.normal(ks[0], (h2, dim, 1, 1), jnp.float32) * s
    b_in = jax.random.normal(ks[1], (h2,), jnp.float32) * s
    w_dw = jax.random.normal(ks[2], (h2, 1, 3, 3), jnp.float32) * s
    b_dw = jax.random.normal(ks[3], (h2,), jnp.float32) * s
    w_out = jax.random.normal(ks[4], (dim, hidden, 1, 1), jnp.float32) * s
    b_out = jax.random.normal(ks[5], (dim,), jnp.float32) * s
    return (w_in, b_in, w_dw, b_dw, w_out, b_out)


def to_kernel_params(tparams):
    """Split/pad weights to kernel layout: fused (Cp, 2hp) project_in (lane-aligned
    halves), split dwconv halves, project_out pre-scaled by the GELU 0.5."""
    w_in_t, b_in_t, w_dw_t, b_dw_t, w_out_t, b_out_t = tparams
    h2, dim = w_in_t.shape[0], w_in_t.shape[1]
    hidden = h2 // 2
    out_dim = w_out_t.shape[0]
    Cp = _round_up(dim, _LANE)
    hp = _round_up(hidden, _LANE)
    Dp = _round_up(out_dim, _LANE)

    def pad2(a, r, c):
        return jnp.pad(a, ((0, r - a.shape[0]), (0, c - a.shape[1])))

    w_in = jnp.transpose(w_in_t[:, :, 0, 0], (1, 0))             # (dim, 2h)
    w_in1 = pad2(w_in[:, :hidden], Cp, hp)
    w_in2 = pad2(w_in[:, hidden:], Cp, hp)
    w_in_f = jnp.concatenate([w_in1, w_in2], axis=1).astype(jnp.bfloat16)  # (Cp, 2hp)
    b_in1 = pad2(b_in_t[:hidden].reshape(1, hidden), 1, hp)
    b_in2 = pad2(b_in_t[hidden:].reshape(1, hidden), 1, hp)
    b_in_f = jnp.concatenate([b_in1, b_in2], axis=1)             # (1, 2hp) f32

    w_dw = jnp.transpose(w_dw_t[:, 0, :, :], (1, 2, 0))          # (3, 3, 2h)
    w_dw1 = jnp.pad(w_dw[:, :, :hidden], ((0, 0), (0, 0), (0, hp - hidden)))
    w_dw2 = jnp.pad(w_dw[:, :, hidden:], ((0, 0), (0, 0), (0, hp - hidden)))
    b_dw1 = pad2(b_dw_t[:hidden].reshape(1, hidden), 1, hp)
    b_dw2 = pad2(b_dw_t[hidden:].reshape(1, hidden), 1, hp)

    # GELU's 0.5 folded into project_out (exact: power-of-two scale).
    w_out = pad2(0.5 * jnp.transpose(w_out_t[:, :, 0, 0], (1, 0)), hp, Dp)
    w_out = w_out.astype(jnp.bfloat16)
    b_out = pad2(b_out_t.reshape(1, out_dim), 1, Dp)
    return (w_in_f, b_in_f, w_dw1, w_dw2, b_dw1, b_dw2, w_out, b_out)


def ref_forward(x_nchw, tparams):
    """Pure-JAX reference, mirroring the kernel's mixed precision
    (bf16 matmul operands + f32 accumulation, f32 dwconv/GELU)."""
    w_in_t, b_in_t, w_dw_t, b_dw_t, w_out_t, b_out_t = tparams
    x = jnp.transpose(x_nchw, (0, 2, 3, 1))
    N, H, W, C = x.shape
    w_in = jnp.transpose(w_in_t[:, :, 0, 0], (1, 0))
    y = jnp.einsum('nhwc,cd->nhwd', x.astype(jnp.bfloat16),
                   w_in.astype(jnp.bfloat16),
                   preferred_element_type=jnp.float32) + b_in_t
    yp = jnp.pad(y, ((0, 0), (1, 1), (1, 1), (0, 0)))
    w_dw = jnp.transpose(w_dw_t[:, 0, :, :], (1, 2, 0))
    acc = jnp.zeros_like(y) + b_dw_t
    for kh in range(3):
        for kw in range(3):
            acc = acc + yp[:, kh:kh + H, kw:kw + W, :] * w_dw[kh, kw]
    h = acc.shape[-1] // 2
    x1, x2 = acc[..., :h], acc[..., h:]
    gated = 0.5 * x1 * (1.0 + lax.erf(x1 * _INV_SQRT2)) * x2
    w_out = jnp.transpose(w_out_t[:, :, 0, 0], (1, 0))
    out = jnp.einsum('nhwc,cd->nhwd', gated.astype(jnp.bfloat16),
                     w_out.astype(jnp.bfloat16),
                     preferred_element_type=jnp.float32) + b_out_t
    return jnp.transpose(out, (0, 3, 1, 2))


if __name__ == "__main__":
    dim = 4
    ffn_expansion_factor = 2
    N, H, W = 2, 16, 16

    key = jax.random.PRNGKey(0)
    kx, kp = jax.random.split(key)
    x = jax.random.normal(kx, (N, dim, H, W), jnp.float32)       # NCHW, like PyTorch
    tparams = make_torch_params(kp, dim, ffn_expansion_factor)
    kparams = to_kernel_params(tparams)

    # jit the wrapper so the final channel-slice + NHWC->NCHW transpose fuse.
    fwd = jax.jit(lambda xs, ps: gdfn_forward(xs, ps, dim))
    out = jax.block_until_ready(fwd(x, kparams))
    ref = jax.block_until_ready(ref_forward(x, tparams))

    assert out.shape == (N, dim, H, W)
    assert jnp.allclose(out, ref, rtol=1e-2, atol=1e-2), "mismatch vs reference"
    print("KERNEL_OK")
</pallas_src>

<mosaic_0001>
module attributes {stable_mosaic.version = 11 : i64} {
  func.func @_gdfn_kernel(%arg0: i32, %arg1: i32, %arg2: memref<1x16x16x128xbf16, #tpu.memory_space<vmem>>, %arg3: memref<1x1x16x128xbf16, #tpu.memory_space<vmem>>, %arg4: memref<1x1x16x128xbf16, #tpu.memory_space<vmem>>, %arg5: memref<128x256xbf16, #tpu.memory_space<vmem>>, %arg6: memref<1x256xf32, #tpu.memory_space<vmem>>, %arg7: memref<3x3x128xf32, #tpu.memory_space<vmem>>, %arg8: memref<3x3x128xf32, #tpu.memory_space<vmem>>, %arg9: memref<1x128xf32, #tpu.memory_space<vmem>>, %arg10: memref<1x128xf32, #tpu.memory_space<vmem>>, %arg11: memref<128x128xbf16, #tpu.memory_space<vmem>>, %arg12: memref<1x128xf32, #tpu.memory_space<vmem>>, %arg13: memref<1x16x16x128xf32, #tpu.memory_space<vmem>>, %arg14: memref<18x32x128xf32, #tpu.memory_space<vmem>>, %arg15: memref<18x32x128xf32, #tpu.memory_space<vmem>>) attributes {dimension_semantics = [#tpu.dimension_semantics<parallel>, #tpu.dimension_semantics<parallel>], iteration_bounds = array<i64: 2, 1>, scalar_prefetch = 0 : i64, scratch_operands = 2 : i64, tpu.core_type = #tpu.core_type<tc>, window_params = [{transform_indices = @transform_0, window_bounds = array<i64: 1, 16, 16, 128>}, {transform_indices = @transform_1, window_bounds = array<i64: 1, 1, 16, 128>}, {transform_indices = @transform_2, window_bounds = array<i64: 1, 1, 16, 128>}, {pipeline_mode = #tpu.pipeline_mode<synchronous>, transform_indices = @transform_3, window_bounds = array<i64: 128, 256>}, {pipeline_mode = #tpu.pipeline_mode<synchronous>, transform_indices = @transform_4, window_bounds = array<i64: 1, 256>}, {pipeline_mode = #tpu.pipeline_mode<synchronous>, transform_indices = @transform_5, window_bounds = array<i64: 3, 3, 128>}, {pipeline_mode = #tpu.pipeline_mode<synchronous>, transform_indices = @transform_6, window_bounds = array<i64: 3, 3, 128>}, {pipeline_mode = #tpu.pipeline_mode<synchronous>, transform_indices = @transform_7, window_bounds = array<i64: 1, 128>}, {pipeline_mode = #tpu.pipeline_mode<synchronous>, transform_indices = @transform_8, window_bounds = array<i64: 1, 128>}, {pipeline_mode = #tpu.pipeline_mode<synchronous>, transform_indices = @transform_9, window_bounds = array<i64: 128, 128>}, {pipeline_mode = #tpu.pipeline_mode<synchronous>, transform_indices = @transform_10, window_bounds = array<i64: 1, 128>}, {transform_indices = @transform_11, window_bounds = array<i64: 1, 16, 16, 128>}]} {
    %c0 = arith.constant 0 : index
    %c0_0 = arith.constant 0 : index
    %0 = vector.load %arg5[%c0, %c0_0] : memref<128x256xbf16, #tpu.memory_space<vmem>>, vector<128x256xbf16>
    %c0_1 = arith.constant 0 : index
    %c0_2 = arith.constant 0 : index
    %1 = vector.load %arg6[%c0_1, %c0_2] : memref<1x256xf32, #tpu.memory_space<vmem>>, vector<1x256xf32>
    %c0_i32 = arith.constant 0 : i32
    %2 = arith.cmpi sgt, %arg1, %c0_i32 : i32
    %3 = arith.extui %2 : i1 to i32
    %4 = arith.sitofp %3 : i32 to f32
    %c0_i32_3 = arith.constant 0 : i32
    %5 = arith.cmpi slt, %arg1, %c0_i32_3 : i32
    %6 = arith.extui %5 : i1 to i32
    %7 = arith.sitofp %6 : i32 to f32
    %c0_4 = arith.constant 0 : index
    %c0_5 = arith.constant 0 : index
    %c0_6 = arith.constant 0 : index
    %c0_7 = arith.constant 0 : index
    %8 = vector.load %arg2[%c0_4, %c0_5, %c0_6, %c0_7] : memref<1x16x16x128xbf16, #tpu.memory_space<vmem>>, vector<1x16x16x128xbf16>
    %9 = vector.shape_cast %8 : vector<1x16x16x128xbf16> to vector<16x16x128xbf16>
    %10 = vector.shape_cast %9 : vector<16x16x128xbf16> to vector<256x128xbf16>
    %cst = arith.constant dense<0.000000e+00> : vector<256x256xf32>
    %11 = tpu.matmul %10, %0, %cst {dimension_numbers = #tpu.dot_dimension_numbers<[1], [0], [0], [1], [0, 0, 1, 1], [], []>} : vector<256x128xbf16>, vector<128x256xbf16>, vector<256x256xf32> -> vector<256x256xf32>
    %12 = vector.broadcast %1 : vector<1x256xf32> to vector<256x256xf32>
    %13 = arith.addf %11, %12 : vector<256x256xf32>
    %14 = vector.shape_cast %13 : vector<256x256xf32> to vector<16x16x256xf32>
    %c0_8 = arith.constant 0 : index
    %c0_9 = arith.constant 0 : index
    %c0_10 = arith.constant 0 : index
    %c0_11 = arith.constant 0 : index
    %15 = vector.load %arg3[%c0_8, %c0_9, %c0_10, %c0_11] : memref<1x1x16x128xbf16, #tpu.memory_space<vmem>>, vector<1x1x16x128xbf16>
    %16 = vector.shape_cast %15 : vector<1x1x16x128xbf16> to vector<1x16x128xbf16>
    %17 = vector.shape_cast %16 : vector<1x16x128xbf16> to vector<16x128xbf16>
    %cst_12 = arith.constant dense<0.000000e+00> : vector<16x256xf32>
    %18 = tpu.matmul %17, %0, %cst_12 {dimension_numbers = #tpu.dot_dimension_numbers<[1], [0], [0], [1], [0, 0, 1, 1], [], []>} : vector<16x128xbf16>, vector<128x256xbf16>, vector<16x256xf32> -> vector<16x256xf32>
    %19 = vector.broadcast %1 : vector<1x256xf32> to vector<16x256xf32>
    %20 = arith.addf %18, %19 : vector<16x256xf32>
    %21 = vector.shape_cast %20 : vector<16x256xf32> to vector<1x16x256xf32>
    %22 = vector.broadcast %4 : f32 to vector<1x16x256xf32>
    %23 = arith.mulf %21, %22 : vector<1x16x256xf32>
    %c0_13 = arith.constant 0 : index
    %c0_14 = arith.constant 0 : index
    %c0_15 = arith.constant 0 : index
    %c0_16 = arith.constant 0 : index
    %24 = vector.load %arg4[%c0_13, %c0_14, %c0_15, %c0_16] : memref<1x1x16x128xbf16, #tpu.memory_space<vmem>>, vector<1x1x16x128xbf16>
    %25 = vector.shape_cast %24 : vector<1x1x16x128xbf16> to vector<1x16x128xbf16>
    %26 = vector.shape_cast %25 : vector<1x16x128xbf16> to vector<16x128xbf16>
    %cst_17 = arith.constant dense<0.000000e+00> : vector<16x256xf32>
    %27 = tpu.matmul %26, %0, %cst_17 {dimension_numbers = #tpu.dot_dimension_numbers<[1], [0], [0], [1], [0, 0, 1, 1], [], []>} : vector<16x128xbf16>, vector<128x256xbf16>, vector<16x256xf32> -> vector<16x256xf32>
    %28 = vector.broadcast %1 : vector<1x256xf32> to vector<16x256xf32>
    %29 = arith.addf %27, %28 : vector<16x256xf32>
    %30 = vector.shape_cast %29 : vector<16x256xf32> to vector<1x16x256xf32>
    %31 = vector.broadcast %7 : f32 to vector<1x16x256xf32>
    %32 = arith.mulf %30, %31 : vector<1x16x256xf32>
    %cst_18 = arith.constant 0.000000e+00 : f32
    %33 = vector.broadcast %cst_18 : f32 to vector<18x1x128xf32>
    %c0_19 = arith.constant 0 : index
    %c7 = arith.constant 7 : index
    %c0_20 = arith.constant 0 : index
    %34 = vector.load %arg14[%c0_19, %c7, %c0_20] : memref<18x32x128xf32, #tpu.memory_space<vmem>>, vector<18x1x128xf32>
    tpu.vector_store %arg14[%c0_19, %c7, %c0_20], %33 {strides = array<i32>} : memref<18x32x128xf32, #tpu.memory_space<vmem>>, vector<18x1x128xf32>,
    %cst_21 = arith.constant 0.000000e+00 : f32
    %35 = vector.broadcast %cst_21 : f32 to vector<18x1x128xf32>
    %c0_22 = arith.constant 0 : index
    %c24 = arith.constant 24 : index
    %c0_23 = arith.constant 0 : index
    %36 = vector.load %arg14[%c0_22, %c24, %c0_23] : memref<18x32x128xf32, #tpu.memory_space<vmem>>, vector<18x1x128xf32>
    tpu.vector_store %arg14[%c0_22, %c24, %c0_23], %35 {strides = array<i32>} : memref<18x32x128xf32, #tpu.memory_space<vmem>>, vector<18x1x128xf32>,
    %37 = vector.extract_strided_slice %14 {offsets = [0, 0, 0], sizes = [16, 16, 128], strides = [1, 1, 1]} : vector<16x16x256xf32> to vector<16x16x128xf32>
    %c1 = arith.constant 1 : index
    %c8 = arith.constant 8 : index
    %c0_24 = arith.constant 0 : index
    %38 = vector.load %arg14[%c1, %c8, %c0_24] : memref<18x32x128xf32, #tpu.memory_space<vmem>>, vector<16x16x128xf32>
    tpu.vector_store %arg14[%c1, %c8, %c0_24], %37 {strides = array<i32>} : memref<18x32x128xf32, #tpu.memory_space<vmem>>, vector<16x16x128xf32>,
    %39 = vector.extract_strided_slice %23 {offsets = [0, 0, 0], sizes = [1, 16, 128], strides = [1, 1, 1]} : vector<1x16x256xf32> to vector<1x16x128xf32>
    %c0_25 = arith.constant 0 : index
    %c8_26 = arith.constant 8 : index
    %c0_27 = arith.constant 0 : index
    %40 = vector.load %arg14[%c0_25, %c8_26, %c0_27] : memref<18x32x128xf32, #tpu.memory_space<vmem>>, vector<1x16x128xf32>
    tpu.vector_store %arg14[%c0_25, %c8_26, %c0_27], %39 {strides = array<i32>} : memref<18x32x128xf32, #tpu.memory_space<vmem>>, vector<1x16x128xf32>,
    %41 = vector.extract_strided_slice %32 {offsets = [0, 0, 0], sizes = [1, 16, 128], strides = [1, 1, 1]} : vector<1x16x256xf32> to vector<1x16x128xf32>
    %c17 = arith.constant 17 : index
    %c8_28 = arith.constant 8 : index
    %c0_29 = arith.constant 0 : index
    %42 = vector.load %arg14[%c17, %c8_28, %c0_29] : memref<18x32x128xf32, #tpu.memory_space<vmem>>, vector<1x16x128xf32>
    tpu.vector_store %arg14[%c17, %c8_28, %c0_29], %41 {strides = array<i32>} : memref<18x32x128xf32, #tpu.memory_space<vmem>>, vector<1x16x128xf32>,
    %cst_30 = arith.constant 0.000000e+00 : f32
    %43 = vector.broadcast %cst_30 : f32 to vector<18x1x128xf32>
    %c0_31 = arith.constant 0 : index
    %c7_32 = arith.constant 7 : index
    %c0_33 = arith.constant 0 : index
    %44 = vector.load %arg15[%c0_31, %c7_32, %c0_33] : memref<18x32x128xf32, #tpu.memory_space<vmem>>, vector<18x1x128xf32>
    tpu.vector_store %arg15[%c0_31, %c7_32, %c0_33], %43 {strides = array<i32>} : memref<18x32x128xf32, #tpu.memory_space<vmem>>, vector<18x1x128xf32>,
    %cst_34 = arith.constant 0.000000e+00 : f32
    %45 = vector.broadcast %cst_34 : f32 to vector<18x1x128xf32>
    %c0_35 = arith.constant 0 : index
    %c24_36 = arith.constant 24 : index
    %c0_37 = arith.constant 0 : index
    %46 = vector.load %arg15[%c0_35, %c24_36, %c0_37] : memref<18x32x128xf32, #tpu.memory_space<vmem>>, vector<18x1x128xf32>
    tpu.vector_store %arg15[%c0_35, %c24_36, %c0_37], %45 {strides = array<i32>} : memref<18x32x128xf32, #tpu.memory_space<vmem>>, vector<18x1x128xf32>,
    %47 = vector.extract_strided_slice %14 {offsets = [0, 0, 128], sizes = [16, 16, 128], strides = [1, 1, 1]} : vector<16x16x256xf32> to vector<16x16x128xf32>
    %c1_38 = arith.constant 1 : index
    %c8_39 = arith.constant 8 : index
    %c0_40 = arith.constant 0 : index
    %48 = vector.load %arg15[%c1_38, %c8_39, %c0_40] : memref<18x32x128xf32, #tpu.memory_space<vmem>>, vector<16x16x128xf32>
    tpu.vector_store %arg15[%c1_38, %c8_39, %c0_40], %47 {strides = array<i32>} : memref<18x32x128xf32, #tpu.memory_space<vmem>>, vector<16x16x128xf32>,
    %49 = vector.extract_strided_slice %23 {offsets = [0, 0, 128], sizes = [1, 16, 128], strides = [1, 1, 1]} : vector<1x16x256xf32> to vector<1x16x128xf32>
    %c0_41 = arith.constant 0 : index
    %c8_42 = arith.constant 8 : index
    %c0_43 = arith.constant 0 : index
    %50 = vector.load %arg15[%c0_41, %c8_42, %c0_43] : memref<18x32x128xf32, #tpu.memory_space<vmem>>, vector<1x16x128xf32>
    tpu.vector_store %arg15[%c0_41, %c8_42, %c0_43], %49 {strides = array<i32>} : memref<18x32x128xf32, #tpu.memory_space<vmem>>, vector<1x16x128xf32>,
    %51 = vector.extract_strided_slice %32 {offsets = [0, 0, 128], sizes = [1, 16, 128], strides = [1, 1, 1]} : vector<1x16x256xf32> to vector<1x16x128xf32>
    %c17_44 = arith.constant 17 : index
    %c8_45 = arith.constant 8 : index
    %c0_46 = arith.constant 0 : index
    %52 = vector.load %arg15[%c17_44, %c8_45, %c0_46] : memref<18x32x128xf32, #tpu.memory_space<vmem>>, vector<1x16x128xf32>
    tpu.vector_store %arg15[%c17_44, %c8_45, %c0_46], %51 {strides = array<i32>} : memref<18x32x128xf32, #tpu.memory_space<vmem>>, vector<1x16x128xf32>,
    %c0_47 = arith.constant 0 : index
    %c0_48 = arith.constant 0 : index
    %c0_49 = arith.constant 0 : index
    %53 = vector.load %arg7[%c0_47, %c0_48, %c0_49] : memref<3x3x128xf32, #tpu.memory_space<vmem>>, vector<3x3x128xf32>
    %c0_50 = arith.constant 0 : index
    %c0_51 = arith.constant 0 : index
    %54 = vector.load %arg9[%c0_50, %c0_51] : memref<1x128xf32, #tpu.memory_space<vmem>>, vector<1x128xf32>
    %c0_52 = arith.constant 0 : index
    %c7_53 = arith.constant 7 : index
    %c0_54 = arith.constant 0 : index
    %55 = vector.load %arg14[%c0_52, %c7_53, %c0_54] : memref<18x32x128xf32, #tpu.memory_space<vmem>>, vector<16x16x128xf32>
    %56 = vector.extract_strided_slice %53 {offsets = [0, 0, 0], sizes = [1, 1, 128], strides = [1, 1, 1]} : vector<3x3x128xf32> to vector<1x1x128xf32>
    %57 = vector.shape_cast %56 : vector<1x1x128xf32> to vector<128xf32>
    %58 = vector.shape_cast %57 : vector<128xf32> to vector<1x1x128xf32>
    %59 = vector.broadcast %58 : vector<1x1x128xf32> to vector<16x16x128xf32>
    %60 = arith.mulf %55, %59 : vector<16x16x128xf32>
    %61 = vector.shape_cast %54 : vector<1x128xf32> to vector<1x1x128xf32>
    %62 = vector.broadcast %61 : vector<1x1x128xf32> to vector<16x16x128xf32>
    %63 = arith.addf %60, %62 : vector<16x16x128xf32>
    %c0_55 = arith.constant 0 : index
    %c8_56 = arith.constant 8 : index
    %c0_57 = arith.constant 0 : index
    %64 = vector.load %arg14[%c0_55, %c8_56, %c0_57] : memref<18x32x128xf32, #tpu.memory_space<vmem>>, vector<16x16x128xf32>
    %65 = vector.extract_strided_slice %53 {offsets = [0, 1, 0], sizes = [1, 1, 128], strides = [1, 1, 1]} : vector<3x3x128xf32> to vector<1x1x128xf32>
    %66 = vector.shape_cast %65 : vector<1x1x128xf32> to vector<128xf32>
    %67 = vector.shape_cast %66 : vector<128xf32> to vector<1x1x128xf32>
    %68 = vector.broadcast %67 : vector<1x1x128xf32> to vector<16x16x128xf32>
    %69 = arith.mulf %64, %68 : vector<16x16x128xf32>
    %70 = arith.addf %63, %69 : vector<16x16x128xf32>
    %c0_58 = arith.constant 0 : index
    %c9 = arith.constant 9 : index
    %c0_59 = arith.constant 0 : index
    %71 = vector.load %arg14[%c0_58, %c9, %c0_59] : memref<18x32x128xf32, #tpu.memory_space<vmem>>, vector<16x16x128xf32>
    %72 = vector.extract_strided_slice %53 {offsets = [0, 2, 0], sizes = [1, 1, 128], strides = [1, 1, 1]} : vector<3x3x128xf32> to vector<1x1x128xf32>
    %73 = vector.shape_cast %72 : vector<1x1x128xf32> to vector<128xf32>
    %74 = vector.shape_cast %73 : vector<128xf32> to vector<1x1x128xf32>
    %75 = vector.broadcast %74 : vector<1x1x128xf32> to vector<16x16x128xf32>
    %76 = arith.mulf %71, %75 : vector<16x16x128xf32>
    %77 = arith.addf %70, %76 : vector<16x16x128xf32>
    %c1_60 = arith.constant 1 : index
    %c7_61 = arith.constant 7 : index
    %c0_62 = arith.constant 0 : index
    %78 = vector.load %arg14[%c1_60, %c7_61, %c0_62] : memref<18x32x128xf32, #tpu.memory_space<vmem>>, vector<16x16x128xf32>
    %79 = vector.extract_strided_slice %53 {offsets = [1, 0, 0], sizes = [1, 1, 128], strides = [1, 1, 1]} : vector<3x3x128xf32> to vector<1x1x128xf32>
    %80 = vector.shape_cast %79 : vector<1x1x128xf32> to vector<128xf32>
    %81 = vector.shape_cast %80 : vector<128xf32> to vector<1x1x128xf32>
    %82 = vector.broadcast %81 : vector<1x1x128xf32> to vector<16x16x128xf32>
    %83 = arith.mulf %78, %82 : vector<16x16x128xf32>
    %84 = arith.addf %77, %83 : vector<16x16x128xf32>
    %c1_63 = arith.constant 1 : index
    %c8_64 = arith.constant 8 : index
    %c0_65 = arith.constant 0 : index
    %85 = vector.load %arg14[%c1_63, %c8_64, %c0_65] : memref<18x32x128xf32, #tpu.memory_space<vmem>>, vector<16x16x128xf32>
    %86 = vector.extract_strided_slice %53 {offsets = [1, 1, 0], sizes = [1, 1, 128], strides = [1, 1, 1]} : vector<3x3x128xf32> to vector<1x1x128xf32>
    %87 = vector.shape_cast %86 : vector<1x1x128xf32> to vector<128xf32>
    %88 = vector.shape_cast %87 : vector<128xf32> to vector<1x1x128xf32>
    %89 = vector.broadcast %88 : vector<1x1x128xf32> to vector<16x16x128xf32>
    %90 = arith.mulf %85, %89 : vector<16x16x128xf32>
    %91 = arith.addf %84, %90 : vector<16x16x128xf32>
    %c1_66 = arith.constant 1 : index
    %c9_67 = arith.constant 9 : index
    %c0_68 = arith.constant 0 : index
    %92 = vector.load %arg14[%c1_66, %c9_67, %c0_68] : memref<18x32x128xf32, #tpu.memory_space<vmem>>, vector<16x16x128xf32>
    %93 = vector.extract_strided_slice %53 {offsets = [1, 2, 0], sizes = [1, 1, 128], strides = [1, 1, 1]} : vector<3x3x128xf32> to vector<1x1x128xf32>
    %94 = vector.shape_cast %93 : vector<1x1x128xf32> to vector<128xf32>
    %95 = vector.shape_cast %94 : vector<128xf32> to vector<1x1x128xf32>
    %96 = vector.broadcast %95 : vector<1x1x128xf32> to vector<16x16x128xf32>
    %97 = arith.mulf %92, %96 : vector<16x16x128xf32>
    %98 = arith.addf %91, %97 : vector<16x16x128xf32>
    %c2 = arith.constant 2 : index
    %c7_69 = arith.constant 7 : index
    %c0_70 = arith.constant 0 : index
    %99 = vector.load %arg14[%c2, %c7_69, %c0_70] : memref<18x32x128xf32, #tpu.memory_space<vmem>>, vector<16x16x128xf32>
    %100 = vector.extract_strided_slice %53 {offsets = [2, 0, 0], sizes = [1, 1, 128], strides = [1, 1, 1]} : vector<3x3x128xf32> to vector<1x1x128xf32>
    %101 = vector.shape_cast %100 : vector<1x1x128xf32> to vector<128xf32>
    %102 = vector.shape_cast %101 : vector<128xf32> to vector<1x1x128xf32>
    %103 = vector.broadcast %102 : vector<1x1x128xf32> to vector<16x16x128xf32>
    %104 = arith.mulf %99, %103 : vector<16x16x128xf32>
    %105 = arith.addf %98, %104 : vector<16x16x128xf32>
    %c2_71 = arith.constant 2 : index
    %c8_72 = arith.constant 8 : index
    %c0_73 = arith.constant 0 : index
    %106 = vector.load %arg14[%c2_71, %c8_72, %c0_73] : memref<18x32x128xf32, #tpu.memory_space<vmem>>, vector<16x16x128xf32>
    %107 = vector.extract_strided_slice %53 {offsets = [2, 1, 0], sizes = [1, 1, 128], strides = [1, 1, 1]} : vector<3x3x128xf32> to vector<1x1x128xf32>
    %108 = vector.shape_cast %107 : vector<1x1x128xf32> to vector<128xf32>
    %109 = vector.shape_cast %108 : vector<128xf32> to vector<1x1x128xf32>
    %110 = vector.broadcast %109 : vector<1x1x128xf32> to vector<16x16x128xf32>
    %111 = arith.mulf %106, %110 : vector<16x16x128xf32>
    %112 = arith.addf %105, %111 : vector<16x16x128xf32>
    %c2_74 = arith.constant 2 : index
    %c9_75 = arith.constant 9 : index
    %c0_76 = arith.constant 0 : index
    %113 = vector.load %arg14[%c2_74, %c9_75, %c0_76] : memref<18x32x128xf32, #tpu.memory_space<vmem>>, vector<16x16x128xf32>
    %114 = vector.extract_strided_slice %53 {offsets = [2, 2, 0], sizes = [1, 1, 128], strides = [1, 1, 1]} : vector<3x3x128xf32> to vector<1x1x128xf32>
    %115 = vector.shape_cast %114 : vector<1x1x128xf32> to vector<128xf32>
    %116 = vector.shape_cast %115 : vector<128xf32> to vector<1x1x128xf32>
    %117 = vector.broadcast %116 : vector<1x1x128xf32> to vector<16x16x128xf32>
    %118 = arith.mulf %113, %117 : vector<16x16x128xf32>
    %119 = arith.addf %112, %118 : vector<16x16x128xf32>
    %cst_77 = arith.constant 0.707106769 : f32
    %120 = vector.broadcast %cst_77 : f32 to vector<16x16x128xf32>
    %121 = arith.mulf %119, %120 : vector<16x16x128xf32>
    %122 = math.erf %121 : vector<16x16x128xf32>
    %cst_78 = arith.constant 1.000000e+00 : f32
    %123 = vector.broadcast %cst_78 : f32 to vector<16x16x128xf32>
    %124 = arith.addf %123, %122 : vector<16x16x128xf32>
    %125 = arith.mulf %119, %124 : vector<16x16x128xf32>
    %c0_79 = arith.constant 0 : index
    %c0_80 = arith.constant 0 : index
    %c0_81 = arith.constant 0 : index
    %126 = vector.load %arg8[%c0_79, %c0_80, %c0_81] : memref<3x3x128xf32, #tpu.memory_space<vmem>>, vector<3x3x128xf32>
    %c0_82 = arith.constant 0 : index
    %c0_83 = arith.constant 0 : index
    %127 = vector.load %arg10[%c0_82, %c0_83] : memref<1x128xf32, #tpu.memory_space<vmem>>, vector<1x128xf32>
    %c0_84 = arith.constant 0 : index
    %c7_85 = arith.constant 7 : index
    %c0_86 = arith.constant 0 : index
    %128 = vector.load %arg15[%c0_84, %c7_85, %c0_86] : memref<18x32x128xf32, #tpu.memory_space<vmem>>, vector<16x16x128xf32>
    %129 = vector.extract_strided_slice %126 {offsets = [0, 0, 0], sizes = [1, 1, 128], strides = [1, 1, 1]} : vector<3x3x128xf32> to vector<1x1x128xf32>
    %130 = vector.shape_cast %129 : vector<1x1x128xf32> to vector<128xf32>
    %131 = vector.shape_cast %130 : vector<128xf32> to vector<1x1x128xf32>
    %132 = vector.broadcast %131 : vector<1x1x128xf32> to vector<16x16x128xf32>
    %133 = arith.mulf %128, %132 : vector<16x16x128xf32>
    %134 = vector.shape_cast %127 : vector<1x128xf32> to vector<1x1x128xf32>
    %135 = vector.broadcast %134 : vector<1x1x128xf32> to vector<16x16x128xf32>
    %136 = arith.addf %133, %135 : vector<16x16x128xf32>
    %c0_87 = arith.constant 0 : index
    %c8_88 = arith.constant 8 : index
    %c0_89 = arith.constant 0 : index
    %137 = vector.load %arg15[%c0_87, %c8_88, %c0_89] : memref<18x32x128xf32, #tpu.memory_space<vmem>>, vector<16x16x128xf32>
    %138 = vector.extract_strided_slice %126 {offsets = [0, 1, 0], sizes = [1, 1, 128], strides = [1, 1, 1]} : vector<3x3x128xf32> to vector<1x1x128xf32>
    %139 = vector.shape_cast %138 : vector<1x1x128xf32> to vector<128xf32>
    %140 = vector.shape_cast %139 : vector<128xf32> to vector<1x1x128xf32>
    %141 = vector.broadcast %140 : vector<1x1x128xf32> to vector<16x16x128xf32>
    %142 = arith.mulf %137, %141 : vector<16x16x128xf32>
    %143 = arith.addf %136, %142 : vector<16x16x128xf32>
    %c0_90 = arith.constant 0 : index
    %c9_91 = arith.constant 9 : index
    %c0_92 = arith.constant 0 : index
    %144 = vector.load %arg15[%c0_90, %c9_91, %c0_92] : memref<18x32x128xf32, #tpu.memory_space<vmem>>, vector<16x16x128xf32>
    %145 = vector.extract_strided_slice %126 {offsets = [0, 2, 0], sizes = [1, 1, 128], strides = [1, 1, 1]} : vector<3x3x128xf32> to vector<1x1x128xf32>
    %146 = vector.shape_cast %145 : vector<1x1x128xf32> to vector<128xf32>
    %147 = vector.shape_cast %146 : vector<128xf32> to vector<1x1x128xf32>
    %148 = vector.broadcast %147 : vector<1x1x128xf32> to vector<16x16x128xf32>
    %149 = arith.mulf %144, %148 : vector<16x16x128xf32>
    %150 = arith.addf %143, %149 : vector<16x16x128xf32>
    %c1_93 = arith.constant 1 : index
    %c7_94 = arith.constant 7 : index
    %c0_95 = arith.constant 0 : index
    %151 = vector.load %arg15[%c1_93, %c7_94, %c0_95] : memref<18x32x128xf32, #tpu.memory_space<vmem>>, vector<16x16x128xf32>
    %152 = vector.extract_strided_slice %126 {offsets = [1, 0, 0], sizes = [1, 1, 128], strides = [1, 1, 1]} : vector<3x3x128xf32> to vector<1x1x128xf32>
    %153 = vector.shape_cast %152 : vector<1x1x128xf32> to vector<128xf32>
    %154 = vector.shape_cast %153 : vector<128xf32> to vector<1x1x128xf32>
    %155 = vector.broadcast %154 : vector<1x1x128xf32> to vector<16x16x128xf32>
    %156 = arith.mulf %151, %155 : vector<16x16x128xf32>
    %157 = arith.addf %150, %156 : vector<16x16x128xf32>
    %c1_96 = arith.constant 1 : index
    %c8_97 = arith.constant 8 : index
    %c0_98 = arith.constant 0 : index
    %158 = vector.load %arg15[%c1_96, %c8_97, %c0_98] : memref<18x32x128xf32, #tpu.memory_space<vmem>>, vector<16x16x128xf32>
    %159 = vector.extract_strided_slice %126 {offsets = [1, 1, 0], sizes = [1, 1, 128], strides = [1, 1, 1]} : vector<3x3x128xf32> to vector<1x1x128xf32>
    %160 = vector.shape_cast %159 : vector<1x1x128xf32> to vector<128xf32>
    %161 = vector.shape_cast %160 : vector<128xf32> to vector<1x1x128xf32>
    %162 = vector.broadcast %161 : vector<1x1x128xf32> to vector<16x16x128xf32>
    %163 = arith.mulf %158, %162 : vector<16x16x128xf32>
    %164 = arith.addf %157, %163 : vector<16x16x128xf32>
    %c1_99 = arith.constant 1 : index
    %c9_100 = arith.constant 9 : index
    %c0_101 = arith.constant 0 : index
    %165 = vector.load %arg15[%c1_99, %c9_100, %c0_101] : memref<18x32x128xf32, #tpu.memory_space<vmem>>, vector<16x16x128xf32>
    %166 = vector.extract_strided_slice %126 {offsets = [1, 2, 0], sizes = [1, 1, 128], strides = [1, 1, 1]} : vector<3x3x128xf32> to vector<1x1x128xf32>
    %167 = vector.shape_cast %166 : vector<1x1x128xf32> to vector<128xf32>
    %168 = vector.shape_cast %167 : vector<128xf32> to vector<1x1x128xf32>
    %169 = vector.broadcast %168 : vector<1x1x128xf32> to vector<16x16x128xf32>
    %170 = arith.mulf %165, %169 : vector<16x16x128xf32>
    %171 = arith.addf %164, %170 : vector<16x16x128xf32>
    %c2_102 = arith.constant 2 : index
    %c7_103 = arith.constant 7 : index
    %c0_104 = arith.constant 0 : index
    %172 = vector.load %arg15[%c2_102, %c7_103, %c0_104] : memref<18x32x128xf32, #tpu.memory_space<vmem>>, vector<16x16x128xf32>
    %173 = vector.extract_strided_slice %126 {offsets = [2, 0, 0], sizes = [1, 1, 128], strides = [1, 1, 1]} : vector<3x3x128xf32> to vector<1x1x128xf32>
    %174 = vector.shape_cast %173 : vector<1x1x128xf32> to vector<128xf32>
    %175 = vector.shape_cast %174 : vector<128xf32> to vector<1x1x128xf32>
    %176 = vector.broadcast %175 : vector<1x1x128xf32> to vector<16x16x128xf32>
    %177 = arith.mulf %172, %176 : vector<16x16x128xf32>
    %178 = arith.addf %171, %177 : vector<16x16x128xf32>
    %c2_105 = arith.constant 2 : index
    %c8_106 = arith.constant 8 : index
    %c0_107 = arith.constant 0 : index
    %179 = vector.load %arg15[%c2_105, %c8_106, %c0_107] : memref<18x32x128xf32, #tpu.memory_space<vmem>>, vector<16x16x128xf32>
    %180 = vector.extract_strided_slice %126 {offsets = [2, 1, 0], sizes = [1, 1, 128], strides = [1, 1, 1]} : vector<3x3x128xf32> to vector<1x1x128xf32>
    %181 = vector.shape_cast %180 : vector<1x1x128xf32> to vector<128xf32>
    %182 = vector.shape_cast %181 : vector<128xf32> to vector<1x1x128xf32>
    %183 = vector.broadcast %182 : vector<1x1x128xf32> to vector<16x16x128xf32>
    %184 = arith.mulf %179, %183 : vector<16x16x128xf32>
    %185 = arith.addf %178, %184 : vector<16x16x128xf32>
    %c2_108 = arith.constant 2 : index
    %c9_109 = arith.constant 9 : index
    %c0_110 = arith.constant 0 : index
    %186 = vector.load %arg15[%c2_108, %c9_109, %c0_110] : memref<18x32x128xf32, #tpu.memory_space<vmem>>, vector<16x16x128xf32>
    %187 = vector.extract_strided_slice %126 {offsets = [2, 2, 0], sizes = [1, 1, 128], strides = [1, 1, 1]} : vector<3x3x128xf32> to vector<1x1x128xf32>
    %188 = vector.shape_cast %187 : vector<1x1x128xf32> to vector<128xf32>
    %189 = vector.shape_cast %188 : vector<128xf32> to vector<1x1x128xf32>
    %190 = vector.broadcast %189 : vector<1x1x128xf32> to vector<16x16x128xf32>
    %191 = arith.mulf %186, %190 : vector<16x16x128xf32>
    %192 = arith.addf %185, %191 : vector<16x16x128xf32>
    %193 = arith.mulf %125, %192 : vector<16x16x128xf32>
    %194 = vector.shape_cast %193 : vector<16x16x128xf32> to vector<256x128xf32>
    %195 = arith.truncf %194 : vector<256x128xf32> to vector<256x128xbf16>
    %c0_111 = arith.constant 0 : index
    %c0_112 = arith.constant 0 : index
    %196 = vector.load %arg11[%c0_111, %c0_112] : memref<128x128xbf16, #tpu.memory_space<vmem>>, vector<128x128xbf16>
    %cst_113 = arith.constant dense<0.000000e+00> : vector<256x128xf32>
    %197 = tpu.matmul %195, %196, %cst_113 {dimension_numbers = #tpu.dot_dimension_numbers<[1], [0], [0], [1], [0, 0, 1, 1], [], []>} : vector<256x128xbf16>, vector<128x128xbf16>, vector<256x128xf32> -> vector<256x128xf32>
    %c0_114 = arith.constant 0 : index
    %c0_115 = arith.constant 0 : index
    %198 = vector.load %arg12[%c0_114, %c0_115] : memref<1x128xf32, #tpu.memory_space<vmem>>, vector<1x128xf32>
    %199 = vector.broadcast %198 : vector<1x128xf32> to vector<256x128xf32>
    %200 = arith.addf %197, %199 : vector<256x128xf32>
    %201 = vector.shape_cast %200 : vector<256x128xf32> to vector<16x16x128xf32>
    %c0_116 = arith.constant 0 : index
    %c0_117 = arith.constant 0 : index
    %c0_118 = arith.constant 0 : index
    %c0_119 = arith.constant 0 : index
    %202 = vector.load %arg13[%c0_116, %c0_117, %c0_118, %c0_119] : memref<1x16x16x128xf32, #tpu.memory_space<vmem>>, vector<1x16x16x128xf32>
    %203 = vector.shape_cast %202 : vector<1x16x16x128xf32> to vector<16x16x128xf32>
    %204 = vector.shape_cast %201 : vector<16x16x128xf32> to vector<1x16x16x128xf32>
    tpu.vector_store %arg13[%c0_116, %c0_117, %c0_118, %c0_119], %204 {strides = array<i32>} : memref<1x16x16x128xf32, #tpu.memory_space<vmem>>, vector<1x16x16x128xf32>,
    return
  }
  func.func @transform_0(%arg0: i32, %arg1: i32) -> (i32, i32, i32, i32) {
    %c0_i32 = arith.constant 0 : i32
    %c0_i32_0 = arith.constant 0 : i32
    %c0_i32_1 = arith.constant 0 : i32
    return %arg0, %arg1, %c0_i32, %c0_i32_0 : i32, i32, i32, i32
  }
  func.func @transform_1(%arg0: i32, %arg1: i32) -> (i32, i32, i32, i32) {
    %c16_i32 = arith.constant 16 : i32
    %0 = arith.muli %arg1, %c16_i32 : i32
    %c1_i32 = arith.constant 1 : i32
    %1 = arith.subi %0, %c1_i32 : i32
    %c0_i32 = arith.constant 0 : i32
    %2 = arith.maxsi %1, %c0_i32 : i32
    %c0_i32_0 = arith.constant 0 : i32
    %c0_i32_1 = arith.constant 0 : i32
    %c0_i32_2 = arith.constant 0 : i32
    return %arg0, %2, %c0_i32_0, %c0_i32_1 : i32, i32, i32, i32
  }
  func.func @transform_2(%arg0: i32, %arg1: i32) -> (i32, i32, i32, i32) {
    %c16_i32 = arith.constant 16 : i32
    %0 = arith.muli %arg1, %c16_i32 : i32
    %c16_i32_0 = arith.constant 16 : i32
    %1 = arith.addi %0, %c16_i32_0 : i32
    %c15_i32 = arith.constant 15 : i32
    %2 = arith.minsi %1, %c15_i32 : i32
    %c0_i32 = arith.constant 0 : i32
    %c0_i32_1 = arith.constant 0 : i32
    %c0_i32_2 = arith.constant 0 : i32
    return %arg0, %2, %c0_i32, %c0_i32_1 : i32, i32, i32, i32
  }
  func.func @transform_3(%arg0: i32, %arg1: i32) -> (i32, i32) {
    %c0_i32 = arith.constant 0 : i32
    %c0_i32_0 = arith.constant 0 : i32
    %c0_i32_1 = arith.constant 0 : i32
    return %c0_i32, %c0_i32_0 : i32, i32
  }
  func.func @transform_4(%arg0: i32, %arg1: i32) -> (i32, i32) {
    %c0_i32 = arith.constant 0 : i32
    %c0_i32_0 = arith.constant 0 : i32
    %c0_i32_1 = arith.constant 0 : i32
    return %c0_i32, %c0_i32_0 : i32, i32
  }
  func.func @transform_5(%arg0: i32, %arg1: i32) -> (i32, i32, i32) {
    %c0_i32 = arith.constant 0 : i32
    %c0_i32_0 = arith.constant 0 : i32
    %c0_i32_1 = arith.constant 0 : i32
    %c0_i32_2 = arith.constant 0 : i32
    return %c0_i32, %c0_i32_0, %c0_i32_1 : i32, i32, i32
  }
  func.func @transform_6(%arg0: i32, %arg1: i32) -> (i32, i32, i32) {
    %c0_i32 = arith.constant 0 : i32
    %c0_i32_0 = arith.constant 0 : i32
    %c0_i32_1 = arith.constant 0 : i32
    %c0_i32_2 = arith.constant 0 : i32
    return %c0_i32, %c0_i32_0, %c0_i32_1 : i32, i32, i32
  }
  func.func @transform_7(%arg0: i32, %arg1: i32) -> (i32, i32) {
    %c0_i32 = arith.constant 0 : i32
    %c0_i32_0 = arith.constant 0 : i32
    %c0_i32_1 = arith.constant 0 : i32
    return %c0_i32, %c0_i32_0 : i32, i32
  }
  func.func @transform_8(%arg0: i32, %arg1: i32) -> (i32, i32) {
    %c0_i32 = arith.constant 0 : i32
    %c0_i32_0 = arith.constant 0 : i32
    %c0_i32_1 = arith.constant 0 : i32
    return %c0_i32, %c0_i32_0 : i32, i32
  }
  func.func @transform_9(%arg0: i32, %arg1: i32) -> (i32, i32) {
    %c0_i32 = arith.constant 0 : i32
    %c0_i32_0 = arith.constant 0 : i32
    %c0_i32_1 = arith.constant 0 : i32
    return %c0_i32, %c0_i32_0 : i32, i32
  }
  func.func @transform_10(%arg0: i32, %arg1: i32) -> (i32, i32) {
    %c0_i32 = arith.constant 0 : i32
    %c0_i32_0 = arith.constant 0 : i32
    %c0_i32_1 = arith.constant 0 : i32
    return %c0_i32, %c0_i32_0 : i32, i32
  }
  func.func @transform_11(%arg0: i32, %arg1: i32) -> (i32, i32, i32, i32) {
    %c0_i32 = arith.constant 0 : i32
    %c0_i32_0 = arith.constant 0 : i32
    %c0_i32_1 = arith.constant 0 : i32
    return %arg0, %arg1, %c0_i32, %c0_i32_0 : i32, i32, i32, i32
  }
}

</mosaic_0001>

<llo_original>
// kernel: _lambda_.1
$region0: #{_lambda_.1}
  #allocation0 [shape = 'u32[]', space=smem, size = 0x4, offset = 0x4, fixed_abs, tag = 'smem constant byte address 0x4 - core index']
  #allocation1 [shape = 'u32[144,128]{1,0:T(1,128)}', space=vmem, size = 0x12000, scoped, tag = 'internal scratch']
  #allocation2 [shape = 'f32[18,32,128]{2,1,0:T(8,128)}', space=vmem, size = 0x48000, scoped, tag = 'scratch operand']
  #allocation3 [shape = 'f32[18,32,128]{2,1,0:T(8,128)}', space=vmem, size = 0x48000, scoped, tag = 'scratch operand']
  %s0 = inlined_call_operand.vmem [shape: bf16[2,16,16,128], index: 0, kind: input, shape index: {}, may-alias: {0,1,2}]
  %s1 = inlined_call_operand.vmem [shape: bf16[2,16,16,128], index: 1, kind: input, shape index: {}, may-alias: {0,1,2}]
  %s2 = inlined_call_operand.vmem [shape: bf16[2,16,16,128], index: 2, kind: input, shape index: {}, may-alias: {0,1,2}]
  %s3 = inlined_call_operand.vmem [shape: bf16[128,256], index: 3, kind: input, shape index: {}]
  %s4 = inlined_call_operand.vmem [shape: f32[1,256], index: 4, kind: input, shape index: {}]
  %s5 = inlined_call_operand.vmem [shape: f32[3,3,128], index: 5, kind: input, shape index: {}]
  %s6 = inlined_call_operand.vmem [shape: f32[3,3,128], index: 6, kind: input, shape index: {}]
  %s7 = inlined_call_operand.vmem [shape: f32[1,128], index: 7, kind: input, shape index: {}]
  %s8 = inlined_call_operand.vmem [shape: f32[1,128], index: 8, kind: input, shape index: {}]
  %s9 = inlined_call_operand.vmem [shape: bf16[128,128], index: 9, kind: input, shape index: {}]
  %s10 = inlined_call_operand.vmem [shape: f32[1,128], index: 10, kind: input, shape index: {}]
  %s11 = inlined_call_operand.vmem [shape: f32[2,16,16,128], index: 11, kind: output, shape index: {}]
  %s12 = sld [smem:[#allocation0]]
  $region77: #{_lambda_.1} parent=0
    _
  %s14 = ssub.s32 1, %s12
  %s15 = scalar_select 0, %s14, %s12
  loop: start=0, step=1, limit=4
  $region2: #{_lambda_.1} parent=0 // loop_pre_header
    _
  $region3: #{_lambda_.1} parent=0 // loop_header
    %s17 = sphi 0, %s21
    %p18 = scmp.ge.s32.totalorder %s17, 4
    %s24 = sphi 0, %s36
    %s25 = sphi 0, %s32
    %s26 = sphi 0, %s24
    %s27 = sphi 0, %s25
    %s28 = sphi 0, %s26
    %s29 = sphi 0, %s27
    %s41 = sphi 0, %s43
    %s44 = sphi 0, %s41
    %s45 = sphi 0, %s44
    %s61 = sphi 0, %s45
    %s77 = sphi 0, %s79
    %s80 = sphi 0, %s77
    %s81 = sphi 0, %s80
    %s97 = sphi 0, %s81
    %s113 = sphi 0, %s115
    %s116 = sphi 0, %s113
    %s117 = sphi 0, %s116
    %s133 = sphi 0, %s117
    %s137 = sphi 0, %s137
    %s139 = sphi 0, %s137
    %s140 = sphi 0, %s139
    %s154 = sphi 0, %s140
    %s158 = sphi 0, %s158
    %s160 = sphi 0, %s158
    %s161 = sphi 0, %s160
    %s175 = sphi 0, %s161
    %s179 = sphi 0, %s179
    %s181 = sphi 0, %s179
    %s182 = sphi 0, %s181
    %s196 = sphi 0, %s182
    %s200 = sphi 0, %s200
    %s202 = sphi 0, %s200
    %s203 = sphi 0, %s202
    %s217 = sphi 0, %s203
    %s221 = sphi 0, %s221
    %s223 = sphi 0, %s221
    %s224 = sphi 0, %s223
    %s238 = sphi 0, %s224
    %s242 = sphi 0, %s242
    %s244 = sphi 0, %s242
    %s245 = sphi 0, %s244
    %s259 = sphi 0, %s245
    %s263 = sphi 0, %s263
    %s265 = sphi 0, %s263
    %s266 = sphi 0, %s265
    %s280 = sphi 0, %s266
    %s284 = sphi 0, %s284
    %s286 = sphi 0, %s284
    %s287 = sphi 0, %s286
    %s301 = sphi 0, %s287
    %s309 = sphi 0, %s311
    %s312 = sphi 0, %s309
    %s313 = sphi 0, %s312
    %s329 = sphi 0, %s313
  $region4: #{_lambda_.1} parent=0 // loop_header_branch
    %20 = sbr.rel (%p18) target = $region8
  $region5: #{_lambda_.1} parent=0 // loop_body
    %s22 = ssub.s32 %s17, 1
    %s23 = ssub.s32 %s17, 2
    %s30 = sadd.s32 1, %s25
    %p31 = scmp.ge.s32.totalorder %s30, 1
    %s32 = scalar_select %p31, 0, %s30
    %s33 = sadd.s32 1, %s24
    %s34 = scalar_select %p31, %s33, %s24
    %p35 = scmp.ge.s32.totalorder %s34, 2
    %s36 = scalar_select %p35, 0, %s34
    %s37 = ssub.s32 %s24, %s36
    %s38 = ssub.s32 %s25, %s32
    %s39 = sor.u32 %s37, %s38
    %p40 = scmp.eq.s32.totalorder %s39, 0
    %s42 = sadd.s32 %s41, 1
    %s43 = scalar_select %p40, %s41, %s42
    %p46 = pneg %p40
    %p47 = scmp.eq.s32.totalorder %s17, 1
    %p48 = por %p46, %p47
    %p49 = scmp.ne.s32.totalorder %s41, %s44
    %p50 = scmp.eq.s32.totalorder %s17, 0
    %p51 = por %p49, %p50
    %p52 = scmp.ne.s32.totalorder %s41, %s44
    %p53 = scmp.eq.s32.totalorder %s22, 1
    %p54 = por %p52, %p53
    %p55 = scmp.ne.s32.totalorder %s44, %s45
    %p56 = scmp.eq.s32.totalorder %s22, 0
    %p57 = por %p55, %p56
    %p58 = scmp.ne.s32.totalorder %s44, %s45
    %p59 = scmp.eq.s32.totalorder %s23, 1
    %p60 = por %p58, %p59
    %p62 = scmp.ne.s32.totalorder %s45, %s61
    %p63 = scmp.eq.s32.totalorder %s23, 0
    %p64 = por %p62, %p63
    %s65 = smul.u32 %s25, 16
    %s66 = ssub.s32 %s65, 1
    %p67 = scmp.gt.s32.totalorder %s66, 0
    %s68 = scalar_select %p67, %s66, 0
    %s69 = smul.u32 %s32, 16
    %s70 = ssub.s32 %s69, 1
    %p71 = scmp.gt.s32.totalorder %s70, 0
    %s72 = scalar_select %p71, %s70, 0
    %s73 = ssub.s32 %s24, %s36
    %s74 = ssub.s32 %s68, %s72
    %s75 = sor.u32 %s73, %s74
    %p76 = scmp.eq.s32.totalorder %s75, 0
    %s78 = sadd.s32 %s77, 1
    %s79 = scalar_select %p76, %s77, %s78
    %p82 = pneg %p76
    %p83 = scmp.eq.s32.totalorder %s17, 1
    %p84 = por %p82, %p83
    %p85 = scmp.ne.s32.totalorder %s77, %s80
    %p86 = scmp.eq.s32.totalorder %s17, 0
    %p87 = por %p85, %p86
    %p88 = scmp.ne.s32.totalorder %s77, %s80
    %p89 = scmp.eq.s32.totalorder %s22, 1
    %p90 = por %p88, %p89
    %p91 = scmp.ne.s32.totalorder %s80, %s81
    %p92 = scmp.eq.s32.totalorder %s22, 0
    %p93 = por %p91, %p92
    %p94 = scmp.ne.s32.totalorder %s80, %s81
    %p95 = scmp.eq.s32.totalorder %s23, 1
    %p96 = por %p94, %p95
    %p98 = scmp.ne.s32.totalorder %s81, %s97
    %p99 = scmp.eq.s32.totalorder %s23, 0
    %p100 = por %p98, %p99
    %s101 = smul.u32 %s25, 16
    %s102 = sadd.s32 %s101, 16
    %p103 = scmp.lt.s32.totalorder %s102, 15
    %s104 = scalar_select %p103, %s102, 15
    %s105 = smul.u32 %s32, 16
    %s106 = sadd.s32 %s105, 16
    %p107 = scmp.lt.s32.totalorder %s106, 15
    %s108 = scalar_select %p107, %s106, 15
    %s109 = ssub.s32 %s24, %s36
    %s110 = ssub.s32 %s104, %s108
    %s111 = sor.u32 %s109, %s110
    %p112 = scmp.eq.s32.totalorder %s111, 0
    %s114 = sadd.s32 %s113, 1
    %s115 = scalar_select %p112, %s113, %s114
    %p118 = pneg %p112
    %p119 = scmp.eq.s32.totalorder %s17, 1
    %p120 = por %p118, %p119
    %p121 = scmp.ne.s32.totalorder %s113, %s116
    %p122 = scmp.eq.s32.totalorder %s17, 0
    %p123 = por %p121, %p122
    %p124 = scmp.ne.s32.totalorder %s113, %s116
    %p125 = scmp.eq.s32.totalorder %s22, 1
    %p126 = por %p124, %p125
    %p127 = scmp.ne.s32.totalorder %s116, %s117
    %p128 = scmp.eq.s32.totalorder %s22, 0
    %p129 = por %p127, %p128
    %p130 = scmp.ne.s32.totalorder %s116, %s117
    %p131 = scmp.eq.s32.totalorder %s23, 1
    %p132 = por %p130, %p131
    %p134 = scmp.ne.s32.totalorder %s117, %s133
    %p135 = scmp.eq.s32.totalorder %s23, 0
    %p136 = por %p134, %p135
    %s138 = sadd.s32 %s137, 1
    %p141 = scmp.eq.s32.totalorder %s17, 1
    %p142 = scmp.ne.s32.totalorder %s137, %s139
    %p143 = scmp.eq.s32.totalorder %s17, 0
    %p144 = por %p142, %p143
    %p145 = scmp.ne.s32.totalorder %s137, %s139
    %p146 = scmp.eq.s32.totalorder %s22, 1
    %p147 = por %p145, %p146
    %p148 = scmp.ne.s32.totalorder %s139, %s140
    %p149 = scmp.eq.s32.totalorder %s22, 0
    %p150 = por %p148, %p149
    %p151 = scmp.ne.s32.totalorder %s139, %s140
    %p152 = scmp.eq.s32.totalorder %s23, 1
    %p153 = por %p151, %p152
    %p155 = scmp.ne.s32.totalorder %s140, %s154
    %p156 = scmp.eq.s32.totalorder %s23, 0
    %p157 = por %p155, %p156
    %s159 = sadd.s32 %s158, 1
    %p162 = scmp.eq.s32.totalorder %s17, 1
    %p163 = scmp.ne.s32.totalorder %s158, %s160
    %p164 = scmp.eq.s32.totalorder %s17, 0
    %p165 = por %p163, %p164
    %p166 = scmp.ne.s32.totalorder %s158, %s160
    %p167 = scmp.eq.s32.totalorder %s22, 1
    %p168 = por %p166, %p167
    %p169 = scmp.ne.s32.totalorder %s160, %s161
    %p170 = scmp.eq.s32.totalorder %s22, 0
    %p171 = por %p169, %p170
    %p172 = scmp.ne.s32.totalorder %s160, %s161
    %p173 = scmp.eq.s32.totalorder %s23, 1
    %p174 = por %p172, %p173
    %p176 = scmp.ne.s32.totalorder %s161, %s175
    %p177 = scmp.eq.s32.totalorder %s23, 0
    %p178 = por %p176, %p177
    %s180 = sadd.s32 %s179, 1
    %p183 = scmp.eq.s32.totalorder %s17, 1
    %p184 = scmp.ne.s32.totalorder %s179, %s181
    %p185 = scmp.eq.s32.totalorder %s17, 0
    %p186 = por %p184, %p185
    %p187 = scmp.ne.s32.totalorder %s179, %s181
    %p188 = scmp.eq.s32.totalorder %s22, 1
    %p189 = por %p187, %p188
    %p190 = scmp.ne.s32.totalorder %s181, %s182
    %p191 = scmp.eq.s32.totalorder %s22, 0
    %p192 = por %p190, %p191
    %p193 = scmp.ne.s32.totalorder %s181, %s182
    %p194 = scmp.eq.s32.totalorder %s23, 1
    %p195 = por %p193, %p194
    %p197 = scmp.ne.s32.totalorder %s182, %s196
    %p198 = scmp.eq.s32.totalorder %s23, 0
    %p199 = por %p197, %p198
    %s201 = sadd.s32 %s200, 1
    %p204 = scmp.eq.s32.totalorder %s17, 1
    %p205 = scmp.ne.s32.totalorder %s200, %s202
    %p206 = scmp.eq.s32.totalorder %s17, 0
    %p207 = por %p205, %p206
    %p208 = scmp.ne.s32.totalorder %s200, %s202
    %p209 = scmp.eq.s32.totalorder %s22, 1
    %p210 = por %p208, %p209
    %p211 = scmp.ne.s32.totalorder %s202, %s203
    %p212 = scmp.eq.s32.totalorder %s22, 0
    %p213 = por %p211, %p212
    %p214 = scmp.ne.s32.totalorder %s202, %s203
    %p215 = scmp.eq.s32.totalorder %s23, 1
    %p216 = por %p214, %p215
    %p218 = scmp.ne.s32.totalorder %s203, %s217
    %p219 = scmp.eq.s32.totalorder %s23, 0
    %p220 = por %p218, %p219
    %s222 = sadd.s32 %s221, 1
    %p225 = scmp.eq.s32.totalorder %s17, 1
    %p226 = scmp.ne.s32.totalorder %s221, %s223
    %p227 = scmp.eq.s32.totalorder %s17, 0
    %p228 = por %p226, %p227
    %p229 = scmp.ne.s32.totalorder %s221, %s223
    %p230 = scmp.eq.s32.totalorder %s22, 1
    %p231 = por %p229, %p230
    %p232 = scmp.ne.s32.totalorder %s223, %s224
    %p233 = scmp.eq.s32.totalorder %s22, 0
    %p234 = por %p232, %p233
    %p235 = scmp.ne.s32.totalorder %s223, %s224
    %p236 = scmp.eq.s32.totalorder %s23, 1
    %p237 = por %p235, %p236
    %p239 = scmp.ne.s32.totalorder %s224, %s238
    %p240 = scmp.eq.s32.totalorder %s23, 0
    %p241 = por %p239, %p240
    %s243 = sadd.s32 %s242, 1
    %p246 = scmp.eq.s32.totalorder %s17, 1
    %p247 = scmp.ne.s32.totalorder %s242, %s244
    %p248 = scmp.eq.s32.totalorder %s17, 0
    %p249 = por %p247, %p248
    %p250 = scmp.ne.s32.totalorder %s242, %s244
    %p251 = scmp.eq.s32.totalorder %s22, 1
    %p252 = por %p250, %p251
    %p253 = scmp.ne.s32.totalorder %s244, %s245
    %p254 = scmp.eq.s32.totalorder %s22, 0
    %p255 = por %p253, %p254
    %p256 = scmp.ne.s32.totalorder %s244, %s245
    %p257 = scmp.eq.s32.totalorder %s23, 1
    %p258 = por %p256, %p257
    %p260 = scmp.ne.s32.totalorder %s245, %s259
    %p261 = scmp.eq.s32.totalorder %s23, 0
    %p262 = por %p260, %p261
    %s264 = sadd.s32 %s263, 1
    %p267 = scmp.eq.s32.totalorder %s17, 1
    %p268 = scmp.ne.s32.totalorder %s263, %s265
    %p269 = scmp.eq.s32.totalorder %s17, 0
    %p270 = por %p268, %p269
    %p271 = scmp.ne.s32.totalorder %s263, %s265
    %p272 = scmp.eq.s32.totalorder %s22, 1
    %p273 = por %p271, %p272
    %p274 = scmp.ne.s32.totalorder %s265, %s266
    %p275 = scmp.eq.s32.totalorder %s22, 0
    %p276 = por %p274, %p275
    %p277 = scmp.ne.s32.totalorder %s265, %s266
    %p278 = scmp.eq.s32.totalorder %s23, 1
    %p279 = por %p277, %p278
    %p281 = scmp.ne.s32.totalorder %s266, %s280
    %p282 = scmp.eq.s32.totalorder %s23, 0
    %p283 = por %p281, %p282
    %s285 = sadd.s32 %s284, 1
    %p288 = scmp.eq.s32.totalorder %s17, 1
    %p289 = scmp.ne.s32.totalorder %s284, %s286
    %p290 = scmp.eq.s32.totalorder %s17, 0
    %p291 = por %p289, %p290
    %p292 = scmp.ne.s32.totalorder %s284, %s286
    %p293 = scmp.eq.s32.totalorder %s22, 1
    %p294 = por %p292, %p293
    %p295 = scmp.ne.s32.totalorder %s286, %s287
    %p296 = scmp.eq.s32.totalorder %s22, 0
    %p297 = por %p295, %p296
    %p298 = scmp.ne.s32.totalorder %s286, %s287
    %p299 = scmp.eq.s32.totalorder %s23, 1
    %p300 = por %p298, %p299
    %p302 = scmp.ne.s32.totalorder %s287, %s301
    %p303 = scmp.eq.s32.totalorder %s23, 0
    %p304 = por %p302, %p303
    %s305 = ssub.s32 %s24, %s36
    %s306 = ssub.s32 %s25, %s32
    %s307 = sor.u32 %s305, %s306
    %p308 = scmp.eq.s32.totalorder %s307, 0
    %s310 = sadd.s32 %s309, 1
    %s311 = scalar_select %p308, %s309, %s310
    %p314 = pneg %p308
    %p315 = scmp.eq.s32.totalorder %s17, 1
    %p316 = por %p314, %p315
    %p317 = scmp.ne.s32.totalorder %s309, %s312
    %p318 = scmp.eq.s32.totalorder %s17, 0
    %p319 = por %p317, %p318
    %p320 = scmp.ne.s32.totalorder %s309, %s312
    %p321 = scmp.eq.s32.totalorder %s22, 1
    %p322 = por %p320, %p321
    %p323 = scmp.ne.s32.totalorder %s312, %s313
    %p324 = scmp.eq.s32.totalorder %s22, 0
    %p325 = por %p323, %p324
    %p326 = scmp.ne.s32.totalorder %s312, %s313
    %p327 = scmp.eq.s32.totalorder %s23, 1
    %p328 = por %p326, %p327
    %p330 = scmp.ne.s32.totalorder %s313, %s329
    %p331 = scmp.eq.s32.totalorder %s23, 0
    %p332 = por %p330, %p331
    %p333 = scmp.le.s32.totalorder 1, %s17
    %p334 = scmp.lt.s32.totalorder %s17, 3
    %p335 = pnand %p333, %p334
    %p336 = pneg %p335
    // Predicated region
    $region9: #{_lambda_.1} parent=5 // pred_check
      _
    $region10: #{_lambda_.1} parent=5 // pred_check_branch
      %338 = sbr.rel (%p335) target = $region12
    $region11: #{_lambda_.1} parent=5 // pred_region
      %s339 = ssub.s32 %s17, 1
      // Predicated region
      $region13: #{_lambda_.1} parent=11 // pred_check
        %p340 = pneg %p150
      $region14: #{_lambda_.1} parent=11 // pred_check_branch
        %342 = sbr.rel (%p340) target = $region16
      $region15: #{_lambda_.1} parent=11 // pred_region
        _
      $region16: #{_lambda_.1} parent=11 // pred_fallthru
        _
      // Predicated region
      $region17: #{_lambda_.1} parent=11 // pred_check
        %p343 = pneg %p171
      $region18: #{_lambda_.1} parent=11 // pred_check_branch
        %345 = sbr.rel (%p343) target = $region20
      $region19: #{_lambda_.1} parent=11 // pred_region
        _
      $region20: #{_lambda_.1} parent=11 // pred_fallthru
        _
      // Predicated region
      $region21: #{_lambda_.1} parent=11 // pred_check
        %p346 = pneg %p192
      $region22: #{_lambda_.1} parent=11 // pred_check_branch
        %348 = sbr.rel (%p346) target = $region24
      $region23: #{_lambda_.1} parent=11 // pred_region
        _
      $region24: #{_lambda_.1} parent=11 // pred_fallthru
        _
      // Predicated region
      $region25: #{_lambda_.1} parent=11 // pred_check
        %p349 = pneg %p213
      $region26: #{_lambda_.1} parent=11 // pred_check_branch
        %351 = sbr.rel (%p349) target = $region28
      $region27: #{_lambda_.1} parent=11 // pred_region
        _
      $region28: #{_lambda_.1} parent=11 // pred_fallthru
        _
      // Predicated region
      $region29: #{_lambda_.1} parent=11 // pred_check
        %p352 = pneg %p234
      $region30: #{_lambda_.1} parent=11 // pred_check_branch
        %354 = sbr.rel (%p352) target = $region32
      $region31: #{_lambda_.1} parent=11 // pred_region
        _
      $region32: #{_lambda_.1} parent=11 // pred_fallthru
        _
      // Predicated region
      $region33: #{_lambda_.1} parent=11 // pred_check
        %p355 = pneg %p255
      $region34: #{_lambda_.1} parent=11 // pred_check_branch
        %357 = sbr.rel (%p355) target = $region36
      $region35: #{_lambda_.1} parent=11 // pred_region
        _
      $region36: #{_lambda_.1} parent=11 // pred_fallthru
        _
      // Predicated region
      $region37: #{_lambda_.1} parent=11 // pred_check
        %p358 = pneg %p276
      $region38: #{_lambda_.1} parent=11 // pred_check_branch
        %360 = sbr.rel (%p358) target = $region40
      $region39: #{_lambda_.1} parent=11 // pred_region
        _
      $region40: #{_lambda_.1} parent=11 // pred_fallthru
        _
      // Predicated region
      $region41: #{_lambda_.1} parent=11 // pred_check
        %p361 = pneg %p297
      $region42: #{_lambda_.1} parent=11 // pred_check_branch
        %363 = sbr.rel (%p361) target = $region44
      $region43: #{_lambda_.1} parent=11 // pred_region
        _
      $region44: #{_lambda_.1} parent=11 // pred_fallthru
        _
    $region12: #{_lambda_.1} parent=5 // pred_fallthru
      _
    %p364 = scmp.lt.s32.totalorder %s17, 2
    // Predicated region
    $region45: #{_lambda_.1} parent=5 // pred_check
      %p365 = pneg %p364
    $region46: #{_lambda_.1} parent=5 // pred_check_branch
      %367 = sbr.rel (%p365) target = $region48
    $region47: #{_lambda_.1} parent=5 // pred_region
      // Predicated region
      $region49: #{_lambda_.1} parent=47 // pred_check
        %p368 = pneg %p51
      $region50: #{_lambda_.1} parent=47 // pred_check_branch
        %370 = sbr.rel (%p368) target = $region52
      $region51: #{_lambda_.1} parent=47 // pred_region
        %s371 = smul.u32 16, %s25
        %p372 = scmp.lt.s32.totalorder %s24, 1
        %s373 = scalar_select %p372, %s24, 1
        %p374 = scmp.lt.s32.totalorder %s371, 15
        %s375 = scalar_select %p374, %s371, 15
        %s376 = smul.addr %s375, 2
        %s377 = smul.addr %s373, 32
        %s378 = sadd.s32 %s376, %s377
        %s379 = smul.addr %s378, 4
        %s380 = scalar_lea.vmem %s0, %s379
        %s381 = smul.u32 16, %s25
      $region52: #{_lambda_.1} parent=47 // pred_fallthru
        _
      // Predicated region
      $region53: #{_lambda_.1} parent=47 // pred_check
        %p382 = pneg %p87
      $region54: #{_lambda_.1} parent=47 // pred_check_branch
        %384 = sbr.rel (%p382) target = $region56
      $region55: #{_lambda_.1} parent=47 // pred_region
        %s385 = smul.u32 %s25, 16
        %s386 = ssub.s32 %s385, 1
        %p387 = scmp.gt.s32.totalorder %s386, 0
        %s388 = scalar_select %p387, %s386, 0
        %p389 = scmp.lt.s32.totalorder %s24, 1
        %s390 = scalar_select %p389, %s24, 1
        %p391 = scmp.lt.s32.totalorder %s388, 15
        %s392 = scalar_select %p391, %s388, 15
        %s393 = smul.addr %s392, 2
        %s394 = smul.addr %s390, 32
        %s395 = sadd.s32 %s393, %s394
        %s396 = smul.addr %s395, 4
        %s397 = scalar_lea.vmem %s1, %s396
        %s398 = smul.u32 %s25, 16
        %s399 = ssub.s32 %s398, 1
        %p400 = scmp.gt.s32.totalorder %s399, 0
        %s401 = scalar_select %p400, %s399, 0
      $region56: #{_lambda_.1} parent=47 // pred_fallthru
        _
      // Predicated region
      $region57: #{_lambda_.1} parent=47 // pred_check
        %p402 = pneg %p123
      $region58: #{_lambda_.1} parent=47 // pred_check_branch
        %404 = sbr.rel (%p402) target = $region60
      $region59: #{_lambda_.1} parent=47 // pred_region
        %s405 = smul.u32 %s25, 16
        %s406 = sadd.s32 %s405, 16
        %p407 = scmp.lt.s32.totalorder %s406, 15
        %s408 = scalar_select %p407, %s406, 15
        %p409 = scmp.lt.s32.totalorder %s24, 1
        %s410 = scalar_select %p409, %s24, 1
        %p411 = scmp.lt.s32.totalorder %s408, 15
        %s412 = scalar_select %p411, %s408, 15
        %s413 = smul.addr %s412, 2
        %s414 = smul.addr %s410, 32
        %s415 = sadd.s32 %s413, %s414
        %s416 = smul.addr %s415, 4
        %s417 = scalar_lea.vmem %s2, %s416
        %s418 = smul.u32 %s25, 16
        %s419 = sadd.s32 %s418, 16
        %p420 = scmp.lt.s32.totalorder %s419, 15
        %s421 = scalar_select %p420, %s419, 15
      $region60: #{_lambda_.1} parent=47 // pred_fallthru
        _
    $region48: #{_lambda_.1} parent=5 // pred_fallthru
      _
    %p422 = scmp.le.s32.totalorder 1, %s17
    %p423 = scmp.lt.s32.totalorder %s17, 3
    %p424 = pnand %p422, %p423
    %p425 = pneg %p424
    // Predicated region
    $region61: #{_lambda_.1} parent=5 // pred_check
      _
    $region62: #{_lambda_.1} parent=5 // pred_check_branch
      %427 = sbr.rel (%p424) target = $region64
    $region63: #{_lambda_.1} parent=5 // pred_region
      %s428 = ssub.s32 %s17, 1
      %s429 = smul.u32 16, %s27
      %p430 = scmp.lt.s32.totalorder %s26, 1
      %s431 = scalar_select %p430, %s26, 1
      %p432 = scmp.lt.s32.totalorder %s429, 15
      %s433 = scalar_select %p432, %s429, 15
      %s434 = smul.addr %s433, 2
      %s435 = smul.addr %s431, 32
      %s436 = sadd.s32 %s434, %s435
      %s437 = smul.addr %s436, 4
      %s438 = scalar_lea.vmem %s0, %s437
      %p439 = pneg %p57
      %p440 = pneg %p54
      %s441 = smul.u32 %s27, 16
      %s442 = ssub.s32 %s441, 1
      %p443 = scmp.gt.s32.totalorder %s442, 0
      %s444 = scalar_select %p443, %s442, 0
      %p445 = scmp.lt.s32.totalorder %s26, 1
      %s446 = scalar_select %p445, %s26, 1
      %p447 = scmp.lt.s32.totalorder %s444, 15
      %s448 = scalar_select %p447, %s444, 15
      %s449 = smul.addr %s448, 2
      %s450 = smul.addr %s446, 32
      %s451 = sadd.s32 %s449, %s450
      %s452 = smul.addr %s451, 4
      %s453 = scalar_lea.vmem %s1, %s452
      %p454 = pneg %p93
      %p455 = pneg %p90
      %s456 = smul.u32 %s27, 16
      %s457 = sadd.s32 %s456, 16
      %p458 = scmp.lt.s32.totalorder %s457, 15
      %s459 = scalar_select %p458, %s457, 15
      %p460 = scmp.lt.s32.totalorder %s26, 1
      %s461 = scalar_select %p460, %s26, 1
      %p462 = scmp.lt.s32.totalorder %s459, 15
      %s463 = scalar_select %p462, %s459, 15
      %s464 = smul.addr %s463, 2
      %s465 = smul.addr %s461, 32
      %s466 = sadd.s32 %s464, %s465
      %s467 = smul.addr %s466, 4
      %s468 = scalar_lea.vmem %s2, %s467
      %p469 = pneg %p129
      %p470 = pneg %p126
      %p471 = pneg %p150
      %p472 = pneg %p147
      %p473 = pneg %p171
      %p474 = pneg %p168
      %p475 = pneg %p192
      %p476 = pneg %p189
      %p477 = pneg %p213
      %p478 = pneg %p210
      %p479 = pneg %p234
      %p480 = pneg %p231
      %p481 = pneg %p255
      %p482 = pneg %p252
      %p483 = pneg %p276
      %p484 = pneg %p273
      %p485 = pneg %p297
      %p486 = pneg %p294
      %p487 = pneg %p325
      %p488 = pneg %p322
      %s489 = smul.u32 16, %s27
      %p490 = scmp.lt.s32.totalorder %s26, 1
      %s491 = scalar_select %p490, %s26, 1
      %p492 = scmp.lt.s32.totalorder %s489, 15
      %s493 = scalar_select %p492, %s489, 15
      %s494 = smul.addr %s493, 2
      %s495 = smul.addr %s491, 32
      %s496 = sadd.s32 %s494, %s495
      %s497 = smul.addr %s496, 8
      %s498 = scalar_lea.vmem %s11, %s497
      %s499 = smul.u32 16, %s27
      %p500 = scmp.lt.s32.totalorder %s26, 1
      %s501 = scalar_select %p500, %s26, 1
      %p502 = scmp.lt.s32.totalorder %s499, 15
      %s503 = scalar_select %p502, %s499, 15
      %s504 = smul.addr %s503, 2
      %s505 = smul.addr %s501, 32
      %s506 = sadd.s32 %s504, %s505
      %s507 = smul.addr %s506, 4
      %s508 = scalar_lea.vmem %s0, %s507
      %s509 = smul.u32 16, %s27
      %s510 = smul.u32 %s27, 16
      %s511 = ssub.s32 %s510, 1
      %p512 = scmp.gt.s32.totalorder %s511, 0
      %s513 = scalar_select %p512, %s511, 0
      %p514 = scmp.lt.s32.totalorder %s26, 1
      %s515 = scalar_select %p514, %s26, 1
      %p516 = scmp.lt.s32.totalorder %s513, 15
      %s517 = scalar_select %p516, %s513, 15
      %s518 = smul.addr %s517, 2
      %s519 = smul.addr %s515, 32
      %s520 = sadd.s32 %s518, %s519
      %s521 = smul.addr %s520, 4
      %s522 = scalar_lea.vmem %s1, %s521
      %s523 = smul.u32 %s27, 16
      %s524 = ssub.s32 %s523, 1
      %p525 = scmp.gt.s32.totalorder %s524, 0
      %s526 = scalar_select %p525, %s524, 0
      %s527 = smul.u32 %s27, 16
      %s528 = sadd.s32 %s527, 16
      %p529 = scmp.lt.s32.totalorder %s528, 15
      %s530 = scalar_select %p529, %s528, 15
      %p531 = scmp.lt.s32.totalorder %s26, 1
      %s532 = scalar_select %p531, %s26, 1
      %p533 = scmp.lt.s32.totalorder %s530, 15
      %s534 = scalar_select %p533, %s530, 15
      %s535 = smul.addr %s534, 2
      %s536 = smul.addr %s532, 32
      %s537 = sadd.s32 %s535, %s536
      %s538 = smul.addr %s537, 4
      %s539 = scalar_lea.vmem %s2, %s538
      %s540 = smul.u32 %s27, 16
      %s541 = sadd.s32 %s540, 16
      %p542 = scmp.lt.s32.totalorder %s541, 15
      %s543 = scalar_select %p542, %s541, 15
      %s544 = smul.u32 16, %s27
      %p545 = scmp.lt.s32.totalorder %s26, 1
      %s546 = scalar_select %p545, %s26, 1
      %p547 = scmp.lt.s32.totalorder %s544, 15
      %s548 = scalar_select %p547, %s544, 15
      %s549 = smul.addr %s548, 2
      %s550 = smul.addr %s546, 32
      %s551 = sadd.s32 %s549, %s550
      %s552 = smul.addr %s551, 8
      %s553 = scalar_lea.vmem %s11, %s552
      %s554 = smul.u32 16, %s27
      %v556 = vld [vmem:[%s3] sm:$0xff]
      %v557 = vld [vmem:[%s3 + $0x8] sm:$0xff]
      %v558 = vld [vmem:[%s3 + $0x10] sm:$0xff]
      %v559 = vld [vmem:[%s3 + $0x18] sm:$0xff]
      %v560 = vld [vmem:[%s3 + $0x20] sm:$0xff]
      %v561 = vld [vmem:[%s3 + $0x28] sm:$0xff]
      %v562 = vld [vmem:[%s3 + $0x30] sm:$0xff]
      %v563 = vld [vmem:[%s3 + $0x38] sm:$0xff]
      %v564 = vld [vmem:[%s3 + $0x40] sm:$0xff]
      %v565 = vld [vmem:[%s3 + $0x48] sm:$0xff]
      %v566 = vld [vmem:[%s3 + $0x50] sm:$0xff]
      %v567 = vld [vmem:[%s3 + $0x58] sm:$0xff]
      %v568 = vld [vmem:[%s3 + $0x60] sm:$0xff]
      %v569 = vld [vmem:[%s3 + $0x68] sm:$0xff]
      %v570 = vld [vmem:[%s3 + $0x70] sm:$0xff]
      %v571 = vld [vmem:[%s3 + $0x78] sm:$0xff]
      %v572 = vld [vmem:[%s4] sm:$0x3]
      %p573 = scmp.gt.s32.totalorder %s27, 0
      %s574 = scalar_select %p573, 1, 0
      %s575 = scvt.s32.f32 %s574
      %p576 = scmp.lt.s32.totalorder %s27, 0
      %s577 = scalar_select %p576, 1, 0
      %s578 = scvt.s32.f32 %s577
      %v579 = vld [vmem:[%s508] sm:$0xf]
      %v580 = vld [vmem:[%s508 + $0x4] sm:$0xf]
      %v581 = vld [vmem:[%s508 + $0x8] sm:$0xf]
      %v582 = vld [vmem:[%s508 + $0xc] sm:$0xf]
      %v583 = vld [vmem:[%s508 + $0x10] sm:$0xf]
      %v584 = vld [vmem:[%s508 + $0x14] sm:$0xf]
      %v585 = vld [vmem:[%s508 + $0x18] sm:$0xf]
      %v586 = vld [vmem:[%s508 + $0x1c] sm:$0xf]
      %v587 = vld [vmem:[%s508 + $0x20] sm:$0xf]
      %v588 = vld [vmem:[%s508 + $0x24] sm:$0xf]
      %v589 = vld [vmem:[%s508 + $0x28] sm:$0xf]
      %v590 = vld [vmem:[%s508 + $0x2c] sm:$0xf]
      %v591 = vld [vmem:[%s508 + $0x30] sm:$0xf]
      %v592 = vld [vmem:[%s508 + $0x34] sm:$0xf]
      %v593 = vld [vmem:[%s508 + $0x38] sm:$0xf]
      %v594 = vld [vmem:[%s508 + $0x3c] sm:$0xf]
      %v595 = vld [vmem:[%s508 + $0x40] sm:$0xf]
      %v596 = vld [vmem:[%s508 + $0x44] sm:$0xf]
      %v597 = vld [vmem:[%s508 + $0x48] sm:$0xf]
      %v598 = vld [vmem:[%s508 + $0x4c] sm:$0xf]
      %v599 = vld [vmem:[%s508 + $0x50] sm:$0xf]
      %v600 = vld [vmem:[%s508 + $0x54] sm:$0xf]
      %v601 = vld [vmem:[%s508 + $0x58] sm:$0xf]
      %v602 = vld [vmem:[%s508 + $0x5c] sm:$0xf]
      %v603 = vld [vmem:[%s508 + $0x60] sm:$0xf]
      %v604 = vld [vmem:[%s508 + $0x64] sm:$0xf]
      %v605 = vld [vmem:[%s508 + $0x68] sm:$0xf]
      %v606 = vld [vmem:[%s508 + $0x6c] sm:$0xf]
      %v607 = vld [vmem:[%s508 + $0x70] sm:$0xf]
      %v608 = vld [vmem:[%s508 + $0x74] sm:$0xf]
      %v609 = vld [vmem:[%s508 + $0x78] sm:$0xf]
      %v610 = vld [vmem:[%s508 + $0x7c] sm:$0xf]
      %v612 = vlaneseq
      %v613 = vshrl.u32 %v612, 7
      %v614 = vsub.s32 0, %v613
      %v615 = vrot.slane %v572, %v614
      %v616 = vlaneseq
      %v617 = vshrl.u32 %v616, 7
      %v618 = vsub.s32 1, %v617
      %v619 = vrot.slane %v572, %v618
      %v654 = vunpack.c.l.b16 %v579
      %v655 = vunpack.c.l.b16 %v580
      %v656 = vunpack.c.l.b16 %v581
      %v657 = vunpack.c.l.b16 %v582
      %v658 = vunpack.c.l.b16 %v583
      %v659 = vunpack.c.l.b16 %v584
      %v660 = vunpack.c.l.b16 %v585
      %v661 = vunpack.c.l.b16 %v586
      %v662 = vunpack.c.l.b16 %v587
      %v663 = vunpack.c.l.b16 %v588
      %v664 = vunpack.c.l.b16 %v589
      %v665 = vunpack.c.l.b16 %v590
      %v666 = vunpack.c.l.b16 %v591
      %v667 = vunpack.c.l.b16 %v592
      %v668 = vunpack.c.l.b16 %v593
      %v669 = vunpack.c.l.b16 %v594
      %v670 = vunpack.c.l.b16 %v595
      %v671 = vunpack.c.l.b16 %v596
      %v672 = vunpack.c.l.b16 %v597
      %v673 = vunpack.c.l.b16 %v598
      %v674 = vunpack.c.l.b16 %v599
      %v675 = vunpack.c.l.b16 %v600
      %v676 = vunpack.c.l.b16 %v601
      %v677 = vunpack.c.l.b16 %v602
      %v678 = vunpack.c.l.b16 %v603
      %v679 = vunpack.c.l.b16 %v604
      %v680 = vunpack.c.l.b16 %v605
      %v681 = vunpack.c.l.b16 %v606
      %v682 = vunpack.c.l.b16 %v607
      %v683 = vunpack.c.l.b16 %v608
      %v684 = vunpack.c.l.b16 %v609
      %v685 = vunpack.c.l.b16 %v610
      %v686 = vpack.c.b16 %v655, %v654
      %v687 = vpack.c.b16 %v657, %v656
      %v688 = vpack.c.b16 %v659, %v658
      %v689 = vpack.c.b16 %v661, %v660
      %v690 = vpack.c.b16 %v663, %v662
      %v691 = vpack.c.b16 %v665, %v664
      %v692 = vpack.c.b16 %v667, %v666
      %v693 = vpack.c.b16 %v669, %v668
      %v694 = vpack.c.b16 %v671, %v670
      %v695 = vpack.c.b16 %v673, %v672
      %v696 = vpack.c.b16 %v675, %v674
      %v697 = vpack.c.b16 %v677, %v676
      %v698 = vpack.c.b16 %v679, %v678
      %v699 = vpack.c.b16 %v681, %v680
      %v700 = vpack.c.b16 %v683, %v682
      %v701 = vpack.c.b16 %v685, %v684
      %v734 = vunpack.c.l.b16 %v556
      %v735 = vunpack.c.h.b16 %v556
      %v736 = vunpack.c.l.b16 %v557
      %v737 = vunpack.c.h.b16 %v557
      %v738 = vunpack.c.l.b16 %v558
      %v739 = vunpack.c.h.b16 %v558
      %v740 = vunpack.c.l.b16 %v559
      %v741 = vunpack.c.h.b16 %v559
      %v742 = vunpack.c.l.b16 %v560
      %v743 = vunpack.c.h.b16 %v560
      %v744 = vunpack.c.l.b16 %v561
      %v745 = vunpack.c.h.b16 %v561
      %v746 = vunpack.c.l.b16 %v562
      %v747 = vunpack.c.h.b16 %v562
      %v748 = vunpack.c.l.b16 %v563
      %v749 = vunpack.c.h.b16 %v563
      %v750 = vunpack.c.l.b16 %v564
      %v751 = vunpack.c.h.b16 %v564
      %v752 = vunpack.c.l.b16 %v565
      %v753 = vunpack.c.h.b16 %v565
      %v754 = vunpack.c.l.b16 %v566
      %v755 = vunpack.c.h.b16 %v566
      %v756 = vunpack.c.l.b16 %v567
      %v757 = vunpack.c.h.b16 %v567
      %v758 = vunpack.c.l.b16 %v568
      %v759 = vunpack.c.h.b16 %v568
      %v760 = vunpack.c.l.b16 %v569
      %v761 = vunpack.c.h.b16 %v569
      %v762 = vunpack.c.l.b16 %v570
      %v763 = vunpack.c.h.b16 %v570
      %v764 = vunpack.c.l.b16 %v571
      %v765 = vunpack.c.h.b16 %v571
      %v766 = vpack.c.b16 %v736, %v734
      %v767 = vpack.c.b16 %v737, %v735
      %v768 = vpack.c.b16 %v740, %v738
      %v769 = vpack.c.b16 %v741, %v739
      %v770 = vpack.c.b16 %v744, %v742
      %v771 = vpack.c.b16 %v745, %v743
      %v772 = vpack.c.b16 %v748, %v746
      %v773 = vpack.c.b16 %v749, %v747
      %v774 = vpack.c.b16 %v752, %v750
      %v775 = vpack.c.b16 %v753, %v751
      %v776 = vpack.c.b16 %v756, %v754
      %v777 = vpack.c.b16 %v757, %v755
      %v778 = vpack.c.b16 %v760, %v758
      %v779 = vpack.c.b16 %v761, %v759
      %v780 = vpack.c.b16 %v764, %v762
      %v781 = vpack.c.b16 %v765, %v763
      %798 = vmatprep.subr.bf16.mxu0 %v781
      %799 = vmatpush1.bf16.msra.mxu0 %v780
      %800 = vmatprep.subr.bf16.mxu0 %v779
      %801 = vmatpush1.bf16.msra.mxu0 %v778
      %802 = vmatprep.subr.bf16.mxu0 %v777
      %803 = vmatpush1.bf16.msra.mxu0 %v776
      %804 = vmatprep.subr.bf16.mxu0 %v775
      %805 = vmatpush1.bf16.msra.mxu0 %v774
      %806 = vmatprep.subr.bf16.mxu0 %v773
      %807 = vmatpush1.bf16.msra.mxu0 %v772
      %808 = vmatprep.subr.bf16.mxu0 %v771
      %809 = vmatpush1.bf16.msra.mxu0 %v770
      %810 = vmatprep.subr.bf16.mxu0 %v769
      %811 = vmatpush1.bf16.msra.mxu0 %v768
      %812 = vmatprep.subr.bf16.mxu0 %v767
      %813 = vmatpush1.bf16.msra.mxu0 %v766
      %814 = vmatprep.subr.bf16.mxu0 0
      %815 = vmatpush2.bf16.msra.mxu0 0
      %816 = vmatprep.subr.bf16.mxu0 0
      %817 = vmatpush2.bf16.msra.mxu0 0
      %818 = vmatprep.subr.bf16.mxu0 0
      %819 = vmatpush2.bf16.msra.mxu0 0
      %820 = vmatprep.subr.bf16.mxu0 0
      %821 = vmatpush2.bf16.msra.mxu0 0
      %822 = vmatprep.subr.bf16.mxu0 0
      %823 = vmatpush2.bf16.msra.mxu0 0
      %824 = vmatprep.subr.bf16.mxu0 0
      %825 = vmatpush2.bf16.msra.mxu0 0
      %826 = vmatprep.subr.bf16.mxu0 0
      %827 = vmatpush2.bf16.msra.mxu0 0
      %828 = vmatprep.subr.bf16.mxu0 0
      %829 = vmatpush2.bf16.msra.mxu0 0
      %830 = vmatprep.mubr.bf16.mxu0 0
      %831 = vmatmul.mubr.bf16.gmra.mxu0 %v686
      %v832 = vpop.f32.mrf.mxu0
      %v833 = vadd.f32 %v615, %v832
      %v834 = vpop.f32.mrf.mxu0
      %v835 = vadd.f32 %v619, %v834
      %v836 = vpop.f32.mrf.mxu0
      %v837 = vadd.f32 %v615, %v836
      %v838 = vpop.f32.mrf.mxu0
      %v839 = vadd.f32 %v619, %v838
      %840 = vmatprep.mubr.bf16.mxu0 0
      %841 = vmatmul.mubr.bf16.gmra.mxu0 %v687
      %v842 = vpop.f32.mrf.mxu0
      %v843 = vadd.f32 %v615, %v842
      %v844 = vpop.f32.mrf.mxu0
      %v845 = vadd.f32 %v619, %v844
      %v846 = vpop.f32.mrf.mxu0
      %v847 = vadd.f32 %v615, %v846
      %v848 = vpop.f32.mrf.mxu0
      %v849 = vadd.f32 %v619, %v848
      %850 = vmatprep.mubr.bf16.mxu0 0
      %851 = vmatmul.mubr.bf16.gmra.mxu0 %v688
      %v852 = vpop.f32.mrf.mxu0
      %v853 = vadd.f32 %v615, %v852
      %v854 = vpop.f32.mrf.mxu0
      %v855 = vadd.f32 %v619, %v854
      %v856 = vpop.f32.mrf.mxu0
      %v857 = vadd.f32 %v615, %v856
      %v858 = vpop.f32.mrf.mxu0
      %v859 = vadd.f32 %v619, %v858
      %860 = vmatprep.mubr.bf16.mxu0 0
      %861 = vmatmul.mubr.bf16.gmra.mxu0 %v689
      %v862 = vpop.f32.mrf.mxu0
      %v863 = vadd.f32 %v615, %v862
      %v864 = vpop.f32.mrf.mxu0
      %v865 = vadd.f32 %v619, %v864
      %v866 = vpop.f32.mrf.mxu0
      %v867 = vadd.f32 %v615, %v866
      %v868 = vpop.f32.mrf.mxu0
      %v869 = vadd.f32 %v619, %v868
      %870 = vmatprep.mubr.bf16.mxu0 0
      %871 = vmatmul.mubr.bf16.gmra.mxu0 %v690
      %v872 = vpop.f32.mrf.mxu0
      %v873 = vadd.f32 %v615, %v872
      %v874 = vpop.f32.mrf.mxu0
      %v875 = vadd.f32 %v619, %v874
      %v876 = vpop.f32.mrf.mxu0
      %v877 = vadd.f32 %v615, %v876
      %v878 = vpop.f32.mrf.mxu0
      %v879 = vadd.f32 %v619, %v878
      %880 = vmatprep.mubr.bf16.mxu0 0
      %881 = vmatmul.mubr.bf16.gmra.mxu0 %v691
      %v882 = vpop.f32.mrf.mxu0
      %v883 = vadd.f32 %v615, %v882
      %v884 = vpop.f32.mrf.mxu0
      %v885 = vadd.f32 %v619, %v884
      %v886 = vpop.f32.mrf.mxu0
      %v887 = vadd.f32 %v615, %v886
      %v888 = vpop.f32.mrf.mxu0
      %v889 = vadd.f32 %v619, %v888
      %890 = vmatprep.mubr.bf16.mxu0 0
      %891 = vmatmul.mubr.bf16.gmra.mxu0 %v692
      %v892 = vpop.f32.mrf.mxu0
      %v893 = vadd.f32 %v615, %v892
      %v894 = vpop.f32.mrf.mxu0
      %v895 = vadd.f32 %v619, %v894
      %v896 = vpop.f32.mrf.mxu0
      %v897 = vadd.f32 %v615, %v896
      %v898 = vpop.f32.mrf.mxu0
      %v899 = vadd.f32 %v619, %v898
      %900 = vmatprep.mubr.bf16.mxu0 0
      %901 = vmatmul.mubr.bf16.gmra.mxu0 %v693
      %v902 = vpop.f32.mrf.mxu0
      %v903 = vadd.f32 %v615, %v902
      %v904 = vpop.f32.mrf.mxu0
      %v905 = vadd.f32 %v619, %v904
      %v906 = vpop.f32.mrf.mxu0
      %v907 = vadd.f32 %v615, %v906
      %v908 = vpop.f32.mrf.mxu0
      %v909 = vadd.f32 %v619, %v908
      %910 = vmatprep.mubr.bf16.mxu0 0
      %911 = vmatmul.mubr.bf16.gmra.mxu0 %v694
      %v912 = vpop.f32.mrf.mxu0
      %v913 = vadd.f32 %v615, %v912
      %v914 = vpop.f32.mrf.mxu0
      %v915 = vadd.f32 %v619, %v914
      %v916 = vpop.f32.mrf.mxu0
      %v917 = vadd.f32 %v615, %v916
      %v918 = vpop.f32.mrf.mxu0
      %v919 = vadd.f32 %v619, %v918
      %920 = vmatprep.mubr.bf16.mxu0 0
      %921 = vmatmul.mubr.bf16.gmra.mxu0 %v695
      %v922 = vpop.f32.mrf.mxu0
      %v923 = vadd.f32 %v615, %v922
      %v924 = vpop.f32.mrf.mxu0
      %v925 = vadd.f32 %v619, %v924
      %v926 = vpop.f32.mrf.mxu0
      %v927 = vadd.f32 %v615, %v926
      %v928 = vpop.f32.mrf.mxu0
      %v929 = vadd.f32 %v619, %v928
      %930 = vmatprep.mubr.bf16.mxu0 0
      %931 = vmatmul.mubr.bf16.gmra.mxu0 %v696
      %v932 = vpop.f32.mrf.mxu0
      %v933 = vadd.f32 %v615, %v932
      %v934 = vpop.f32.mrf.mxu0
      %v935 = vadd.f32 %v619, %v934
      %v936 = vpop.f32.mrf.mxu0
      %v937 = vadd.f32 %v615, %v936
      %v938 = vpop.f32.mrf.mxu0
      %v939 = vadd.f32 %v619, %v938
      %940 = vmatprep.mubr.bf16.mxu0 0
      %941 = vmatmul.mubr.bf16.gmra.mxu0 %v697
      %v942 = vpop.f32.mrf.mxu0
      %v943 = vadd.f32 %v615, %v942
      %v944 = vpop.f32.mrf.mxu0
      %v945 = vadd.f32 %v619, %v944
      %v946 = vpop.f32.mrf.mxu0
      %v947 = vadd.f32 %v615, %v946
      %v948 = vpop.f32.mrf.mxu0
      %v949 = vadd.f32 %v619, %v948
      %950 = vmatprep.mubr.bf16.mxu0 0
      %951 = vmatmul.mubr.bf16.gmra.mxu0 %v698
      %v952 = vpop.f32.mrf.mxu0
      %v953 = vadd.f32 %v615, %v952
      %v954 = vpop.f32.mrf.mxu0
      %v955 = vadd.f32 %v619, %v954
      %v956 = vpop.f32.mrf.mxu0
      %v957 = vadd.f32 %v615, %v956
      %v958 = vpop.f32.mrf.mxu0
      %v959 = vadd.f32 %v619, %v958
      %960 = vmatprep.mubr.bf16.mxu0 0
      %961 = vmatmul.mubr.bf16.gmra.mxu0 %v699
      %v962 = vpop.f32.mrf.mxu0
      %v963 = vadd.f32 %v615, %v962
      %v964 = vpop.f32.mrf.mxu0
      %v965 = vadd.f32 %v619, %v964
      %v966 = vpop.f32.mrf.mxu0
      %v967 = vadd.f32 %v615, %v966
      %v968 = vpop.f32.mrf.mxu0
      %v969 = vadd.f32 %v619, %v968
      %970 = vmatprep.mubr.bf16.mxu0 0
      %971 = vmatmul.mubr.bf16.gmra.mxu0 %v700
      %v972 = vpop.f32.mrf.mxu0
      %v973 = vadd.f32 %v615, %v972
      %v974 = vpop.f32.mrf.mxu0
      %v975 = vadd.f32 %v619, %v974
      %v976 = vpop.f32.mrf.mxu0
      %v977 = vadd.f32 %v615, %v976
      %v978 = vpop.f32.mrf.mxu0
      %v979 = vadd.f32 %v619, %v978
      %980 = vmatprep.mubr.bf16.mxu0 0
      %981 = vmatmul.mubr.bf16.gmra.mxu0 %v701
      %v982 = vpop.f32.mrf.mxu0
      %v983 = vadd.f32 %v615, %v982
      %v984 = vpop.f32.mrf.mxu0
      %v985 = vadd.f32 %v619, %v984
      %v986 = vpop.f32.mrf.mxu0
      %v987 = vadd.f32 %v615, %v986
      %v988 = vpop.f32.mrf.mxu0
      %v989 = vadd.f32 %v619, %v988
      %990 = vdwg.mxu0
      %v991 = vld [vmem:[%s522] sm:$0xf]
      %v992 = vld [vmem:[%s522 + $0x4] sm:$0xf]
      %v995 = vunpack.c.l.b16 %v991
      %v996 = vunpack.c.l.b16 %v992
      %v997 = vpack.c.b16 %v996, %v995
      %999 = vmatprep.subr.bf16.mxu0 %v781
      %1000 = vmatpush1.bf16.msra.mxu0 %v780
      %1001 = vmatprep.subr.bf16.mxu0 %v779
      %1002 = vmatpush1.bf16.msra.mxu0 %v778
      %1003 = vmatprep.subr.bf16.mxu0 %v777
      %1004 = vmatpush1.bf16.msra.mxu0 %v776
      %1005 = vmatprep.subr.bf16.mxu0 %v775
      %1006 = vmatpush1.bf16.msra.mxu0 %v774
      %1007 = vmatprep.subr.bf16.mxu0 %v773
      %1008 = vmatpush1.bf16.msra.mxu0 %v772
      %1009 = vmatprep.subr.bf16.mxu0 %v771
      %1010 = vmatpush1.bf16.msra.mxu0 %v770
      %1011 = vmatprep.subr.bf16.mxu0 %v769
      %1012 = vmatpush1.bf16.msra.mxu0 %v768
      %1013 = vmatprep.subr.bf16.mxu0 %v767
      %1014 = vmatpush1.bf16.msra.mxu0 %v766
      %1015 = vmatprep.subr.bf16.mxu0 0
      %1016 = vmatpush2.bf16.msra.mxu0 0
      %1017 = vmatprep.subr.bf16.mxu0 0
      %1018 = vmatpush2.bf16.msra.mxu0 0
      %1019 = vmatprep.subr.bf16.mxu0 0
      %1020 = vmatpush2.bf16.msra.mxu0 0
      %1021 = vmatprep.subr.bf16.mxu0 0
      %1022 = vmatpush2.bf16.msra.mxu0 0
      %1023 = vmatprep.subr.bf16.mxu0 0
      %1024 = vmatpush2.bf16.msra.mxu0 0
      %1025 = vmatprep.subr.bf16.mxu0 0
      %1026 = vmatpush2.bf16.msra.mxu0 0
      %1027 = vmatprep.subr.bf16.mxu0 0
      %1028 = vmatpush2.bf16.msra.mxu0 0
      %1029 = vmatprep.subr.bf16.mxu0 0
      %1030 = vmatpush2.bf16.msra.mxu0 0
      %1031 = vmatprep.mubr.bf16.mxu0 0
      %1032 = vmatmul.mubr.bf16.gmra.mxu0 %v997
      %v1033 = vpop.f32.mrf.mxu0
      %v1034 = vadd.f32 %v615, %v1033
      %v1035 = vpop.f32.mrf.mxu0
      %v1036 = vadd.f32 %v619, %v1035
      %v1037 = vpop.f32.mrf.mxu0
      %v1038 = vadd.f32 %v615, %v1037
      %v1039 = vpop.f32.mrf.mxu0
      %v1040 = vadd.f32 %v619, %v1039
      %1041 = vdwg.mxu0
      %v1042 = vstv %s575
      %v1043 = vmul.f32 %v1034, %v1042
      %v1044 = vmul.f32 %v1036, %v1042
      %v1045 = vmul.f32 %v1038, %v1042
      %v1046 = vmul.f32 %v1040, %v1042
      %v1047 = vld [vmem:[%s539] sm:$0xf]
      %v1048 = vld [vmem:[%s539 + $0x4] sm:$0xf]
      %v1051 = vunpack.c.l.b16 %v1047
      %v1052 = vunpack.c.l.b16 %v1048
      %v1053 = vpack.c.b16 %v1052, %v1051
      %1055 = vmatprep.subr.bf16.mxu0 %v781
      %1056 = vmatpush1.bf16.msra.mxu0 %v780
      %1057 = vmatprep.subr.bf16.mxu0 %v779
      %1058 = vmatpush1.bf16.msra.mxu0 %v778
      %1059 = vmatprep.subr.bf16.mxu0 %v777
      %1060 = vmatpush1.bf16.msra.mxu0 %v776
      %1061 = vmatprep.subr.bf16.mxu0 %v775
      %1062 = vmatpush1.bf16.msra.mxu0 %v774
      %1063 = vmatprep.subr.bf16.mxu0 %v773
      %1064 = vmatpush1.bf16.msra.mxu0 %v772
      %1065 = vmatprep.subr.bf16.mxu0 %v771
      %1066 = vmatpush1.bf16.msra.mxu0 %v770
      %1067 = vmatprep.subr.bf16.mxu0 %v769
      %1068 = vmatpush1.bf16.msra.mxu0 %v768
      %1069 = vmatprep.subr.bf16.mxu0 %v767
      %1070 = vmatpush1.bf16.msra.mxu0 %v766
      %1071 = vmatprep.subr.bf16.mxu0 0
      %1072 = vmatpush2.bf16.msra.mxu0 0
      %1073 = vmatprep.subr.bf16.mxu0 0
      %1074 = vmatpush2.bf16.msra.mxu0 0
      %1075 = vmatprep.subr.bf16.mxu0 0
      %1076 = vmatpush2.bf16.msra.mxu0 0
      %1077 = vmatprep.subr.bf16.mxu0 0
      %1078 = vmatpush2.bf16.msra.mxu0 0
      %1079 = vmatprep.subr.bf16.mxu0 0
      %1080 = vmatpush2.bf16.msra.mxu0 0
      %1081 = vmatprep.subr.bf16.mxu0 0
      %1082 = vmatpush2.bf16.msra.mxu0 0
      %1083 = vmatprep.subr.bf16.mxu0 0
      %1084 = vmatpush2.bf16.msra.mxu0 0
      %1085 = vmatprep.subr.bf16.mxu0 0
      %1086 = vmatpush2.bf16.msra.mxu0 0
      %1087 = vmatprep.mubr.bf16.mxu0 0
      %1088 = vmatmul.mubr.bf16.gmra.mxu0 %v1053
      %v1089 = vpop.f32.mrf.mxu0
      %v1090 = vadd.f32 %v615, %v1089
      %v1091 = vpop.f32.mrf.mxu0
      %v1092 = vadd.f32 %v619, %v1091
      %v1093 = vpop.f32.mrf.mxu0
      %v1094 = vadd.f32 %v615, %v1093
      %v1095 = vpop.f32.mrf.mxu0
      %v1096 = vadd.f32 %v619, %v1095
      %1097 = vdwg.mxu0
      %v1098 = vstv %s578
      %v1099 = vmul.f32 %v1090, %v1098
      %v1100 = vmul.f32 %v1092, %v1098
      %v1101 = vmul.f32 %v1094, %v1098
      %v1102 = vmul.f32 %v1096, %v1098
      %1103 = vst [vmem:[#allocation2 + $0x7] sm:$0x1] 0.0
      %1104 = vst [vmem:[#allocation2 + $0x27] sm:$0x1] 0.0
      %1105 = vst [vmem:[#allocation2 + $0x47] sm:$0x1] 0.0
      %1106 = vst [vmem:[#allocation2 + $0x67] sm:$0x1] 0.0
      %1107 = vst [vmem:[#allocation2 + $0x87] sm:$0x1] 0.0
      %1108 = vst [vmem:[#allocation2 + $0xa7] sm:$0x1] 0.0
      %1109 = vst [vmem:[#allocation2 + $0xc7] sm:$0x1] 0.0
      %1110 = vst [vmem:[#allocation2 + $0xe7] sm:$0x1] 0.0
      %1111 = vst [vmem:[#allocation2 + $0x107] sm:$0x1] 0.0
      %1112 = vst [vmem:[#allocation2 + $0x127] sm:$0x1] 0.0
      %1113 = vst [vmem:[#allocation2 + $0x147] sm:$0x1] 0.0
      %1114 = vst [vmem:[#allocation2 + $0x167] sm:$0x1] 0.0
      %1115 = vst [vmem:[#allocation2 + $0x187] sm:$0x1] 0.0
      %1116 = vst [vmem:[#allocation2 + $0x1a7] sm:$0x1] 0.0
      %1117 = vst [vmem:[#allocation2 + $0x1c7] sm:$0x1] 0.0
      %1118 = vst [vmem:[#allocation2 + $0x1e7] sm:$0x1] 0.0
      %1119 = vst [vmem:[#allocation2 + $0x207] sm:$0x1] 0.0
      %1120 = vst [vmem:[#allocation2 + $0x227] sm:$0x1] 0.0
      %1121 = vst [vmem:[#allocation2 + $0x18] sm:$0x1] 0.0
      %1122 = vst [vmem:[#allocation2 + $0x38] sm:$0x1] 0.0
      %1123 = vst [vmem:[#allocation2 + $0x58] sm:$0x1] 0.0
      %1124 = vst [vmem:[#allocation2 + $0x78] sm:$0x1] 0.0
      %1125 = vst [vmem:[#allocation2 + $0x98] sm:$0x1] 0.0
      %1126 = vst [vmem:[#allocation2 + $0xb8] sm:$0x1] 0.0
      %1127 = vst [vmem:[#allocation2 + $0xd8] sm:$0x1] 0.0
      %1128 = vst [vmem:[#allocation2 + $0xf8] sm:$0x1] 0.0
      %1129 = vst [vmem:[#allocation2 + $0x118] sm:$0x1] 0.0
      %1130 = vst [vmem:[#allocation2 + $0x138] sm:$0x1] 0.0
      %1131 = vst [vmem:[#allocation2 + $0x158] sm:$0x1] 0.0
      %1132 = vst [vmem:[#allocation2 + $0x178] sm:$0x1] 0.0
      %1133 = vst [vmem:[#allocation2 + $0x198] sm:$0x1] 0.0
      %1134 = vst [vmem:[#allocation2 + $0x1b8] sm:$0x1] 0.0
      %1135 = vst [vmem:[#allocation2 + $0x1d8] sm:$0x1] 0.0
      %1136 = vst [vmem:[#allocation2 + $0x1f8] sm:$0x1] 0.0
      %1137 = vst [vmem:[#allocation2 + $0x218] sm:$0x1] 0.0
      %1138 = vst [vmem:[#allocation2 + $0x238] sm:$0x1] 0.0
      %s1139 = scalar_lea.vmem [#allocation2], 32
      %1140 = vst [vmem:[%s1139 + $0x8] sm:$0xff] %v833
      %1141 = vst [vmem:[%s1139 + $0x10] sm:$0xff] %v837
      %1142 = vst [vmem:[%s1139 + $0x28] sm:$0xff] %v843
      %1143 = vst [vmem:[%s1139 + $0x30] sm:$0xff] %v847
      %1144 = vst [vmem:[%s1139 + $0x48] sm:$0xff] %v853
      %1145 = vst [vmem:[%s1139 + $0x50] sm:$0xff] %v857
      %1146 = vst [vmem:[%s1139 + $0x68] sm:$0xff] %v863
      %1147 = vst [vmem:[%s1139 + $0x70] sm:$0xff] %v867
      %1148 = vst [vmem:[%s1139 + $0x88] sm:$0xff] %v873
      %1149 = vst [vmem:[%s1139 + $0x90] sm:$0xff] %v877
      %1150 = vst [vmem:[%s1139 + $0xa8] sm:$0xff] %v883
      %1151 = vst [vmem:[%s1139 + $0xb0] sm:$0xff] %v887
      %1152 = vst [vmem:[%s1139 + $0xc8] sm:$0xff] %v893
      %1153 = vst [vmem:[%s1139 + $0xd0] sm:$0xff] %v897
      %1154 = vst [vmem:[%s1139 + $0xe8] sm:$0xff] %v903
      %1155 = vst [vmem:[%s1139 + $0xf0] sm:$0xff] %v907
      %1156 = vst [vmem:[%s1139 + $0x108] sm:$0xff] %v913
      %1157 = vst [vmem:[%s1139 + $0x110] sm:$0xff] %v917
      %1158 = vst [vmem:[%s1139 + $0x128] sm:$0xff] %v923
      %1159 = vst [vmem:[%s1139 + $0x130] sm:$0xff] %v927
      %1160 = vst [vmem:[%s1139 + $0x148] sm:$0xff] %v933
      %1161 = vst [vmem:[%s1139 + $0x150] sm:$0xff] %v937
      %1162 = vst [vmem:[%s1139 + $0x168] sm:$0xff] %v943
      %1163 = vst [vmem:[%s1139 + $0x170] sm:$0xff] %v947
      %1164 = vst [vmem:[%s1139 + $0x188] sm:$0xff] %v953
      %1165 = vst [vmem:[%s1139 + $0x190] sm:$0xff] %v957
      %1166 = vst [vmem:[%s1139 + $0x1a8] sm:$0xff] %v963
      %1167 = vst [vmem:[%s1139 + $0x1b0] sm:$0xff] %v967
      %1168 = vst [vmem:[%s1139 + $0x1c8] sm:$0xff] %v973
      %1169 = vst [vmem:[%s1139 + $0x1d0] sm:$0xff] %v977
      %1170 = vst [vmem:[%s1139 + $0x1e8] sm:$0xff] %v983
      %1171 = vst [vmem:[%s1139 + $0x1f0] sm:$0xff] %v987
      %1172 = vst [vmem:[#allocation2 + $0x8] sm:$0xff] %v1043
      %1173 = vst [vmem:[#allocation2 + $0x10] sm:$0xff] %v1045
      %s1174 = scalar_lea.vmem [#allocation2], 544
      %1175 = vst [vmem:[%s1174 + $0x8] sm:$0xff] %v1099
      %1176 = vst [vmem:[%s1174 + $0x10] sm:$0xff] %v1101
      %1177 = vst [vmem:[#allocation3 + $0x7] sm:$0x1] 0.0
      %1178 = vst [vmem:[#allocation3 + $0x27] sm:$0x1] 0.0
      %1179 = vst [vmem:[#allocation3 + $0x47] sm:$0x1] 0.0
      %1180 = vst [vmem:[#allocation3 + $0x67] sm:$0x1] 0.0
      %1181 = vst [vmem:[#allocation3 + $0x87] sm:$0x1] 0.0
      %1182 = vst [vmem:[#allocation3 + $0xa7] sm:$0x1] 0.0
      %1183 = vst [vmem:[#allocation3 + $0xc7] sm:$0x1] 0.0
      %1184 = vst [vmem:[#allocation3 + $0xe7] sm:$0x1] 0.0
      %1185 = vst [vmem:[#allocation3 + $0x107] sm:$0x1] 0.0
      %1186 = vst [vmem:[#allocation3 + $0x127] sm:$0x1] 0.0
      %1187 = vst [vmem:[#allocation3 + $0x147] sm:$0x1] 0.0
      %1188 = vst [vmem:[#allocation3 + $0x167] sm:$0x1] 0.0
      %1189 = vst [vmem:[#allocation3 + $0x187] sm:$0x1] 0.0
      %1190 = vst [vmem:[#allocation3 + $0x1a7] sm:$0x1] 0.0
      %1191 = vst [vmem:[#allocation3 + $0x1c7] sm:$0x1] 0.0
      %1192 = vst [vmem:[#allocation3 + $0x1e7] sm:$0x1] 0.0
      %1193 = vst [vmem:[#allocation3 + $0x207] sm:$0x1] 0.0
      %1194 = vst [vmem:[#allocation3 + $0x227] sm:$0x1] 0.0
      %1195 = vst [vmem:[#allocation3 + $0x18] sm:$0x1] 0.0
      %1196 = vst [vmem:[#allocation3 + $0x38] sm:$0x1] 0.0
      %1197 = vst [vmem:[#allocation3 + $0x58] sm:$0x1] 0.0
      %1198 = vst [vmem:[#allocation3 + $0x78] sm:$0x1] 0.0
      %1199 = vst [vmem:[#allocation3 + $0x98] sm:$0x1] 0.0
      %1200 = vst [vmem:[#allocation3 + $0xb8] sm:$0x1] 0.0
      %1201 = vst [vmem:[#allocation3 + $0xd8] sm:$0x1] 0.0
      %1202 = vst [vmem:[#allocation3 + $0xf8] sm:$0x1] 0.0
      %1203 = vst [vmem:[#allocation3 + $0x118] sm:$0x1] 0.0
      %1204 = vst [vmem:[#allocation3 + $0x138] sm:$0x1] 0.0
      %1205 = vst [vmem:[#allocation3 + $0x158] sm:$0x1] 0.0
      %1206 = vst [vmem:[#allocation3 + $0x178] sm:$0x1] 0.0
      %1207 = vst [vmem:[#allocation3 + $0x198] sm:$0x1] 0.0
      %1208 = vst [vmem:[#allocation3 + $0x1b8] sm:$0x1] 0.0
      %1209 = vst [vmem:[#allocation3 + $0x1d8] sm:$0x1] 0.0
      %1210 = vst [vmem:[#allocation3 + $0x1f8] sm:$0x1] 0.0
      %1211 = vst [vmem:[#allocation3 + $0x218] sm:$0x1] 0.0
      %1212 = vst [vmem:[#allocation3 + $0x238] sm:$0x1] 0.0
      %s1213 = scalar_lea.vmem [#allocation3], 32
      %1214 = vst [vmem:[%s1213 + $0x8] sm:$0xff] %v835
      %1215 = vst [vmem:[%s1213 + $0x10] sm:$0xff] %v839
      %1216 = vst [vmem:[%s1213 + $0x28] sm:$0xff] %v845
      %1217 = vst [vmem:[%s1213 + $0x30] sm:$0xff] %v849
      %1218 = vst [vmem:[%s1213 + $0x48] sm:$0xff] %v855
      %1219 = vst [vmem:[%s1213 + $0x50] sm:$0xff] %v859
      %1220 = vst [vmem:[%s1213 + $0x68] sm:$0xff] %v865
      %1221 = vst [vmem:[%s1213 + $0x70] sm:$0xff] %v869
      %1222 = vst [vmem:[%s1213 + $0x88] sm:$0xff] %v875
      %1223 = vst [vmem:[%s1213 + $0x90] sm:$0xff] %v879
      %1224 = vst [vmem:[%s1213 + $0xa8] sm:$0xff] %v885
      %1225 = vst [vmem:[%s1213 + $0xb0] sm:$0xff] %v889
      %1226 = vst [vmem:[%s1213 + $0xc8] sm:$0xff] %v895
      %1227 = vst [vmem:[%s1213 + $0xd0] sm:$0xff] %v899
      %1228 = vst [vmem:[%s1213 + $0xe8] sm:$0xff] %v905
      %1229 = vst [vmem:[%s1213 + $0xf0] sm:$0xff] %v909
      %1230 = vst [vmem:[%s1213 + $0x108] sm:$0xff] %v915
      %1231 = vst [vmem:[%s1213 + $0x110] sm:$0xff] %v919
      %1232 = vst [vmem:[%s1213 + $0x128] sm:$0xff] %v925
      %1233 = vst [vmem:[%s1213 + $0x130] sm:$0xff] %v929
      %1234 = vst [vmem:[%s1213 + $0x148] sm:$0xff] %v935
      %1235 = vst [vmem:[%s1213 + $0x150] sm:$0xff] %v939
      %1236 = vst [vmem:[%s1213 + $0x168] sm:$0xff] %v945
      %1237 = vst [vmem:[%s1213 + $0x170] sm:$0xff] %v949
      %1238 = vst [vmem:[%s1213 + $0x188] sm:$0xff] %v955
      %1239 = vst [vmem:[%s1213 + $0x190] sm:$0xff] %v959
      %1240 = vst [vmem:[%s1213 + $0x1a8] sm:$0xff] %v965
      %1241 = vst [vmem:[%s1213 + $0x1b0] sm:$0xff] %v969
      %1242 = vst [vmem:[%s1213 + $0x1c8] sm:$0xff] %v975
      %1243 = vst [vmem:[%s1213 + $0x1d0] sm:$0xff] %v979
      %1244 = vst [vmem:[%s1213 + $0x1e8] sm:$0xff] %v985
      %1245 = vst [vmem:[%s1213 + $0x1f0] sm:$0xff] %v989
      %1246 = vst [vmem:[#allocation3 + $0x8] sm:$0xff] %v1044
      %1247 = vst [vmem:[#allocation3 + $0x10] sm:$0xff] %v1046
      %s1248 = scalar_lea.vmem [#allocation3], 544
      %1249 = vst [vmem:[%s1248 + $0x8] sm:$0xff] %v1100
      %1250 = vst [vmem:[%s1248 + $0x10] sm:$0xff] %v1102
      %v1251 = vld [vmem:[%s5] sm:$0x7]
      %v1252 = vld [vmem:[%s5 + $0x4] sm:$0x7]
      %v1253 = vld [vmem:[%s5 + $0x8] sm:$0x7]
      %v1254 = vld [vmem:[%s7] sm:$0x1]
      %v1255 = vld [vmem:[#allocation2 + $0x7] sm:$0xff]
      %v1256 = vld [vmem:[#allocation2 + $0xf] sm:$0xff]
      %v1257 = vld [vmem:[#allocation2 + $0x27] sm:$0xff]
      %v1258 = vld [vmem:[#allocation2 + $0x2f] sm:$0xff]
      %v1259 = vld [vmem:[#allocation2 + $0x47] sm:$0xff]
      %v1260 = vld [vmem:[#allocation2 + $0x4f] sm:$0xff]
      %v1261 = vld [vmem:[#allocation2 + $0x67] sm:$0xff]
      %v1262 = vld [vmem:[#allocation2 + $0x6f] sm:$0xff]
      %v1263 = vld [vmem:[#allocation2 + $0x87] sm:$0xff]
      %v1264 = vld [vmem:[#allocation2 + $0x8f] sm:$0xff]
      %v1265 = vld [vmem:[#allocation2 + $0xa7] sm:$0xff]
      %v1266 = vld [vmem:[#allocation2 + $0xaf] sm:$0xff]
      %v1267 = vld [vmem:[#allocation2 + $0xc7] sm:$0xff]
      %v1268 = vld [vmem:[#allocation2 + $0xcf] sm:$0xff]
      %v1269 = vld [vmem:[#allocation2 + $0xe7] sm:$0xff]
      %v1270 = vld [vmem:[#allocation2 + $0xef] sm:$0xff]
      %v1271 = vld [vmem:[#allocation2 + $0x107] sm:$0xff]
      %v1272 = vld [vmem:[#allocation2 + $0x10f] sm:$0xff]
      %v1273 = vld [vmem:[#allocation2 + $0x127] sm:$0xff]
      %v1274 = vld [vmem:[#allocation2 + $0x12f] sm:$0xff]
      %v1275 = vld [vmem:[#allocation2 + $0x147] sm:$0xff]
      %v1276 = vld [vmem:[#allocation2 + $0x14f] sm:$0xff]
      %v1277 = vld [vmem:[#allocation2 + $0x167] sm:$0xff]
      %v1278 = vld [vmem:[#allocation2 + $0x16f] sm:$0xff]
      %v1279 = vld [vmem:[#allocation2 + $0x187] sm:$0xff]
      %v1280 = vld [vmem:[#allocation2 + $0x18f] sm:$0xff]
      %v1281 = vld [vmem:[#allocation2 + $0x1a7] sm:$0xff]
      %v1282 = vld [vmem:[#allocation2 + $0x1af] sm:$0xff]
      %v1283 = vld [vmem:[#allocation2 + $0x1c7] sm:$0xff]
      %v1284 = vld [vmem:[#allocation2 + $0x1cf] sm:$0xff]
      %v1285 = vld [vmem:[#allocation2 + $0x1e7] sm:$0xff]
      %v1286 = vld [vmem:[#allocation2 + $0x1ef] sm:$0xff]
      %v1287 = vlaneseq
      %v1288 = vshrl.u32 %v1287, 7
      %v1289 = vsub.s32 0, %v1288
      %v1290 = vrot.slane %v1251, %v1289
      %v1291 = vmul.f32 %v1255, %v1290
      %v1292 = vmul.f32 %v1256, %v1290
      %v1293 = vmul.f32 %v1257, %v1290
      %v1294 = vmul.f32 %v1258, %v1290
      %v1295 = vmul.f32 %v1259, %v1290
      %v1296 = vmul.f32 %v1260, %v1290
      %v1297 = vmul.f32 %v1261, %v1290
      %v1298 = vmul.f32 %v1262, %v1290
      %v1299 = vmul.f32 %v1263, %v1290
      %v1300 = vmul.f32 %v1264, %v1290
      %v1301 = vmul.f32 %v1265, %v1290
      %v1302 = vmul.f32 %v1266, %v1290
      %v1303 = vmul.f32 %v1267, %v1290
      %v1304 = vmul.f32 %v1268, %v1290
      %v1305 = vmul.f32 %v1269, %v1290
      %v1306 = vmul.f32 %v1270, %v1290
      %v1307 = vmul.f32 %v1271, %v1290
      %v1308 = vmul.f32 %v1272, %v1290
      %v1309 = vmul.f32 %v1273, %v1290
      %v1310 = vmul.f32 %v1274, %v1290
      %v1311 = vmul.f32 %v1275, %v1290
      %v1312 = vmul.f32 %v1276, %v1290
      %v1313 = vmul.f32 %v1277, %v1290
      %v1314 = vmul.f32 %v1278, %v1290
      %v1315 = vmul.f32 %v1279, %v1290
      %v1316 = vmul.f32 %v1280, %v1290
      %v1317 = vmul.f32 %v1281, %v1290
      %v1318 = vmul.f32 %v1282, %v1290
      %v1319 = vmul.f32 %v1283, %v1290
      %v1320 = vmul.f32 %v1284, %v1290
      %v1321 = vmul.f32 %v1285, %v1290
      %v1322 = vmul.f32 %v1286, %v1290
      %v1324 = vlaneseq
      %v1325 = vshrl.u32 %v1324, 7
      %v1326 = vsub.s32 0, %v1325
      %v1327 = vrot.slane %v1254, %v1326
      %v1329 = vadd.f32 %v1291, %v1327
      %v1330 = vadd.f32 %v1292, %v1327
      %v1331 = vadd.f32 %v1293, %v1327
      %v1332 = vadd.f32 %v1294, %v1327
      %v1333 = vadd.f32 %v1295, %v1327
      %v1334 = vadd.f32 %v1296, %v1327
      %v1335 = vadd.f32 %v1297, %v1327
      %v1336 = vadd.f32 %v1298, %v1327
      %v1337 = vadd.f32 %v1299, %v1327
      %v1338 = vadd.f32 %v1300, %v1327
      %v1339 = vadd.f32 %v1301, %v1327
      %v1340 = vadd.f32 %v1302, %v1327
      %v1341 = vadd.f32 %v1303, %v1327
      %v1342 = vadd.f32 %v1304, %v1327
      %v1343 = vadd.f32 %v1305, %v1327
      %v1344 = vadd.f32 %v1306, %v1327
      %v1345 = vadd.f32 %v1307, %v1327
      %v1346 = vadd.f32 %v1308, %v1327
      %v1347 = vadd.f32 %v1309, %v1327
      %v1348 = vadd.f32 %v1310, %v1327
      %v1349 = vadd.f32 %v1311, %v1327
      %v1350 = vadd.f32 %v1312, %v1327
      %v1351 = vadd.f32 %v1313, %v1327
      %v1352 = vadd.f32 %v1314, %v1327
      %v1353 = vadd.f32 %v1315, %v1327
      %v1354 = vadd.f32 %v1316, %v1327
      %v1355 = vadd.f32 %v1317, %v1327
      %v1356 = vadd.f32 %v1318, %v1327
      %v1357 = vadd.f32 %v1319, %v1327
      %v1358 = vadd.f32 %v1320, %v1327
      %v1359 = vadd.f32 %v1321, %v1327
      %v1360 = vadd.f32 %v1322, %v1327
      %v1361 = vld [vmem:[#allocation2 + $0x8] sm:$0xff]
      %v1362 = vld [vmem:[#allocation2 + $0x10] sm:$0xff]
      %v1363 = vld [vmem:[#allocation2 + $0x28] sm:$0xff]
      %v1364 = vld [vmem:[#allocation2 + $0x30] sm:$0xff]
      %v1365 = vld [vmem:[#allocation2 + $0x48] sm:$0xff]
      %v1366 = vld [vmem:[#allocation2 + $0x50] sm:$0xff]
      %v1367 = vld [vmem:[#allocation2 + $0x68] sm:$0xff]
      %v1368 = vld [vmem:[#allocation2 + $0x70] sm:$0xff]
      %v1369 = vld [vmem:[#allocation2 + $0x88] sm:$0xff]
      %v1370 = vld [vmem:[#allocation2 + $0x90] sm:$0xff]
      %v1371 = vld [vmem:[#allocation2 + $0xa8] sm:$0xff]
      %v1372 = vld [vmem:[#allocation2 + $0xb0] sm:$0xff]
      %v1373 = vld [vmem:[#allocation2 + $0xc8] sm:$0xff]
      %v1374 = vld [vmem:[#allocation2 + $0xd0] sm:$0xff]
      %v1375 = vld [vmem:[#allocation2 + $0xe8] sm:$0xff]
      %v1376 = vld [vmem:[#allocation2 + $0xf0] sm:$0xff]
      %v1377 = vld [vmem:[#allocation2 + $0x108] sm:$0xff]
      %v1378 = vld [vmem:[#allocation2 + $0x110] sm:$0xff]
      %v1379 = vld [vmem:[#allocation2 + $0x128] sm:$0xff]
      %v1380 = vld [vmem:[#allocation2 + $0x130] sm:$0xff]
      %v1381 = vld [vmem:[#allocation2 + $0x148] sm:$0xff]
      %v1382 = vld [vmem:[#allocation2 + $0x150] sm:$0xff]
      %v1383 = vld [vmem:[#allocation2 + $0x168] sm:$0xff]
      %v1384 = vld [vmem:[#allocation2 + $0x170] sm:$0xff]
      %v1385 = vld [vmem:[#allocation2 + $0x188] sm:$0xff]
      %v1386 = vld [vmem:[#allocation2 + $0x190] sm:$0xff]
      %v1387 = vld [vmem:[#allocation2 + $0x1a8] sm:$0xff]
      %v1388 = vld [vmem:[#allocation2 + $0x1b0] sm:$0xff]
      %v1389 = vld [vmem:[#allocation2 + $0x1c8] sm:$0xff]
      %v1390 = vld [vmem:[#allocation2 + $0x1d0] sm:$0xff]
      %v1391 = vld [vmem:[#allocation2 + $0x1e8] sm:$0xff]
      %v1392 = vld [vmem:[#allocation2 + $0x1f0] sm:$0xff]
      %v1393 = vlaneseq
      %v1394 = vshrl.u32 %v1393, 7
      %v1395 = vsub.s32 1, %v1394
      %v1396 = vrot.slane %v1251, %v1395
      %v1397 = vmul.f32 %v1361, %v1396
      %v1398 = vmul.f32 %v1362, %v1396
      %v1399 = vmul.f32 %v1363, %v1396
      %v1400 = vmul.f32 %v1364, %v1396
      %v1401 = vmul.f32 %v1365, %v1396
      %v1402 = vmul.f32 %v1366, %v1396
      %v1403 = vmul.f32 %v1367, %v1396
      %v1404 = vmul.f32 %v1368, %v1396
      %v1405 = vmul.f32 %v1369, %v1396
      %v1406 = vmul.f32 %v1370, %v1396
      %v1407 = vmul.f32 %v1371, %v1396
      %v1408 = vmul.f32 %v1372, %v1396
      %v1409 = vmul.f32 %v1373, %v1396
      %v1410 = vmul.f32 %v1374, %v1396
      %v1411 = vmul.f32 %v1375, %v1396
      %v1412 = vmul.f32 %v1376, %v1396
      %v1413 = vmul.f32 %v1377, %v1396
      %v1414 = vmul.f32 %v1378, %v1396
      %v1415 = vmul.f32 %v1379, %v1396
      %v1416 = vmul.f32 %v1380, %v1396
      %v1417 = vmul.f32 %v1381, %v1396
      %v1418 = vmul.f32 %v1382, %v1396
      %v1419 = vmul.f32 %v1383, %v1396
      %v1420 = vmul.f32 %v1384, %v1396
      %v1421 = vmul.f32 %v1385, %v1396
      %v1422 = vmul.f32 %v1386, %v1396
      %v1423 = vmul.f32 %v1387, %v1396
      %v1424 = vmul.f32 %v1388, %v1396
      %v1425 = vmul.f32 %v1389, %v1396
      %v1426 = vmul.f32 %v1390, %v1396
      %v1427 = vmul.f32 %v1391, %v1396
      %v1428 = vmul.f32 %v1392, %v1396
      %v1429 = vadd.f32 %v1329, %v1397
      %v1430 = vadd.f32 %v1330, %v1398
      %v1431 = vadd.f32 %v1331, %v1399
      %v1432 = vadd.f32 %v1332, %v1400
      %v1433 = vadd.f32 %v1333, %v1401
      %v1434 = vadd.f32 %v1334, %v1402
      %v1435 = vadd.f32 %v1335, %v1403
      %v1436 = vadd.f32 %v1336, %v1404
      %v1437 = vadd.f32 %v1337, %v1405
      %v1438 = vadd.f32 %v1338, %v1406
      %v1439 = vadd.f32 %v1339, %v1407
      %v1440 = vadd.f32 %v1340, %v1408
      %v1441 = vadd.f32 %v1341, %v1409
      %v1442 = vadd.f32 %v1342, %v1410
      %v1443 = vadd.f32 %v1343, %v1411
      %v1444 = vadd.f32 %v1344, %v1412
      %v1445 = vadd.f32 %v1345, %v1413
      %v1446 = vadd.f32 %v1346, %v1414
      %v1447 = vadd.f32 %v1347, %v1415
      %v1448 = vadd.f32 %v1348, %v1416
      %v1449 = vadd.f32 %v1349, %v1417
      %v1450 = vadd.f32 %v1350, %v1418
      %v1451 = vadd.f32 %v1351, %v1419
      %v1452 = vadd.f32 %v1352, %v1420
      %v1453 = vadd.f32 %v1353, %v1421
      %v1454 = vadd.f32 %v1354, %v1422
      %v1455 = vadd.f32 %v1355, %v1423
      %v1456 = vadd.f32 %v1356, %v1424
      %v1457 = vadd.f32 %v1357, %v1425
      %v1458 = vadd.f32 %v1358, %v1426
      %v1459 = vadd.f32 %v1359, %v1427
      %v1460 = vadd.f32 %v1360, %v1428
      %v1461 = vld [vmem:[#allocation2 + $0x9] sm:$0xff]
      %v1462 = vld [vmem:[#allocation2 + $0x11] sm:$0xff]
      %v1463 = vld [vmem:[#allocation2 + $0x29] sm:$0xff]
      %v1464 = vld [vmem:[#allocation2 + $0x31] sm:$0xff]
      %v1465 = vld [vmem:[#allocation2 + $0x49] sm:$0xff]
      %v1466 = vld [vmem:[#allocation2 + $0x51] sm:$0xff]
      %v1467 = vld [vmem:[#allocation2 + $0x69] sm:$0xff]
      %v1468 = vld [vmem:[#allocation2 + $0x71] sm:$0xff]
      %v1469 = vld [vmem:[#allocation2 + $0x89] sm:$0xff]
      %v1470 = vld [vmem:[#allocation2 + $0x91] sm:$0xff]
      %v1471 = vld [vmem:[#allocation2 + $0xa9] sm:$0xff]
      %v1472 = vld [vmem:[#allocation2 + $0xb1] sm:$0xff]
      %v1473 = vld [vmem:[#allocation2 + $0xc9] sm:$0xff]
      %v1474 = vld [vmem:[#allocation2 + $0xd1] sm:$0xff]
      %v1475 = vld [vmem:[#allocation2 + $0xe9] sm:$0xff]
      %v1476 = vld [vmem:[#allocation2 + $0xf1] sm:$0xff]
      %v1477 = vld [vmem:[#allocation2 + $0x109] sm:$0xff]
      %v1478 = vld [vmem:[#allocation2 + $0x111] sm:$0xff]
      %v1479 = vld [vmem:[#allocation2 + $0x129] sm:$0xff]
      %v1480 = vld [vmem:[#allocation2 + $0x131] sm:$0xff]
      %v1481 = vld [vmem:[#allocation2 + $0x149] sm:$0xff]
      %v1482 = vld [vmem:[#allocation2 + $0x151] sm:$0xff]
      %v1483 = vld [vmem:[#allocation2 + $0x169] sm:$0xff]
      %v1484 = vld [vmem:[#allocation2 + $0x171] sm:$0xff]
      %v1485 = vld [vmem:[#allocation2 + $0x189] sm:$0xff]
      %v1486 = vld [vmem:[#allocation2 + $0x191] sm:$0xff]
      %v1487 = vld [vmem:[#allocation2 + $0x1a9] sm:$0xff]
      %v1488 = vld [vmem:[#allocation2 + $0x1b1] sm:$0xff]
      %v1489 = vld [vmem:[#allocation2 + $0x1c9] sm:$0xff]
      %v1490 = vld [vmem:[#allocation2 + $0x1d1] sm:$0xff]
      %v1491 = vld [vmem:[#allocation2 + $0x1e9] sm:$0xff]
      %v1492 = vld [vmem:[#allocation2 + $0x1f1] sm:$0xff]
      %v1493 = vlaneseq
      %v1494 = vshrl.u32 %v1493, 7
      %v1495 = vsub.s32 2, %v1494
      %v1496 = vrot.slane %v1251, %v1495
      %v1497 = vmul.f32 %v1461, %v1496
      %v1498 = vmul.f32 %v1462, %v1496
      %v1499 = vmul.f32 %v1463, %v1496
      %v1500 = vmul.f32 %v1464, %v1496
      %v1501 = vmul.f32 %v1465, %v1496
      %v1502 = vmul.f32 %v1466, %v1496
      %v1503 = vmul.f32 %v1467, %v1496
      %v1504 = vmul.f32 %v1468, %v1496
      %v1505 = vmul.f32 %v1469, %v1496
      %v1506 = vmul.f32 %v1470, %v1496
      %v1507 = vmul.f32 %v1471, %v1496
      %v1508 = vmul.f32 %v1472, %v1496
      %v1509 = vmul.f32 %v1473, %v1496
      %v1510 = vmul.f32 %v1474, %v1496
      %v1511 = vmul.f32 %v1475, %v1496
      %v1512 = vmul.f32 %v1476, %v1496
      %v1513 = vmul.f32 %v1477, %v1496
      %v1514 = vmul.f32 %v1478, %v1496
      %v1515 = vmul.f32 %v1479, %v1496
      %v1516 = vmul.f32 %v1480, %v1496
      %v1517 = vmul.f32 %v1481, %v1496
      %v1518 = vmul.f32 %v1482, %v1496
      %v1519 = vmul.f32 %v1483, %v1496
      %v1520 = vmul.f32 %v1484, %v1496
      %v1521 = vmul.f32 %v1485, %v1496
      %v1522 = vmul.f32 %v1486, %v1496
      %v1523 = vmul.f32 %v1487, %v1496
      %v1524 = vmul.f32 %v1488, %v1496
      %v1525 = vmul.f32 %v1489, %v1496
      %v1526 = vmul.f32 %v1490, %v1496
      %v1527 = vmul.f32 %v1491, %v1496
      %v1528 = vmul.f32 %v1492, %v1496
      %v1529 = vadd.f32 %v1429, %v1497
      %v1530 = vadd.f32 %v1430, %v1498
      %v1531 = vadd.f32 %v1431, %v1499
      %v1532 = vadd.f32 %v1432, %v1500
      %v1533 = vadd.f32 %v1433, %v1501
      %v1534 = vadd.f32 %v1434, %v1502
      %v1535 = vadd.f32 %v1435, %v1503
      %v1536 = vadd.f32 %v1436, %v1504
      %v1537 = vadd.f32 %v1437, %v1505
      %v1538 = vadd.f32 %v1438, %v1506
      %v1539 = vadd.f32 %v1439, %v1507
      %v1540 = vadd.f32 %v1440, %v1508
      %v1541 = vadd.f32 %v1441, %v1509
      %v1542 = vadd.f32 %v1442, %v1510
      %v1543 = vadd.f32 %v1443, %v1511
      %v1544 = vadd.f32 %v1444, %v1512
      %v1545 = vadd.f32 %v1445, %v1513
      %v1546 = vadd.f32 %v1446, %v1514
      %v1547 = vadd.f32 %v1447, %v1515
      %v1548 = vadd.f32 %v1448, %v1516
      %v1549 = vadd.f32 %v1449, %v1517
      %v1550 = vadd.f32 %v1450, %v1518
      %v1551 = vadd.f32 %v1451, %v1519
      %v1552 = vadd.f32 %v1452, %v1520
      %v1553 = vadd.f32 %v1453, %v1521
      %v1554 = vadd.f32 %v1454, %v1522
      %v1555 = vadd.f32 %v1455, %v1523
      %v1556 = vadd.f32 %v1456, %v1524
      %v1557 = vadd.f32 %v1457, %v1525
      %v1558 = vadd.f32 %v1458, %v1526
      %v1559 = vadd.f32 %v1459, %v1527
      %v1560 = vadd.f32 %v1460, %v1528
      %v1561 = vld [vmem:[%s1139 + $0x7] sm:$0xff]
      %v1562 = vld [vmem:[%s1139 + $0xf] sm:$0xff]
      %v1563 = vld [vmem:[%s1139 + $0x27] sm:$0xff]
      %v1564 = vld [vmem:[%s1139 + $0x2f] sm:$0xff]
      %v1565 = vld [vmem:[%s1139 + $0x47] sm:$0xff]
      %v1566 = vld [vmem:[%s1139 + $0x4f] sm:$0xff]
      %v1567 = vld [vmem:[%s1139 + $0x67] sm:$0xff]
      %v1568 = vld [vmem:[%s1139 + $0x6f] sm:$0xff]
      %v1569 = vld [vmem:[%s1139 + $0x87] sm:$0xff]
      %v1570 = vld [vmem:[%s1139 + $0x8f] sm:$0xff]
      %v1571 = vld [vmem:[%s1139 + $0xa7] sm:$0xff]
      %v1572 = vld [vmem:[%s1139 + $0xaf] sm:$0xff]
      %v1573 = vld [vmem:[%s1139 + $0xc7] sm:$0xff]
      %v1574 = vld [vmem:[%s1139 + $0xcf] sm:$0xff]
      %v1575 = vld [vmem:[%s1139 + $0xe7] sm:$0xff]
      %v1576 = vld [vmem:[%s1139 + $0xef] sm:$0xff]
      %v1577 = vld [vmem:[%s1139 + $0x107] sm:$0xff]
      %v1578 = vld [vmem:[%s1139 + $0x10f] sm:$0xff]
      %v1579 = vld [vmem:[%s1139 + $0x127] sm:$0xff]
      %v1580 = vld [vmem:[%s1139 + $0x12f] sm:$0xff]
      %v1581 = vld [vmem:[%s1139 + $0x147] sm:$0xff]
      %v1582 = vld [vmem:[%s1139 + $0x14f] sm:$0xff]
      %v1583 = vld [vmem:[%s1139 + $0x167] sm:$0xff]
      %v1584 = vld [vmem:[%s1139 + $0x16f] sm:$0xff]
      %v1585 = vld [vmem:[%s1139 + $0x187] sm:$0xff]
      %v1586 = vld [vmem:[%s1139 + $0x18f] sm:$0xff]
      %v1587 = vld [vmem:[%s1139 + $0x1a7] sm:$0xff]
      %v1588 = vld [vmem:[%s1139 + $0x1af] sm:$0xff]
      %v1589 = vld [vmem:[%s1139 + $0x1c7] sm:$0xff]
      %v1590 = vld [vmem:[%s1139 + $0x1cf] sm:$0xff]
      %v1591 = vld [vmem:[%s1139 + $0x1e7] sm:$0xff]
      %v1592 = vld [vmem:[%s1139 + $0x1ef] sm:$0xff]
      %v1593 = vlaneseq
      %v1594 = vshrl.u32 %v1593, 7
      %v1595 = vsub.s32 0, %v1594
      %v1596 = vrot.slane %v1252, %v1595
      %v1597 = vmul.f32 %v1561, %v1596
      %v1598 = vmul.f32 %v1562, %v1596
      %v1599 = vmul.f32 %v1563, %v1596
      %v1600 = vmul.f32 %v1564, %v1596
      %v1601 = vmul.f32 %v1565, %v1596
      %v1602 = vmul.f32 %v1566, %v1596
      %v1603 = vmul.f32 %v1567, %v1596
      %v1604 = vmul.f32 %v1568, %v1596
      %v1605 = vmul.f32 %v1569, %v1596
      %v1606 = vmul.f32 %v1570, %v1596
      %v1607 = vmul.f32 %v1571, %v1596
      %v1608 = vmul.f32 %v1572, %v1596
      %v1609 = vmul.f32 %v1573, %v1596
      %v1610 = vmul.f32 %v1574, %v1596
      %v1611 = vmul.f32 %v1575, %v1596
      %v1612 = vmul.f32 %v1576, %v1596
      %v1613 = vmul.f32 %v1577, %v1596
      %v1614 = vmul.f32 %v1578, %v1596
      %v1615 = vmul.f32 %v1579, %v1596
      %v1616 = vmul.f32 %v1580, %v1596
      %v1617 = vmul.f32 %v1581, %v1596
      %v1618 = vmul.f32 %v1582, %v1596
      %v1619 = vmul.f32 %v1583, %v1596
      %v1620 = vmul.f32 %v1584, %v1596
      %v1621 = vmul.f32 %v1585, %v1596
      %v1622 = vmul.f32 %v1586, %v1596
      %v1623 = vmul.f32 %v1587, %v1596
      %v1624 = vmul.f32 %v1588, %v1596
      %v1625 = vmul.f32 %v1589, %v1596
      %v1626 = vmul.f32 %v1590, %v1596
      %v1627 = vmul.f32 %v1591, %v1596
      %v1628 = vmul.f32 %v1592, %v1596
      %v1629 = vadd.f32 %v1529, %v1597
      %v1630 = vadd.f32 %v1530, %v1598
      %v1631 = vadd.f32 %v1531, %v1599
      %v1632 = vadd.f32 %v1532, %v1600
      %v1633 = vadd.f32 %v1533, %v1601
      %v1634 = vadd.f32 %v1534, %v1602
      %v1635 = vadd.f32 %v1535, %v1603
      %v1636 = vadd.f32 %v1536, %v1604
      %v1637 = vadd.f32 %v1537, %v1605
      %v1638 = vadd.f32 %v1538, %v1606
      %v1639 = vadd.f32 %v1539, %v1607
      %v1640 = vadd.f32 %v1540, %v1608
      %v1641 = vadd.f32 %v1541, %v1609
      %v1642 = vadd.f32 %v1542, %v1610
      %v1643 = vadd.f32 %v1543, %v1611
      %v1644 = vadd.f32 %v1544, %v1612
      %v1645 = vadd.f32 %v1545, %v1613
      %v1646 = vadd.f32 %v1546, %v1614
      %v1647 = vadd.f32 %v1547, %v1615
      %v1648 = vadd.f32 %v1548, %v1616
      %v1649 = vadd.f32 %v1549, %v1617
      %v1650 = vadd.f32 %v1550, %v1618
      %v1651 = vadd.f32 %v1551, %v1619
      %v1652 = vadd.f32 %v1552, %v1620
      %v1653 = vadd.f32 %v1553, %v1621
      %v1654 = vadd.f32 %v1554, %v1622
      %v1655 = vadd.f32 %v1555, %v1623
      %v1656 = vadd.f32 %v1556, %v1624
      %v1657 = vadd.f32 %v1557, %v1625
      %v1658 = vadd.f32 %v1558, %v1626
      %v1659 = vadd.f32 %v1559, %v1627
      %v1660 = vadd.f32 %v1560, %v1628
      %v1661 = vld [vmem:[%s1139 + $0x8] sm:$0xff]
      %v1662 = vld [vmem:[%s1139 + $0x10] sm:$0xff]
      %v1663 = vld [vmem:[%s1139 + $0x28] sm:$0xff]
      %v1664 = vld [vmem:[%s1139 + $0x30] sm:$0xff]
      %v1665 = vld [vmem:[%s1139 + $0x48] sm:$0xff]
      %v1666 = vld [vmem:[%s1139 + $0x50] sm:$0xff]
      %v1667 = vld [vmem:[%s1139 + $0x68] sm:$0xff]
      %v1668 = vld [vmem:[%s1139 + $0x70] sm:$0xff]
      %v1669 = vld [vmem:[%s1139 + $0x88] sm:$0xff]
      %v1670 = vld [vmem:[%s1139 + $0x90] sm:$0xff]
      %v1671 = vld [vmem:[%s1139 + $0xa8] sm:$0xff]
      %v1672 = vld [vmem:[%s1139 + $0xb0] sm:$0xff]
      %v1673 = vld [vmem:[%s1139 + $0xc8] sm:$0xff]
      %v1674 = vld [vmem:[%s1139 + $0xd0] sm:$0xff]
      %v1675 = vld [vmem:[%s1139 + $0xe8] sm:$0xff]
      %v1676 = vld [vmem:[%s1139 + $0xf0] sm:$0xff]
      %v1677 = vld [vmem:[%s1139 + $0x108] sm:$0xff]
      %v1678 = vld [vmem:[%s1139 + $0x110] sm:$0xff]
      %v1679 = vld [vmem:[%s1139 + $0x128] sm:$0xff]
      %v1680 = vld [vmem:[%s1139 + $0x130] sm:$0xff]
      %v1681 = vld [vmem:[%s1139 + $0x148] sm:$0xff]
      %v1682 = vld [vmem:[%s1139 + $0x150] sm:$0xff]
      %v1683 = vld [vmem:[%s1139 + $0x168] sm:$0xff]
      %v1684 = vld [vmem:[%s1139 + $0x170] sm:$0xff]
      %v1685 = vld [vmem:[%s1139 + $0x188] sm:$0xff]
      %v1686 = vld [vmem:[%s1139 + $0x190] sm:$0xff]
      %v1687 = vld [vmem:[%s1139 + $0x1a8] sm:$0xff]
      %v1688 = vld [vmem:[%s1139 + $0x1b0] sm:$0xff]
      %v1689 = vld [vmem:[%s1139 + $0x1c8] sm:$0xff]
      %v1690 = vld [vmem:[%s1139 + $0x1d0] sm:$0xff]
      %v1691 = vld [vmem:[%s1139 + $0x1e8] sm:$0xff]
      %v1692 = vld [vmem:[%s1139 + $0x1f0] sm:$0xff]
      %v1693 = vlaneseq
      %v1694 = vshrl.u32 %v1693, 7
      %v1695 = vsub.s32 1, %v1694
      %v1696 = vrot.slane %v1252, %v1695
      %v1697 = vmul.f32 %v1661, %v1696
      %v1698 = vmul.f32 %v1662, %v1696
      %v1699 = vmul.f32 %v1663, %v1696
      %v1700 = vmul.f32 %v1664, %v1696
      %v1701 = vmul.f32 %v1665, %v1696
      %v1702 = vmul.f32 %v1666, %v1696
      %v1703 = vmul.f32 %v1667, %v1696
      %v1704 = vmul.f32 %v1668, %v1696
      %v1705 = vmul.f32 %v1669, %v1696
      %v1706 = vmul.f32 %v1670, %v1696
      %v1707 = vmul.f32 %v1671, %v1696
      %v1708 = vmul.f32 %v1672, %v1696
      %v1709 = vmul.f32 %v1673, %v1696
      %v1710 = vmul.f32 %v1674, %v1696
      %v1711 = vmul.f32 %v1675, %v1696
      %v1712 = vmul.f32 %v1676, %v1696
      %v1713 = vmul.f32 %v1677, %v1696
      %v1714 = vmul.f32 %v1678, %v1696
      %v1715 = vmul.f32 %v1679, %v1696
      %v1716 = vmul.f32 %v1680, %v1696
      %v1717 = vmul.f32 %v1681, %v1696
      %v1718 = vmul.f32 %v1682, %v1696
      %v1719 = vmul.f32 %v1683, %v1696
      %v1720 = vmul.f32 %v1684, %v1696
      %v1721 = vmul.f32 %v1685, %v1696
      %v1722 = vmul.f32 %v1686, %v1696
      %v1723 = vmul.f32 %v1687, %v1696
      %v1724 = vmul.f32 %v1688, %v1696
      %v1725 = vmul.f32 %v1689, %v1696
      %v1726 = vmul.f32 %v1690, %v1696
      %v1727 = vmul.f32 %v1691, %v1696
      %v1728 = vmul.f32 %v1692, %v1696
      %v1729 = vadd.f32 %v1629, %v1697
      %v1730 = vadd.f32 %v1630, %v1698
      %v1731 = vadd.f32 %v1631, %v1699
      %v1732 = vadd.f32 %v1632, %v1700
      %v1733 = vadd.f32 %v1633, %v1701
      %v1734 = vadd.f32 %v1634, %v1702
      %v1735 = vadd.f32 %v1635, %v1703
      %v1736 = vadd.f32 %v1636, %v1704
      %v1737 = vadd.f32 %v1637, %v1705
      %v1738 = vadd.f32 %v1638, %v1706
      %v1739 = vadd.f32 %v1639, %v1707
      %v1740 = vadd.f32 %v1640, %v1708
      %v1741 = vadd.f32 %v1641, %v1709
      %v1742 = vadd.f32 %v1642, %v1710
      %v1743 = vadd.f32 %v1643, %v1711
      %v1744 = vadd.f32 %v1644, %v1712
      %v1745 = vadd.f32 %v1645, %v1713
      %v1746 = vadd.f32 %v1646, %v1714
      %v1747 = vadd.f32 %v1647, %v1715
      %v1748 = vadd.f32 %v1648, %v1716
      %v1749 = vadd.f32 %v1649, %v1717
      %v1750 = vadd.f32 %v1650, %v1718
      %v1751 = vadd.f32 %v1651, %v1719
      %v1752 = vadd.f32 %v1652, %v1720
      %v1753 = vadd.f32 %v1653, %v1721
      %v1754 = vadd.f32 %v1654, %v1722
      %v1755 = vadd.f32 %v1655, %v1723
      %v1756 = vadd.f32 %v1656, %v1724
      %v1757 = vadd.f32 %v1657, %v1725
      %v1758 = vadd.f32 %v1658, %v1726
      %v1759 = vadd.f32 %v1659, %v1727
      %v1760 = vadd.f32 %v1660, %v1728
      %v1761 = vld [vmem:[%s1139 + $0x9] sm:$0xff]
      %v1762 = vld [vmem:[%s1139 + $0x11] sm:$0xff]
      %v1763 = vld [vmem:[%s1139 + $0x29] sm:$0xff]
      %v1764 = vld [vmem:[%s1139 + $0x31] sm:$0xff]
      %v1765 = vld [vmem:[%s1139 + $0x49] sm:$0xff]
      %v1766 = vld [vmem:[%s1139 + $0x51] sm:$0xff]
      %v1767 = vld [vmem:[%s1139 + $0x69] sm:$0xff]
      %v1768 = vld [vmem:[%s1139 + $0x71] sm:$0xff]
      %v1769 = vld [vmem:[%s1139 + $0x89] sm:$0xff]
      %v1770 = vld [vmem:[%s1139 + $0x91] sm:$0xff]
      %v1771 = vld [vmem:[%s1139 + $0xa9] sm:$0xff]
      %v1772 = vld [vmem:[%s1139 + $0xb1] sm:$0xff]
      %v1773 = vld [vmem:[%s1139 + $0xc9] sm:$0xff]
      %v1774 = vld [vmem:[%s1139 + $0xd1] sm:$0xff]
      %v1775 = vld [vmem:[%s1139 + $0xe9] sm:$0xff]
      %v1776 = vld [vmem:[%s1139 + $0xf1] sm:$0xff]
      %v1777 = vld [vmem:[%s1139 + $0x109] sm:$0xff]
      %v1778 = vld [vmem:[%s1139 + $0x111] sm:$0xff]
      %v1779 = vld [vmem:[%s1139 + $0x129] sm:$0xff]
      %v1780 = vld [vmem:[%s1139 + $0x131] sm:$0xff]
      %v1781 = vld [vmem:[%s1139 + $0x149] sm:$0xff]
      %v1782 = vld [vmem:[%s1139 + $0x151] sm:$0xff]
      %v1783 = vld [vmem:[%s1139 + $0x169] sm:$0xff]
      %v1784 = vld [vmem:[%s1139 + $0x171] sm:$0xff]
      %v1785 = vld [vmem:[%s1139 + $0x189] sm:$0xff]
      %v1786 = vld [vmem:[%s1139 + $0x191] sm:$0xff]
      %v1787 = vld [vmem:[%s1139 + $0x1a9] sm:$0xff]
      %v1788 = vld [vmem:[%s1139 + $0x1b1] sm:$0xff]
      %v1789 = vld [vmem:[%s1139 + $0x1c9] sm:$0xff]
      %v1790 = vld [vmem:[%s1139 + $0x1d1] sm:$0xff]
      %v1791 = vld [vmem:[%s1139 + $0x1e9] sm:$0xff]
      %v1792 = vld [vmem:[%s1139 + $0x1f1] sm:$0xff]
      %v1793 = vlaneseq
      %v1794 = vshrl.u32 %v1793, 7
      %v1795 = vsub.s32 2, %v1794
      %v1796 = vrot.slane %v1252, %v1795
      %v1797 = vmul.f32 %v1761, %v1796
      %v1798 = vmul.f32 %v1762, %v1796
      %v1799 = vmul.f32 %v1763, %v1796
      %v1800 = vmul.f32 %v1764, %v1796
      %v1801 = vmul.f32 %v1765, %v1796
      %v1802 = vmul.f32 %v1766, %v1796
      %v1803 = vmul.f32 %v1767, %v1796
      %v1804 = vmul.f32 %v1768, %v1796
      %v1805 = vmul.f32 %v1769, %v1796
      %v1806 = vmul.f32 %v1770, %v1796
      %v1807 = vmul.f32 %v1771, %v1796
      %v1808 = vmul.f32 %v1772, %v1796
      %v1809 = vmul.f32 %v1773, %v1796
      %v1810 = vmul.f32 %v1774, %v1796
      %v1811 = vmul.f32 %v1775, %v1796
      %v1812 = vmul.f32 %v1776, %v1796
      %v1813 = vmul.f32 %v1777, %v1796
      %v1814 = vmul.f32 %v1778, %v1796
      %v1815 = vmul.f32 %v1779, %v1796
      %v1816 = vmul.f32 %v1780, %v1796
      %v1817 = vmul.f32 %v1781, %v1796
      %v1818 = vmul.f32 %v1782, %v1796
      %v1819 = vmul.f32 %v1783, %v1796
      %v1820 = vmul.f32 %v1784, %v1796
      %v1821 = vmul.f32 %v1785, %v1796
      %v1822 = vmul.f32 %v1786, %v1796
      %v1823 = vmul.f32 %v1787, %v1796
      %v1824 = vmul.f32 %v1788, %v1796
      %v1825 = vmul.f32 %v1789, %v1796
      %v1826 = vmul.f32 %v1790, %v1796
      %v1827 = vmul.f32 %v1791, %v1796
      %v1828 = vmul.f32 %v1792, %v1796
      %v1829 = vadd.f32 %v1729, %v1797
      %v1830 = vadd.f32 %v1730, %v1798
      %v1831 = vadd.f32 %v1731, %v1799
      %v1832 = vadd.f32 %v1732, %v1800
      %v1833 = vadd.f32 %v1733, %v1801
      %v1834 = vadd.f32 %v1734, %v1802
      %v1835 = vadd.f32 %v1735, %v1803
      %v1836 = vadd.f32 %v1736, %v1804
      %v1837 = vadd.f32 %v1737, %v1805
      %v1838 = vadd.f32 %v1738, %v1806
      %v1839 = vadd.f32 %v1739, %v1807
      %v1840 = vadd.f32 %v1740, %v1808
      %v1841 = vadd.f32 %v1741, %v1809
      %v1842 = vadd.f32 %v1742, %v1810
      %v1843 = vadd.f32 %v1743, %v1811
      %v1844 = vadd.f32 %v1744, %v1812
      %v1845 = vadd.f32 %v1745, %v1813
      %v1846 = vadd.f32 %v1746, %v1814
      %v1847 = vadd.f32 %v1747, %v1815
      %v1848 = vadd.f32 %v1748, %v1816
      %v1849 = vadd.f32 %v1749, %v1817
      %v1850 = vadd.f32 %v1750, %v1818
      %v1851 = vadd.f32 %v1751, %v1819
      %v1852 = vadd.f32 %v1752, %v1820
      %v1853 = vadd.f32 %v1753, %v1821
      %v1854 = vadd.f32 %v1754, %v1822
      %v1855 = vadd.f32 %v1755, %v1823
      %v1856 = vadd.f32 %v1756, %v1824
      %v1857 = vadd.f32 %v1757, %v1825
      %v1858 = vadd.f32 %v1758, %v1826
      %v1859 = vadd.f32 %v1759, %v1827
      %v1860 = vadd.f32 %v1760, %v1828
      %s1861 = scalar_lea.vmem [#allocation2], 64
      %v1862 = vld [vmem:[%s1861 + $0x7] sm:$0xff]
      %v1863 = vld [vmem:[%s1861 + $0xf] sm:$0xff]
      %v1864 = vld [vmem:[%s1861 + $0x27] sm:$0xff]
      %v1865 = vld [vmem:[%s1861 + $0x2f] sm:$0xff]
      %v1866 = vld [vmem:[%s1861 + $0x47] sm:$0xff]
      %v1867 = vld [vmem:[%s1861 + $0x4f] sm:$0xff]
      %v1868 = vld [vmem:[%s1861 + $0x67] sm:$0xff]
      %v1869 = vld [vmem:[%s1861 + $0x6f] sm:$0xff]
      %v1870 = vld [vmem:[%s1861 + $0x87] sm:$0xff]
      %v1871 = vld [vmem:[%s1861 + $0x8f] sm:$0xff]
      %v1872 = vld [vmem:[%s1861 + $0xa7] sm:$0xff]
      %v1873 = vld [vmem:[%s1861 + $0xaf] sm:$0xff]
      %v1874 = vld [vmem:[%s1861 + $0xc7] sm:$0xff]
      %v1875 = vld [vmem:[%s1861 + $0xcf] sm:$0xff]
      %v1876 = vld [vmem:[%s1861 + $0xe7] sm:$0xff]
      %v1877 = vld [vmem:[%s1861 + $0xef] sm:$0xff]
      %v1878 = vld [vmem:[%s1861 + $0x107] sm:$0xff]
      %v1879 = vld [vmem:[%s1861 + $0x10f] sm:$0xff]
      %v1880 = vld [vmem:[%s1861 + $0x127] sm:$0xff]
      %v1881 = vld [vmem:[%s1861 + $0x12f] sm:$0xff]
      %v1882 = vld [vmem:[%s1861 + $0x147] sm:$0xff]
      %v1883 = vld [vmem:[%s1861 + $0x14f] sm:$0xff]
      %v1884 = vld [vmem:[%s1861 + $0x167] sm:$0xff]
      %v1885 = vld [vmem:[%s1861 + $0x16f] sm:$0xff]
      %v1886 = vld [vmem:[%s1861 + $0x187] sm:$0xff]
      %v1887 = vld [vmem:[%s1861 + $0x18f] sm:$0xff]
      %v1888 = vld [vmem:[%s1861 + $0x1a7] sm:$0xff]
      %v1889 = vld [vmem:[%s1861 + $0x1af] sm:$0xff]
      %v1890 = vld [vmem:[%s1861 + $0x1c7] sm:$0xff]
      %v1891 = vld [vmem:[%s1861 + $0x1cf] sm:$0xff]
      %v1892 = vld [vmem:[%s1861 + $0x1e7] sm:$0xff]
      %v1893 = vld [vmem:[%s1861 + $0x1ef] sm:$0xff]
      %v1894 = vlaneseq
      %v1895 = vshrl.u32 %v1894, 7
      %v1896 = vsub.s32 0, %v1895
      %v1897 = vrot.slane %v1253, %v1896
      %v1898 = vmul.f32 %v1862, %v1897
      %v1899 = vmul.f32 %v1863, %v1897
      %v1900 = vmul.f32 %v1864, %v1897
      %v1901 = vmul.f32 %v1865, %v1897
      %v1902 = vmul.f32 %v1866, %v1897
      %v1903 = vmul.f32 %v1867, %v1897
      %v1904 = vmul.f32 %v1868, %v1897
      %v1905 = vmul.f32 %v1869, %v1897
      %v1906 = vmul.f32 %v1870, %v1897
      %v1907 = vmul.f32 %v1871, %v1897
      %v1908 = vmul.f32 %v1872, %v1897
      %v1909 = vmul.f32 %v1873, %v1897
      %v1910 = vmul.f32 %v1874, %v1897
      %v1911 = vmul.f32 %v1875, %v1897
      %v1912 = vmul.f32 %v1876, %v1897
      %v1913 = vmul.f32 %v1877, %v1897
      %v1914 = vmul.f32 %v1878, %v1897
      %v1915 = vmul.f32 %v1879, %v1897
      %v1916 = vmul.f32 %v1880, %v1897
      %v1917 = vmul.f32 %v1881, %v1897
      %v1918 = vmul.f32 %v1882, %v1897
      %v1919 = vmul.f32 %v1883, %v1897
      %v1920 = vmul.f32 %v1884, %v1897
      %v1921 = vmul.f32 %v1885, %v1897
      %v1922 = vmul.f32 %v1886, %v1897
      %v1923 = vmul.f32 %v1887, %v1897
      %v1924 = vmul.f32 %v1888, %v1897
      %v1925 = vmul.f32 %v1889, %v1897
      %v1926 = vmul.f32 %v1890, %v1897
      %v1927 = vmul.f32 %v1891, %v1897
      %v1928 = vmul.f32 %v1892, %v1897
      %v1929 = vmul.f32 %v1893, %v1897
      %v1930 = vadd.f32 %v1829, %v1898
      %v1931 = vadd.f32 %v1830, %v1899
      %v1932 = vadd.f32 %v1831, %v1900
      %v1933 = vadd.f32 %v1832, %v1901
      %v1934 = vadd.f32 %v1833, %v1902
      %v1935 = vadd.f32 %v1834, %v1903
      %v1936 = vadd.f32 %v1835, %v1904
      %v1937 = vadd.f32 %v1836, %v1905
      %v1938 = vadd.f32 %v1837, %v1906
      %v1939 = vadd.f32 %v1838, %v1907
      %v1940 = vadd.f32 %v1839, %v1908
      %v1941 = vadd.f32 %v1840, %v1909
      %v1942 = vadd.f32 %v1841, %v1910
      %v1943 = vadd.f32 %v1842, %v1911
      %v1944 = vadd.f32 %v1843, %v1912
      %v1945 = vadd.f32 %v1844, %v1913
      %v1946 = vadd.f32 %v1845, %v1914
      %v1947 = vadd.f32 %v1846, %v1915
      %v1948 = vadd.f32 %v1847, %v1916
      %v1949 = vadd.f32 %v1848, %v1917
      %v1950 = vadd.f32 %v1849, %v1918
      %v1951 = vadd.f32 %v1850, %v1919
      %v1952 = vadd.f32 %v1851, %v1920
      %v1953 = vadd.f32 %v1852, %v1921
      %v1954 = vadd.f32 %v1853, %v1922
      %v1955 = vadd.f32 %v1854, %v1923
      %v1956 = vadd.f32 %v1855, %v1924
      %v1957 = vadd.f32 %v1856, %v1925
      %v1958 = vadd.f32 %v1857, %v1926
      %v1959 = vadd.f32 %v1858, %v1927
      %v1960 = vadd.f32 %v1859, %v1928
      %v1961 = vadd.f32 %v1860, %v1929
      %v1962 = vld [vmem:[%s1861 + $0x8] sm:$0xff]
      %v1963 = vld [vmem:[%s1861 + $0x10] sm:$0xff]
      %v1964 = vld [vmem:[%s1861 + $0x28] sm:$0xff]
      %v1965 = vld [vmem:[%s1861 + $0x30] sm:$0xff]
      %v1966 = vld [vmem:[%s1861 + $0x48] sm:$0xff]
      %v1967 = vld [vmem:[%s1861 + $0x50] sm:$0xff]
      %v1968 = vld [vmem:[%s1861 + $0x68] sm:$0xff]
      %v1969 = vld [vmem:[%s1861 + $0x70] sm:$0xff]
      %v1970 = vld [vmem:[%s1861 + $0x88] sm:$0xff]
      %v1971 = vld [vmem:[%s1861 + $0x90] sm:$0xff]
      %v1972 = vld [vmem:[%s1861 + $0xa8] sm:$0xff]
      %v1973 = vld [vmem:[%s1861 + $0xb0] sm:$0xff]
      %v1974 = vld [vmem:[%s1861 + $0xc8] sm:$0xff]
      %v1975 = vld [vmem:[%s1861 + $0xd0] sm:$0xff]
      %v1976 = vld [vmem:[%s1861 + $0xe8] sm:$0xff]
      %v1977 = vld [vmem:[%s1861 + $0xf0] sm:$0xff]
      %v1978 = vld [vmem:[%s1861 + $0x108] sm:$0xff]
      %v1979 = vld [vmem:[%s1861 + $0x110] sm:$0xff]
      %v1980 = vld [vmem:[%s1861 + $0x128] sm:$0xff]
      %v1981 = vld [vmem:[%s1861 + $0x130] sm:$0xff]
      %v1982 = vld [vmem:[%s1861 + $0x148] sm:$0xff]
      %v1983 = vld [vmem:[%s1861 + $0x150] sm:$0xff]
      %v1984 = vld [vmem:[%s1861 + $0x168] sm:$0xff]
      %v1985 = vld [vmem:[%s1861 + $0x170] sm:$0xff]
      %v1986 = vld [vmem:[%s1861 + $0x188] sm:$0xff]
      %v1987 = vld [vmem:[%s1861 + $0x190] sm:$0xff]
      %v1988 = vld [vmem:[%s1861 + $0x1a8] sm:$0xff]
      %v1989 = vld [vmem:[%s1861 + $0x1b0] sm:$0xff]
      %v1990 = vld [vmem:[%s1861 + $0x1c8] sm:$0xff]
      %v1991 = vld [vmem:[%s1861 + $0x1d0] sm:$0xff]
      %v1992 = vld [vmem:[%s1861 + $0x1e8] sm:$0xff]
      %v1993 = vld [vmem:[%s1861 + $0x1f0] sm:$0xff]
      %v1994 = vlaneseq
      %v1995 = vshrl.u32 %v1994, 7
      %v1996 = vsub.s32 1, %v1995
      %v1997 = vrot.slane %v1253, %v1996
      %v1998 = vmul.f32 %v1962, %v1997
      %v1999 = vmul.f32 %v1963, %v1997
      %v2000 = vmul.f32 %v1964, %v1997
      %v2001 = vmul.f32 %v1965, %v1997
      %v2002 = vmul.f32 %v1966, %v1997
      %v2003 = vmul.f32 %v1967, %v1997
      %v2004 = vmul.f32 %v1968, %v1997
      %v2005 = vmul.f32 %v1969, %v1997
      %v2006 = vmul.f32 %v1970, %v1997
      %v2007 = vmul.f32 %v1971, %v1997
      %v2008 = vmul.f32 %v1972, %v1997
      %v2009 = vmul.f32 %v1973, %v1997
      %v2010 = vmul.f32 %v1974, %v1997
      %v2011 = vmul.f32 %v1975, %v1997
      %v2012 = vmul.f32 %v1976, %v1997
      %v2013 = vmul.f32 %v1977, %v1997
      %v2014 = vmul.f32 %v1978, %v1997
      %v2015 = vmul.f32 %v1979, %v1997
      %v2016 = vmul.f32 %v1980, %v1997
      %v2017 = vmul.f32 %v1981, %v1997
      %v2018 = vmul.f32 %v1982, %v1997
      %v2019 = vmul.f32 %v1983, %v1997
      %v2020 = vmul.f32 %v1984, %v1997
      %v2021 = vmul.f32 %v1985, %v1997
      %v2022 = vmul.f32 %v1986, %v1997
      %v2023 = vmul.f32 %v1987, %v1997
      %v2024 = vmul.f32 %v1988, %v1997
      %v2025 = vmul.f32 %v1989, %v1997
      %v2026 = vmul.f32 %v1990, %v1997
      %v2027 = vmul.f32 %v1991, %v1997
      %v2028 = vmul.f32 %v1992, %v1997
      %v2029 = vmul.f32 %v1993, %v1997
      %v2030 = vadd.f32 %v1930, %v1998
      %v2031 = vadd.f32 %v1931, %v1999
      %v2032 = vadd.f32 %v1932, %v2000
      %v2033 = vadd.f32 %v1933, %v2001
      %v2034 = vadd.f32 %v1934, %v2002
      %v2035 = vadd.f32 %v1935, %v2003
      %v2036 = vadd.f32 %v1936, %v2004
      %v2037 = vadd.f32 %v1937, %v2005
      %v2038 = vadd.f32 %v1938, %v2006
      %v2039 = vadd.f32 %v1939, %v2007
      %v2040 = vadd.f32 %v1940, %v2008
      %v2041 = vadd.f32 %v1941, %v2009
      %v2042 = vadd.f32 %v1942, %v2010
      %v2043 = vadd.f32 %v1943, %v2011
      %v2044 = vadd.f32 %v1944, %v2012
      %v2045 = vadd.f32 %v1945, %v2013
      %v2046 = vadd.f32 %v1946, %v2014
      %v2047 = vadd.f32 %v1947, %v2015
      %v2048 = vadd.f32 %v1948, %v2016
      %v2049 = vadd.f32 %v1949, %v2017
      %v2050 = vadd.f32 %v1950, %v2018
      %v2051 = vadd.f32 %v1951, %v2019
      %v2052 = vadd.f32 %v1952, %v2020
      %v2053 = vadd.f32 %v1953, %v2021
      %v2054 = vadd.f32 %v1954, %v2022
      %v2055 = vadd.f32 %v1955, %v2023
      %v2056 = vadd.f32 %v1956, %v2024
      %v2057 = vadd.f32 %v1957, %v2025
      %v2058 = vadd.f32 %v1958, %v2026
      %v2059 = vadd.f32 %v1959, %v2027
      %v2060 = vadd.f32 %v1960, %v2028
      %v2061 = vadd.f32 %v1961, %v2029
      %v2062 = vld [vmem:[%s1861 + $0x9] sm:$0xff]
      %v2063 = vld [vmem:[%s1861 + $0x11] sm:$0xff]
      %v2064 = vld [vmem:[%s1861 + $0x29] sm:$0xff]
      %v2065 = vld [vmem:[%s1861 + $0x31] sm:$0xff]
      %v2066 = vld [vmem:[%s1861 + $0x49] sm:$0xff]
      %v2067 = vld [vmem:[%s1861 + $0x51] sm:$0xff]
      %v2068 = vld [vmem:[%s1861 + $0x69] sm:$0xff]
      %v2069 = vld [vmem:[%s1861 + $0x71] sm:$0xff]
      %v2070 = vld [vmem:[%s1861 + $0x89] sm:$0xff]
      %v2071 = vld [vmem:[%s1861 + $0x91] sm:$0xff]
      %v2072 = vld [vmem:[%s1861 + $0xa9] sm:$0xff]
      %v2073 = vld [vmem:[%s1861 + $0xb1] sm:$0xff]
      %v2074 = vld [vmem:[%s1861 + $0xc9] sm:$0xff]
      %v2075 = vld [vmem:[%s1861 + $0xd1] sm:$0xff]
      %v2076 = vld [vmem:[%s1861 + $0xe9] sm:$0xff]
      %v2077 = vld [vmem:[%s1861 + $0xf1] sm:$0xff]
      %v2078 = vld [vmem:[%s1861 + $0x109] sm:$0xff]
      %v2079 = vld [vmem:[%s1861 + $0x111] sm:$0xff]
      %v2080 = vld [vmem:[%s1861 + $0x129] sm:$0xff]
      %v2081 = vld [vmem:[%s1861 + $0x131] sm:$0xff]
      %v2082 = vld [vmem:[%s1861 + $0x149] sm:$0xff]
      %v2083 = vld [vmem:[%s1861 + $0x151] sm:$0xff]
      %v2084 = vld [vmem:[%s1861 + $0x169] sm:$0xff]
      %v2085 = vld [vmem:[%s1861 + $0x171] sm:$0xff]
      %v2086 = vld [vmem:[%s1861 + $0x189] sm:$0xff]
      %v2087 = vld [vmem:[%s1861 + $0x191] sm:$0xff]
      %v2088 = vld [vmem:[%s1861 + $0x1a9] sm:$0xff]
      %v2089 = vld [vmem:[%s1861 + $0x1b1] sm:$0xff]
      %v2090 = vld [vmem:[%s1861 + $0x1c9] sm:$0xff]
      %v2091 = vld [vmem:[%s1861 + $0x1d1] sm:$0xff]
      %v2092 = vld [vmem:[%s1861 + $0x1e9] sm:$0xff]
      %v2093 = vld [vmem:[%s1861 + $0x1f1] sm:$0xff]
      %v2094 = vlaneseq
      %v2095 = vshrl.u32 %v2094, 7
      %v2096 = vsub.s32 2, %v2095
      %v2097 = vrot.slane %v1253, %v2096
      %v2098 = vmul.f32 %v2062, %v2097
      %v2099 = vmul.f32 %v2063, %v2097
      %v2100 = vmul.f32 %v2064, %v2097
      %v2101 = vmul.f32 %v2065, %v2097
      %v2102 = vmul.f32 %v2066, %v2097
      %v2103 = vmul.f32 %v2067, %v2097
      %v2104 = vmul.f32 %v2068, %v2097
      %v2105 = vmul.f32 %v2069, %v2097
      %v2106 = vmul.f32 %v2070, %v2097
      %v2107 = vmul.f32 %v2071, %v2097
      %v2108 = vmul.f32 %v2072, %v2097
      %v2109 = vmul.f32 %v2073, %v2097
      %v2110 = vmul.f32 %v2074, %v2097
      %v2111 = vmul.f32 %v2075, %v2097
      %v2112 = vmul.f32 %v2076, %v2097
      %v2113 = vmul.f32 %v2077, %v2097
      %v2114 = vmul.f32 %v2078, %v2097
      %v2115 = vmul.f32 %v2079, %v2097
      %v2116 = vmul.f32 %v2080, %v2097
      %v2117 = vmul.f32 %v2081, %v2097
      %v2118 = vmul.f32 %v2082, %v2097
      %v2119 = vmul.f32 %v2083, %v2097
      %v2120 = vmul.f32 %v2084, %v2097
      %v2121 = vmul.f32 %v2085, %v2097
      %v2122 = vmul.f32 %v2086, %v2097
      %v2123 = vmul.f32 %v2087, %v2097
      %v2124 = vmul.f32 %v2088, %v2097
      %v2125 = vmul.f32 %v2089, %v2097
      %v2126 = vmul.f32 %v2090, %v2097
      %v2127 = vmul.f32 %v2091, %v2097
      %v2128 = vmul.f32 %v2092, %v2097
      %v2129 = vmul.f32 %v2093, %v2097
      %v2130 = vadd.f32 %v2030, %v2098
      %v2131 = vadd.f32 %v2031, %v2099
      %v2132 = vadd.f32 %v2032, %v2100
      %v2133 = vadd.f32 %v2033, %v2101
      %v2134 = vadd.f32 %v2034, %v2102
      %v2135 = vadd.f32 %v2035, %v2103
      %v2136 = vadd.f32 %v2036, %v2104
      %v2137 = vadd.f32 %v2037, %v2105
      %v2138 = vadd.f32 %v2038, %v2106
      %v2139 = vadd.f32 %v2039, %v2107
      %v2140 = vadd.f32 %v2040, %v2108
      %v2141 = vadd.f32 %v2041, %v2109
      %v2142 = vadd.f32 %v2042, %v2110
      %v2143 = vadd.f32 %v2043, %v2111
      %v2144 = vadd.f32 %v2044, %v2112
      %v2145 = vadd.f32 %v2045, %v2113
      %v2146 = vadd.f32 %v2046, %v2114
      %v2147 = vadd.f32 %v2047, %v2115
      %v2148 = vadd.f32 %v2048, %v2116
      %v2149 = vadd.f32 %v2049, %v2117
      %v2150 = vadd.f32 %v2050, %v2118
      %v2151 = vadd.f32 %v2051, %v2119
      %v2152 = vadd.f32 %v2052, %v2120
      %v2153 = vadd.f32 %v2053, %v2121
      %v2154 = vadd.f32 %v2054, %v2122
      %v2155 = vadd.f32 %v2055, %v2123
      %v2156 = vadd.f32 %v2056, %v2124
      %v2157 = vadd.f32 %v2057, %v2125
      %v2158 = vadd.f32 %v2058, %v2126
      %v2159 = vadd.f32 %v2059, %v2127
      %v2160 = vadd.f32 %v2060, %v2128
      %v2161 = vadd.f32 %v2061, %v2129
      %v2162 = vmul.f32 %v2130, 0.70710677
      %v2163 = vmul.f32 %v2131, 0.70710677
      %v2164 = vmul.f32 %v2132, 0.70710677
      %v2165 = vmul.f32 %v2133, 0.70710677
      %v2166 = vmul.f32 %v2134, 0.70710677
      %v2167 = vmul.f32 %v2135, 0.70710677
      %v2168 = vmul.f32 %v2136, 0.70710677
      %v2169 = vmul.f32 %v2137, 0.70710677
      %v2170 = vmul.f32 %v2138, 0.70710677
      %v2171 = vmul.f32 %v2139, 0.70710677
      %v2172 = vmul.f32 %v2140, 0.70710677
      %v2173 = vmul.f32 %v2141, 0.70710677
      %v2174 = vmul.f32 %v2142, 0.70710677
      %v2175 = vmul.f32 %v2143, 0.70710677
      %v2176 = vmul.f32 %v2144, 0.70710677
      %v2177 = vmul.f32 %v2145, 0.70710677
      %v2178 = vmul.f32 %v2146, 0.70710677
      %v2179 = vmul.f32 %v2147, 0.70710677
      %v2180 = vmul.f32 %v2148, 0.70710677
      %v2181 = vmul.f32 %v2149, 0.70710677
      %v2182 = vmul.f32 %v2150, 0.70710677
      %v2183 = vmul.f32 %v2151, 0.70710677
      %v2184 = vmul.f32 %v2152, 0.70710677
      %v2185 = vmul.f32 %v2153, 0.70710677
      %v2186 = vmul.f32 %v2154, 0.70710677
      %v2187 = vmul.f32 %v2155, 0.70710677
      %v2188 = vmul.f32 %v2156, 0.70710677
      %v2189 = vmul.f32 %v2157, 0.70710677
      %v2190 = vmul.f32 %v2158, 0.70710677
      %v2191 = vmul.f32 %v2159, 0.70710677
      %v2192 = vmul.f32 %v2160, 0.70710677
      %v2193 = vmul.f32 %v2161, 0.70710677
      %v2194 = verf.f32.pop %v2162
      %v2195 = verf.f32.pop %v2163
      %v2196 = verf.f32.pop %v2164
      %v2197 = verf.f32.pop %v2165
      %v2198 = verf.f32.pop %v2166
      %v2199 = verf.f32.pop %v2167
      %v2200 = verf.f32.pop %v2168
      %v2201 = verf.f32.pop %v2169
      %v2202 = verf.f32.pop %v2170
      %v2203 = verf.f32.pop %v2171
      %v2204 = verf.f32.pop %v2172
      %v2205 = verf.f32.pop %v2173
      %v2206 = verf.f32.pop %v2174
      %v2207 = verf.f32.pop %v2175
      %v2208 = verf.f32.pop %v2176
      %v2209 = verf.f32.pop %v2177
      %v2210 = verf.f32.pop %v2178
      %v2211 = verf.f32.pop %v2179
      %v2212 = verf.f32.pop %v2180
      %v2213 = verf.f32.pop %v2181
      %v2214 = verf.f32.pop %v2182
      %v2215 = verf.f32.pop %v2183
      %v2216 = verf.f32.pop %v2184
      %v2217 = verf.f32.pop %v2185
      %v2218 = verf.f32.pop %v2186
      %v2219 = verf.f32.pop %v2187
      %v2220 = verf.f32.pop %v2188
      %v2221 = verf.f32.pop %v2189
      %v2222 = verf.f32.pop %v2190
      %v2223 = verf.f32.pop %v2191
      %v2224 = verf.f32.pop %v2192
      %v2225 = verf.f32.pop %v2193
      %v2226 = vadd.f32 %v2194, 1.0
      %v2227 = vadd.f32 %v2195, 1.0
      %v2228 = vadd.f32 %v2196, 1.0
      %v2229 = vadd.f32 %v2197, 1.0
      %v2230 = vadd.f32 %v2198, 1.0
      %v2231 = vadd.f32 %v2199, 1.0
      %v2232 = vadd.f32 %v2200, 1.0
      %v2233 = vadd.f32 %v2201, 1.0
      %v2234 = vadd.f32 %v2202, 1.0
      %v2235 = vadd.f32 %v2203, 1.0
      %v2236 = vadd.f32 %v2204, 1.0
      %v2237 = vadd.f32 %v2205, 1.0
      %v2238 = vadd.f32 %v2206, 1.0
      %v2239 = vadd.f32 %v2207, 1.0
      %v2240 = vadd.f32 %v2208, 1.0
      %v2241 = vadd.f32 %v2209, 1.0
      %v2242 = vadd.f32 %v2210, 1.0
      %v2243 = vadd.f32 %v2211, 1.0
      %v2244 = vadd.f32 %v2212, 1.0
      %v2245 = vadd.f32 %v2213, 1.0
      %v2246 = vadd.f32 %v2214, 1.0
      %v2247 = vadd.f32 %v2215, 1.0
      %v2248 = vadd.f32 %v2216, 1.0
      %v2249 = vadd.f32 %v2217, 1.0
      %v2250 = vadd.f32 %v2218, 1.0
      %v2251 = vadd.f32 %v2219, 1.0
      %v2252 = vadd.f32 %v2220, 1.0
      %v2253 = vadd.f32 %v2221, 1.0
      %v2254 = vadd.f32 %v2222, 1.0
      %v2255 = vadd.f32 %v2223, 1.0
      %v2256 = vadd.f32 %v2224, 1.0
      %v2257 = vadd.f32 %v2225, 1.0
      %v2258 = vmul.f32 %v2130, %v2226
      %v2259 = vmul.f32 %v2131, %v2227
      %v2260 = vmul.f32 %v2132, %v2228
      %v2261 = vmul.f32 %v2133, %v2229
      %v2262 = vmul.f32 %v2134, %v2230
      %v2263 = vmul.f32 %v2135, %v2231
      %v2264 = vmul.f32 %v2136, %v2232
      %v2265 = vmul.f32 %v2137, %v2233
      %v2266 = vmul.f32 %v2138, %v2234
      %v2267 = vmul.f32 %v2139, %v2235
      %v2268 = vmul.f32 %v2140, %v2236
      %v2269 = vmul.f32 %v2141, %v2237
      %v2270 = vmul.f32 %v2142, %v2238
      %v2271 = vmul.f32 %v2143, %v2239
      %v2272 = vmul.f32 %v2144, %v2240
      %v2273 = vmul.f32 %v2145, %v2241
      %v2274 = vmul.f32 %v2146, %v2242
      %v2275 = vmul.f32 %v2147, %v2243
      %v2276 = vmul.f32 %v2148, %v2244
      %v2277 = vmul.f32 %v2149, %v2245
      %v2278 = vmul.f32 %v2150, %v2246
      %v2279 = vmul.f32 %v2151, %v2247
      %v2280 = vmul.f32 %v2152, %v2248
      %v2281 = vmul.f32 %v2153, %v2249
      %v2282 = vmul.f32 %v2154, %v2250
      %v2283 = vmul.f32 %v2155, %v2251
      %v2284 = vmul.f32 %v2156, %v2252
      %v2285 = vmul.f32 %v2157, %v2253
      %v2286 = vmul.f32 %v2158, %v2254
      %v2287 = vmul.f32 %v2159, %v2255
      %v2288 = vmul.f32 %v2160, %v2256
      %v2289 = vmul.f32 %v2161, %v2257
      %v2290 = vld [vmem:[%s6] sm:$0x7]
      %v2291 = vld [vmem:[%s6 + $0x4] sm:$0x7]
      %v2292 = vld [vmem:[%s6 + $0x8] sm:$0x7]
      %v2293 = vld [vmem:[%s8] sm:$0x1]
      %v2294 = vld [vmem:[#allocation3 + $0x7] sm:$0xff]
      %v2295 = vld [vmem:[#allocation3 + $0xf] sm:$0xff]
      %v2296 = vld [vmem:[#allocation3 + $0x27] sm:$0xff]
      %v2297 = vld [vmem:[#allocation3 + $0x2f] sm:$0xff]
      %v2298 = vld [vmem:[#allocation3 + $0x47] sm:$0xff]
      %v2299 = vld [vmem:[#allocation3 + $0x4f] sm:$0xff]
      %v2300 = vld [vmem:[#allocation3 + $0x67] sm:$0xff]
      %v2301 = vld [vmem:[#allocation3 + $0x6f] sm:$0xff]
      %v2302 = vld [vmem:[#allocation3 + $0x87] sm:$0xff]
      %v2303 = vld [vmem:[#allocation3 + $0x8f] sm:$0xff]
      %v2304 = vld [vmem:[#allocation3 + $0xa7] sm:$0xff]
      %v2305 = vld [vmem:[#allocation3 + $0xaf] sm:$0xff]
      %v2306 = vld [vmem:[#allocation3 + $0xc7] sm:$0xff]
      %v2307 = vld [vmem:[#allocation3 + $0xcf] sm:$0xff]
      %v2308 = vld [vmem:[#allocation3 + $0xe7] sm:$0xff]
      %v2309 = vld [vmem:[#allocation3 + $0xef] sm:$0xff]
      %v2310 = vld [vmem:[#allocation3 + $0x107] sm:$0xff]
      %v2311 = vld [vmem:[#allocation3 + $0x10f] sm:$0xff]
      %v2312 = vld [vmem:[#allocation3 + $0x127] sm:$0xff]
      %v2313 = vld [vmem:[#allocation3 + $0x12f] sm:$0xff]
      %v2314 = vld [vmem:[#allocation3 + $0x147] sm:$0xff]
      %v2315 = vld [vmem:[#allocation3 + $0x14f] sm:$0xff]
      %v2316 = vld [vmem:[#allocation3 + $0x167] sm:$0xff]
      %v2317 = vld [vmem:[#allocation3 + $0x16f] sm:$0xff]
      %v2318 = vld [vmem:[#allocation3 + $0x187] sm:$0xff]
      %v2319 = vld [vmem:[#allocation3 + $0x18f] sm:$0xff]
      %v2320 = vld [vmem:[#allocation3 + $0x1a7] sm:$0xff]
      %v2321 = vld [vmem:[#allocation3 + $0x1af] sm:$0xff]
      %v2322 = vld [vmem:[#allocation3 + $0x1c7] sm:$0xff]
      %v2323 = vld [vmem:[#allocation3 + $0x1cf] sm:$0xff]
      %v2324 = vld [vmem:[#allocation3 + $0x1e7] sm:$0xff]
      %v2325 = vld [vmem:[#allocation3 + $0x1ef] sm:$0xff]
      %v2326 = vlaneseq
      %v2327 = vshrl.u32 %v2326, 7
      %v2328 = vsub.s32 0, %v2327
      %v2329 = vrot.slane %v2290, %v2328
      %v2330 = vmul.f32 %v2294, %v2329
      %v2331 = vmul.f32 %v2295, %v2329
      %v2332 = vmul.f32 %v2296, %v2329
      %v2333 = vmul.f32 %v2297, %v2329
      %v2334 = vmul.f32 %v2298, %v2329
      %v2335 = vmul.f32 %v2299, %v2329
      %v2336 = vmul.f32 %v2300, %v2329
      %v2337 = vmul.f32 %v2301, %v2329
      %v2338 = vmul.f32 %v2302, %v2329
      %v2339 = vmul.f32 %v2303, %v2329
      %v2340 = vmul.f32 %v2304, %v2329
      %v2341 = vmul.f32 %v2305, %v2329
      %v2342 = vmul.f32 %v2306, %v2329
      %v2343 = vmul.f32 %v2307, %v2329
      %v2344 = vmul.f32 %v2308, %v2329
      %v2345 = vmul.f32 %v2309, %v2329
      %v2346 = vmul.f32 %v2310, %v2329
      %v2347 = vmul.f32 %v2311, %v2329
      %v2348 = vmul.f32 %v2312, %v2329
      %v2349 = vmul.f32 %v2313, %v2329
      %v2350 = vmul.f32 %v2314, %v2329
      %v2351 = vmul.f32 %v2315, %v2329
      %v2352 = vmul.f32 %v2316, %v2329
      %v2353 = vmul.f32 %v2317, %v2329
      %v2354 = vmul.f32 %v2318, %v2329
      %v2355 = vmul.f32 %v2319, %v2329
      %v2356 = vmul.f32 %v2320, %v2329
      %v2357 = vmul.f32 %v2321, %v2329
      %v2358 = vmul.f32 %v2322, %v2329
      %v2359 = vmul.f32 %v2323, %v2329
      %v2360 = vmul.f32 %v2324, %v2329
      %v2361 = vmul.f32 %v2325, %v2329
      %v2363 = vlaneseq
      %v2364 = vshrl.u32 %v2363, 7
      %v2365 = vsub.s32 0, %v2364
      %v2366 = vrot.slane %v2293, %v2365
      %v2368 = vadd.f32 %v2330, %v2366
      %v2369 = vadd.f32 %v2331, %v2366
      %v2370 = vadd.f32 %v2332, %v2366
      %v2371 = vadd.f32 %v2333, %v2366
      %v2372 = vadd.f32 %v2334, %v2366
      %v2373 = vadd.f32 %v2335, %v2366
      %v2374 = vadd.f32 %v2336, %v2366
      %v2375 = vadd.f32 %v2337, %v2366
      %v2376 = vadd.f32 %v2338, %v2366
      %v2377 = vadd.f32 %v2339, %v2366
      %v2378 = vadd.f32 %v2340, %v2366
      %v2379 = vadd.f32 %v2341, %v2366
      %v2380 = vadd.f32 %v2342, %v2366
      %v2381 = vadd.f32 %v2343, %v2366
      %v2382 = vadd.f32 %v2344, %v2366
      %v2383 = vadd.f32 %v2345, %v2366
      %v2384 = vadd.f32 %v2346, %v2366
      %v2385 = vadd.f32 %v2347, %v2366
      %v2386 = vadd.f32 %v2348, %v2366
      %v2387 = vadd.f32 %v2349, %v2366
      %v2388 = vadd.f32 %v2350, %v2366
      %v2389 = vadd.f32 %v2351, %v2366
      %v2390 = vadd.f32 %v2352, %v2366
      %v2391 = vadd.f32 %v2353, %v2366
      %v2392 = vadd.f32 %v2354, %v2366
      %v2393 = vadd.f32 %v2355, %v2366
      %v2394 = vadd.f32 %v2356, %v2366
      %v2395 = vadd.f32 %v2357, %v2366
      %v2396 = vadd.f32 %v2358, %v2366
      %v2397 = vadd.f32 %v2359, %v2366
      %v2398 = vadd.f32 %v2360, %v2366
      %v2399 = vadd.f32 %v2361, %v2366
      %v2400 = vld [vmem:[#allocation3 + $0x8] sm:$0xff]
      %v2401 = vld [vmem:[#allocation3 + $0x10] sm:$0xff]
      %v2402 = vld [vmem:[#allocation3 + $0x28] sm:$0xff]
      %v2403 = vld [vmem:[#allocation3 + $0x30] sm:$0xff]
      %v2404 = vld [vmem:[#allocation3 + $0x48] sm:$0xff]
      %v2405 = vld [vmem:[#allocation3 + $0x50] sm:$0xff]
      %v2406 = vld [vmem:[#allocation3 + $0x68] sm:$0xff]
      %v2407 = vld [vmem:[#allocation3 + $0x70] sm:$0xff]
      %v2408 = vld [vmem:[#allocation3 + $0x88] sm:$0xff]
      %v2409 = vld [vmem:[#allocation3 + $0x90] sm:$0xff]
      %v2410 = vld [vmem:[#allocation3 + $0xa8] sm:$0xff]
      %v2411 = vld [vmem:[#allocation3 + $0xb0] sm:$0xff]
      %v2412 = vld [vmem:[#allocation3 + $0xc8] sm:$0xff]
      %v2413 = vld [vmem:[#allocation3 + $0xd0] sm:$0xff]
      %v2414 = vld [vmem:[#allocation3 + $0xe8] sm:$0xff]
      %v2415 = vld [vmem:[#allocation3 + $0xf0] sm:$0xff]
      %v2416 = vld [vmem:[#allocation3 + $0x108] sm:$0xff]
      %v2417 = vld [vmem:[#allocation3 + $0x110] sm:$0xff]
      %v2418 = vld [vmem:[#allocation3 + $0x128] sm:$0xff]
      %v2419 = vld [vmem:[#allocation3 + $0x130] sm:$0xff]
      %v2420 = vld [vmem:[#allocation3 + $0x148] sm:$0xff]
      %v2421 = vld [vmem:[#allocation3 + $0x150] sm:$0xff]
      %v2422 = vld [vmem:[#allocation3 + $0x168] sm:$0xff]
      %v2423 = vld [vmem:[#allocation3 + $0x170] sm:$0xff]
      %v2424 = vld [vmem:[#allocation3 + $0x188] sm:$0xff]
      %v2425 = vld [vmem:[#allocation3 + $0x190] sm:$0xff]
      %v2426 = vld [vmem:[#allocation3 + $0x1a8] sm:$0xff]
      %v2427 = vld [vmem:[#allocation3 + $0x1b0] sm:$0xff]
      %v2428 = vld [vmem:[#allocation3 + $0x1c8] sm:$0xff]
      %v2429 = vld [vmem:[#allocation3 + $0x1d0] sm:$0xff]
      %v2430 = vld [vmem:[#allocation3 + $0x1e8] sm:$0xff]
      %v2431 = vld [vmem:[#allocation3 + $0x1f0] sm:$0xff]
      %v2432 = vlaneseq
      %v2433 = vshrl.u32 %v2432, 7
      %v2434 = vsub.s32 1, %v2433
      %v2435 = vrot.slane %v2290, %v2434
      %v2436 = vmul.f32 %v2400, %v2435
      %v2437 = vmul.f32 %v2401, %v2435
      %v2438 = vmul.f32 %v2402, %v2435
      %v2439 = vmul.f32 %v2403, %v2435
      %v2440 = vmul.f32 %v2404, %v2435
      %v2441 = vmul.f32 %v2405, %v2435
      %v2442 = vmul.f32 %v2406, %v2435
      %v2443 = vmul.f32 %v2407, %v2435
      %v2444 = vmul.f32 %v2408, %v2435
      %v2445 = vmul.f32 %v2409, %v2435
      %v2446 = vmul.f32 %v2410, %v2435
      %v2447 = vmul.f32 %v2411, %v2435
      %v2448 = vmul.f32 %v2412, %v2435
      %v2449 = vmul.f32 %v2413, %v2435
      %v2450 = vmul.f32 %v2414, %v2435
      %v2451 = vmul.f32 %v2415, %v2435
      %v2452 = vmul.f32 %v2416, %v2435
      %v2453 = vmul.f32 %v2417, %v2435
      %v2454 = vmul.f32 %v2418, %v2435
      %v2455 = vmul.f32 %v2419, %v2435
      %v2456 = vmul.f32 %v2420, %v2435
      %v2457 = vmul.f32 %v2421, %v2435
      %v2458 = vmul.f32 %v2422, %v2435
      %v2459 = vmul.f32 %v2423, %v2435
      %v2460 = vmul.f32 %v2424, %v2435
      %v2461 = vmul.f32 %v2425, %v2435
      %v2462 = vmul.f32 %v2426, %v2435
      %v2463 = vmul.f32 %v2427, %v2435
      %v2464 = vmul.f32 %v2428, %v2435
      %v2465 = vmul.f32 %v2429, %v2435
      %v2466 = vmul.f32 %v2430, %v2435
      %v2467 = vmul.f32 %v2431, %v2435
      %v2468 = vadd.f32 %v2368, %v2436
      %v2469 = vadd.f32 %v2369, %v2437
      %v2470 = vadd.f32 %v2370, %v2438
      %v2471 = vadd.f32 %v2371, %v2439
      %v2472 = vadd.f32 %v2372, %v2440
      %v2473 = vadd.f32 %v2373, %v2441
      %v2474 = vadd.f32 %v2374, %v2442
      %v2475 = vadd.f32 %v2375, %v2443
      %v2476 = vadd.f32 %v2376, %v2444
      %v2477 = vadd.f32 %v2377, %v2445
      %v2478 = vadd.f32 %v2378, %v2446
      %v2479 = vadd.f32 %v2379, %v2447
      %v2480 = vadd.f32 %v2380, %v2448
      %v2481 = vadd.f32 %v2381, %v2449
      %v2482 = vadd.f32 %v2382, %v2450
      %v2483 = vadd.f32 %v2383, %v2451
      %v2484 = vadd.f32 %v2384, %v2452
      %v2485 = vadd.f32 %v2385, %v2453
      %v2486 = vadd.f32 %v2386, %v2454
      %v2487 = vadd.f32 %v2387, %v2455
      %v2488 = vadd.f32 %v2388, %v2456
      %v2489 = vadd.f32 %v2389, %v2457
      %v2490 = vadd.f32 %v2390, %v2458
      %v2491 = vadd.f32 %v2391, %v2459
      %v2492 = vadd.f32 %v2392, %v2460
      %v2493 = vadd.f32 %v2393, %v2461
      %v2494 = vadd.f32 %v2394, %v2462
      %v2495 = vadd.f32 %v2395, %v2463
      %v2496 = vadd.f32 %v2396, %v2464
      %v2497 = vadd.f32 %v2397, %v2465
      %v2498 = vadd.f32 %v2398, %v2466
      %v2499 = vadd.f32 %v2399, %v2467
      %v2500 = vld [vmem:[#allocation3 + $0x9] sm:$0xff]
      %v2501 = vld [vmem:[#allocation3 + $0x11] sm:$0xff]
      %v2502 = vld [vmem:[#allocation3 + $0x29] sm:$0xff]
      %v2503 = vld [vmem:[#allocation3 + $0x31] sm:$0xff]
      %v2504 = vld [vmem:[#allocation3 + $0x49] sm:$0xff]
      %v2505 = vld [vmem:[#allocation3 + $0x51] sm:$0xff]
      %v2506 = vld [vmem:[#allocation3 + $0x69] sm:$0xff]
      %v2507 = vld [vmem:[#allocation3 + $0x71] sm:$0xff]
      %v2508 = vld [vmem:[#allocation3 + $0x89] sm:$0xff]
      %v2509 = vld [vmem:[#allocation3 + $0x91] sm:$0xff]
      %v2510 = vld [vmem:[#allocation3 + $0xa9] sm:$0xff]
      %v2511 = vld [vmem:[#allocation3 + $0xb1] sm:$0xff]
      %v2512 = vld [vmem:[#allocation3 + $0xc9] sm:$0xff]
      %v2513 = vld [vmem:[#allocation3 + $0xd1] sm:$0xff]
      %v2514 = vld [vmem:[#allocation3 + $0xe9] sm:$0xff]
      %v2515 = vld [vmem:[#allocation3 + $0xf1] sm:$0xff]
      %v2516 = vld [vmem:[#allocation3 + $0x109] sm:$0xff]
      %v2517 = vld [vmem:[#allocation3 + $0x111] sm:$0xff]
      %v2518 = vld [vmem:[#allocation3 + $0x129] sm:$0xff]
      %v2519 = vld [vmem:[#allocation3 + $0x131] sm:$0xff]
      %v2520 = vld [vmem:[#allocation3 + $0x149] sm:$0xff]
      %v2521 = vld [vmem:[#allocation3 + $0x151] sm:$0xff]
      %v2522 = vld [vmem:[#allocation3 + $0x169] sm:$0xff]
      %v2523 = vld [vmem:[#allocation3 + $0x171] sm:$0xff]
      %v2524 = vld [vmem:[#allocation3 + $0x189] sm:$0xff]
      %v2525 = vld [vmem:[#allocation3 + $0x191] sm:$0xff]
      %v2526 = vld [vmem:[#allocation3 + $0x1a9] sm:$0xff]
      %v2527 = vld [vmem:[#allocation3 + $0x1b1] sm:$0xff]
      %v2528 = vld [vmem:[#allocation3 + $0x1c9] sm:$0xff]
      %v2529 = vld [vmem:[#allocation3 + $0x1d1] sm:$0xff]
      %v2530 = vld [vmem:[#allocation3 + $0x1e9] sm:$0xff]
      %v2531 = vld [vmem:[#allocation3 + $0x1f1] sm:$0xff]
      %v2532 = vlaneseq
      %v2533 = vshrl.u32 %v2532, 7
      %v2534 = vsub.s32 2, %v2533
      %v2535 = vrot.slane %v2290, %v2534
      %v2536 = vmul.f32 %v2500, %v2535
      %v2537 = vmul.f32 %v2501, %v2535
      %v2538 = vmul.f32 %v2502, %v2535
      %v2539 = vmul.f32 %v2503, %v2535
      %v2540 = vmul.f32 %v2504, %v2535
      %v2541 = vmul.f32 %v2505, %v2535
      %v2542 = vmul.f32 %v2506, %v2535
      %v2543 = vmul.f32 %v2507, %v2535
      %v2544 = vmul.f32 %v2508, %v2535
      %v2545 = vmul.f32 %v2509, %v2535
      %v2546 = vmul.f32 %v2510, %v2535
      %v2547 = vmul.f32 %v2511, %v2535
      %v2548 = vmul.f32 %v2512, %v2535
      %v2549 = vmul.f32 %v2513, %v2535
      %v2550 = vmul.f32 %v2514, %v2535
      %v2551 = vmul.f32 %v2515, %v2535
      %v2552 = vmul.f32 %v2516, %v2535
      %v2553 = vmul.f32 %v2517, %v2535
      %v2554 = vmul.f32 %v2518, %v2535
      %v2555 = vmul.f32 %v2519, %v2535
      %v2556 = vmul.f32 %v2520, %v2535
      %v2557 = vmul.f32 %v2521, %v2535
      %v2558 = vmul.f32 %v2522, %v2535
      %v2559 = vmul.f32 %v2523, %v2535
      %v2560 = vmul.f32 %v2524, %v2535
      %v2561 = vmul.f32 %v2525, %v2535
      %v2562 = vmul.f32 %v2526, %v2535
      %v2563 = vmul.f32 %v2527, %v2535
      %v2564 = vmul.f32 %v2528, %v2535
      %v2565 = vmul.f32 %v2529, %v2535
      %v2566 = vmul.f32 %v2530, %v2535
      %v2567 = vmul.f32 %v2531, %v2535
      %v2568 = vadd.f32 %v2468, %v2536
      %v2569 = vadd.f32 %v2469, %v2537
      %v2570 = vadd.f32 %v2470, %v2538
      %v2571 = vadd.f32 %v2471, %v2539
      %v2572 = vadd.f32 %v2472, %v2540
      %v2573 = vadd.f32 %v2473, %v2541
      %v2574 = vadd.f32 %v2474, %v2542
      %v2575 = vadd.f32 %v2475, %v2543
      %v2576 = vadd.f32 %v2476, %v2544
      %v2577 = vadd.f32 %v2477, %v2545
      %v2578 = vadd.f32 %v2478, %v2546
      %v2579 = vadd.f32 %v2479, %v2547
      %v2580 = vadd.f32 %v2480, %v2548
      %v2581 = vadd.f32 %v2481, %v2549
      %v2582 = vadd.f32 %v2482, %v2550
      %v2583 = vadd.f32 %v2483, %v2551
      %v2584 = vadd.f32 %v2484, %v2552
      %v2585 = vadd.f32 %v2485, %v2553
      %v2586 = vadd.f32 %v2486, %v2554
      %v2587 = vadd.f32 %v2487, %v2555
      %v2588 = vadd.f32 %v2488, %v2556
      %v2589 = vadd.f32 %v2489, %v2557
      %v2590 = vadd.f32 %v2490, %v2558
      %v2591 = vadd.f32 %v2491, %v2559
      %v2592 = vadd.f32 %v2492, %v2560
      %v2593 = vadd.f32 %v2493, %v2561
      %v2594 = vadd.f32 %v2494, %v2562
      %v2595 = vadd.f32 %v2495, %v2563
      %v2596 = vadd.f32 %v2496, %v2564
      %v2597 = vadd.f32 %v2497, %v2565
      %v2598 = vadd.f32 %v2498, %v2566
      %v2599 = vadd.f32 %v2499, %v2567
      %v2600 = vld [vmem:[%s1213 + $0x7] sm:$0xff]
      %v2601 = vld [vmem:[%s1213 + $0xf] sm:$0xff]
      %v2602 = vld [vmem:[%s1213 + $0x27] sm:$0xff]
      %v2603 = vld [vmem:[%s1213 + $0x2f] sm:$0xff]
      %v2604 = vld [vmem:[%s1213 + $0x47] sm:$0xff]
      %v2605 = vld [vmem:[%s1213 + $0x4f] sm:$0xff]
      %v2606 = vld [vmem:[%s1213 + $0x67] sm:$0xff]
      %v2607 = vld [vmem:[%s1213 + $0x6f] sm:$0xff]
      %v2608 = vld [vmem:[%s1213 + $0x87] sm:$0xff]
      %v2609 = vld [vmem:[%s1213 + $0x8f] sm:$0xff]
      %v2610 = vld [vmem:[%s1213 + $0xa7] sm:$0xff]
      %v2611 = vld [vmem:[%s1213 + $0xaf] sm:$0xff]
      %v2612 = vld [vmem:[%s1213 + $0xc7] sm:$0xff]
      %v2613 = vld [vmem:[%s1213 + $0xcf] sm:$0xff]
      %v2614 = vld [vmem:[%s1213 + $0xe7] sm:$0xff]
      %v2615 = vld [vmem:[%s1213 + $0xef] sm:$0xff]
      %v2616 = vld [vmem:[%s1213 + $0x107] sm:$0xff]
      %v2617 = vld [vmem:[%s1213 + $0x10f] sm:$0xff]
      %v2618 = vld [vmem:[%s1213 + $0x127] sm:$0xff]
      %v2619 = vld [vmem:[%s1213 + $0x12f] sm:$0xff]
      %v2620 = vld [vmem:[%s1213 + $0x147] sm:$0xff]
      %v2621 = vld [vmem:[%s1213 + $0x14f] sm:$0xff]
      %v2622 = vld [vmem:[%s1213 + $0x167] sm:$0xff]
      %v2623 = vld [vmem:[%s1213 + $0x16f] sm:$0xff]
      %v2624 = vld [vmem:[%s1213 + $0x187] sm:$0xff]
      %v2625 = vld [vmem:[%s1213 + $0x18f] sm:$0xff]
      %v2626 = vld [vmem:[%s1213 + $0x1a7] sm:$0xff]
      %v2627 = vld [vmem:[%s1213 + $0x1af] sm:$0xff]
      %v2628 = vld [vmem:[%s1213 + $0x1c7] sm:$0xff]
      %v2629 = vld [vmem:[%s1213 + $0x1cf] sm:$0xff]
      %v2630 = vld [vmem:[%s1213 + $0x1e7] sm:$0xff]
      %v2631 = vld [vmem:[%s1213 + $0x1ef] sm:$0xff]
      %v2632 = vlaneseq
      %v2633 = vshrl.u32 %v2632, 7
      %v2634 = vsub.s32 0, %v2633
      %v2635 = vrot.slane %v2291, %v2634
      %v2636 = vmul.f32 %v2600, %v2635
      %v2637 = vmul.f32 %v2601, %v2635
      %v2638 = vmul.f32 %v2602, %v2635
      %v2639 = vmul.f32 %v2603, %v2635
      %v2640 = vmul.f32 %v2604, %v2635
      %v2641 = vmul.f32 %v2605, %v2635
      %v2642 = vmul.f32 %v2606, %v2635
      %v2643 = vmul.f32 %v2607, %v2635
      %v2644 = vmul.f32 %v2608, %v2635
      %v2645 = vmul.f32 %v2609, %v2635
      %v2646 = vmul.f32 %v2610, %v2635
      %v2647 = vmul.f32 %v2611, %v2635
      %v2648 = vmul.f32 %v2612, %v2635
      %v2649 = vmul.f32 %v2613, %v2635
      %v2650 = vmul.f32 %v2614, %v2635
      %v2651 = vmul.f32 %v2615, %v2635
      %v2652 = vmul.f32 %v2616, %v2635
      %v2653 = vmul.f32 %v2617, %v2635
      %v2654 = vmul.f32 %v2618, %v2635
      %v2655 = vmul.f32 %v2619, %v2635
      %v2656 = vmul.f32 %v2620, %v2635
      %v2657 = vmul.f32 %v2621, %v2635
      %v2658 = vmul.f32 %v2622, %v2635
      %v2659 = vmul.f32 %v2623, %v2635
      %v2660 = vmul.f32 %v2624, %v2635
      %v2661 = vmul.f32 %v2625, %v2635
      %v2662 = vmul.f32 %v2626, %v2635
      %v2663 = vmul.f32 %v2627, %v2635
      %v2664 = vmul.f32 %v2628, %v2635
      %v2665 = vmul.f32 %v2629, %v2635
      %v2666 = vmul.f32 %v2630, %v2635
      %v2667 = vmul.f32 %v2631, %v2635
      %v2668 = vadd.f32 %v2568, %v2636
      %v2669 = vadd.f32 %v2569, %v2637
      %v2670 = vadd.f32 %v2570, %v2638
      %v2671 = vadd.f32 %v2571, %v2639
      %v2672 = vadd.f32 %v2572, %v2640
      %v2673 = vadd.f32 %v2573, %v2641
      %v2674 = vadd.f32 %v2574, %v2642
      %v2675 = vadd.f32 %v2575, %v2643
      %v2676 = vadd.f32 %v2576, %v2644
      %v2677 = vadd.f32 %v2577, %v2645
      %v2678 = vadd.f32 %v2578, %v2646
      %v2679 = vadd.f32 %v2579, %v2647
      %v2680 = vadd.f32 %v2580, %v2648
      %v2681 = vadd.f32 %v2581, %v2649
      %v2682 = vadd.f32 %v2582, %v2650
      %v2683 = vadd.f32 %v2583, %v2651
      %v2684 = vadd.f32 %v2584, %v2652
      %v2685 = vadd.f32 %v2585, %v2653
      %v2686 = vadd.f32 %v2586, %v2654
      %v2687 = vadd.f32 %v2587, %v2655
      %v2688 = vadd.f32 %v2588, %v2656
      %v2689 = vadd.f32 %v2589, %v2657
      %v2690 = vadd.f32 %v2590, %v2658
      %v2691 = vadd.f32 %v2591, %v2659
      %v2692 = vadd.f32 %v2592, %v2660
      %v2693 = vadd.f32 %v2593, %v2661
      %v2694 = vadd.f32 %v2594, %v2662
      %v2695 = vadd.f32 %v2595, %v2663
      %v2696 = vadd.f32 %v2596, %v2664
      %v2697 = vadd.f32 %v2597, %v2665
      %v2698 = vadd.f32 %v2598, %v2666
      %v2699 = vadd.f32 %v2599, %v2667
      %v2700 = vld [vmem:[%s1213 + $0x8] sm:$0xff]
      %v2701 = vld [vmem:[%s1213 + $0x10] sm:$0xff]
      %v2702 = vld [vmem:[%s1213 + $0x28] sm:$0xff]
      %v2703 = vld [vmem:[%s1213 + $0x30] sm:$0xff]
      %v2704 = vld [vmem:[%s1213 + $0x48] sm:$0xff]
      %v2705 = vld [vmem:[%s1213 + $0x50] sm:$0xff]
      %v2706 = vld [vmem:[%s1213 + $0x68] sm:$0xff]
      %v2707 = vld [vmem:[%s1213 + $0x70] sm:$0xff]
      %v2708 = vld [vmem:[%s1213 + $0x88] sm:$0xff]
      %v2709 = vld [vmem:[%s1213 + $0x90] sm:$0xff]
      %v2710 = vld [vmem:[%s1213 + $0xa8] sm:$0xff]
      %v2711 = vld [vmem:[%s1213 + $0xb0] sm:$0xff]
      %v2712 = vld [vmem:[%s1213 + $0xc8] sm:$0xff]
      %v2713 = vld [vmem:[%s1213 + $0xd0] sm:$0xff]
      %v2714 = vld [vmem:[%s1213 + $0xe8] sm:$0xff]
      %v2715 = vld [vmem:[%s1213 + $0xf0] sm:$0xff]
      %v2716 = vld [vmem:[%s1213 + $0x108] sm:$0xff]
      %v2717 = vld [vmem:[%s1213 + $0x110] sm:$0xff]
      %v2718 = vld [vmem:[%s1213 + $0x128] sm:$0xff]
      %v2719 = vld [vmem:[%s1213 + $0x130] sm:$0xff]
      %v2720 = vld [vmem:[%s1213 + $0x148] sm:$0xff]
      %v2721 = vld [vmem:[%s1213 + $0x150] sm:$0xff]
      %v2722 = vld [vmem:[%s1213 + $0x168] sm:$0xff]
      %v2723 = vld [vmem:[%s1213 + $0x170] sm:$0xff]
      %v2724 = vld [vmem:[%s1213 + $0x188] sm:$0xff]
      %v2725 = vld [vmem:[%s1213 + $0x190] sm:$0xff]
      %v2726 = vld [vmem:[%s1213 + $0x1a8] sm:$0xff]
      %v2727 = vld [vmem:[%s1213 + $0x1b0] sm:$0xff]
      %v2728 = vld [vmem:[%s1213 + $0x1c8] sm:$0xff]
      %v2729 = vld [vmem:[%s1213 + $0x1d0] sm:$0xff]
      %v2730 = vld [vmem:[%s1213 + $0x1e8] sm:$0xff]
      %v2731 = vld [vmem:[%s1213 + $0x1f0] sm:$0xff]
      %v2732 = vlaneseq
      %v2733 = vshrl.u32 %v2732, 7
      %v2734 = vsub.s32 1, %v2733
      %v2735 = vrot.slane %v2291, %v2734
      %v2736 = vmul.f32 %v2700, %v2735
      %v2737 = vmul.f32 %v2701, %v2735
      %v2738 = vmul.f32 %v2702, %v2735
      %v2739 = vmul.f32 %v2703, %v2735
      %v2740 = vmul.f32 %v2704, %v2735
      %v2741 = vmul.f32 %v2705, %v2735
      %v2742 = vmul.f32 %v2706, %v2735
      %v2743 = vmul.f32 %v2707, %v2735
      %v2744 = vmul.f32 %v2708, %v2735
      %v2745 = vmul.f32 %v2709, %v2735
      %v2746 = vmul.f32 %v2710, %v2735
      %v2747 = vmul.f32 %v2711, %v2735
      %v2748 = vmul.f32 %v2712, %v2735
      %v2749 = vmul.f32 %v2713, %v2735
      %v2750 = vmul.f32 %v2714, %v2735
      %v2751 = vmul.f32 %v2715, %v2735
      %v2752 = vmul.f32 %v2716, %v2735
      %v2753 = vmul.f32 %v2717, %v2735
      %v2754 = vmul.f32 %v2718, %v2735
      %v2755 = vmul.f32 %v2719, %v2735
      %v2756 = vmul.f32 %v2720, %v2735
      %v2757 = vmul.f32 %v2721, %v2735
      %v2758 = vmul.f32 %v2722, %v2735
      %v2759 = vmul.f32 %v2723, %v2735
      %v2760 = vmul.f32 %v2724, %v2735
      %v2761 = vmul.f32 %v2725, %v2735
      %v2762 = vmul.f32 %v2726, %v2735
      %v2763 = vmul.f32 %v2727, %v2735
      %v2764 = vmul.f32 %v2728, %v2735
      %v2765 = vmul.f32 %v2729, %v2735
      %v2766 = vmul.f32 %v2730, %v2735
      %v2767 = vmul.f32 %v2731, %v2735
      %v2768 = vadd.f32 %v2668, %v2736
      %v2769 = vadd.f32 %v2669, %v2737
      %v2770 = vadd.f32 %v2670, %v2738
      %v2771 = vadd.f32 %v2671, %v2739
      %v2772 = vadd.f32 %v2672, %v2740
      %v2773 = vadd.f32 %v2673, %v2741
      %v2774 = vadd.f32 %v2674, %v2742
      %v2775 = vadd.f32 %v2675, %v2743
      %v2776 = vadd.f32 %v2676, %v2744
      %v2777 = vadd.f32 %v2677, %v2745
      %v2778 = vadd.f32 %v2678, %v2746
      %v2779 = vadd.f32 %v2679, %v2747
      %v2780 = vadd.f32 %v2680, %v2748
      %v2781 = vadd.f32 %v2681, %v2749
      %v2782 = vadd.f32 %v2682, %v2750
      %v2783 = vadd.f32 %v2683, %v2751
      %v2784 = vadd.f32 %v2684, %v2752
      %v2785 = vadd.f32 %v2685, %v2753
      %v2786 = vadd.f32 %v2686, %v2754
      %v2787 = vadd.f32 %v2687, %v2755
      %v2788 = vadd.f32 %v2688, %v2756
      %v2789 = vadd.f32 %v2689, %v2757
      %v2790 = vadd.f32 %v2690, %v2758
      %v2791 = vadd.f32 %v2691, %v2759
      %v2792 = vadd.f32 %v2692, %v2760
      %v2793 = vadd.f32 %v2693, %v2761
      %v2794 = vadd.f32 %v2694, %v2762
      %v2795 = vadd.f32 %v2695, %v2763
      %v2796 = vadd.f32 %v2696, %v2764
      %v2797 = vadd.f32 %v2697, %v2765
      %v2798 = vadd.f32 %v2698, %v2766
      %v2799 = vadd.f32 %v2699, %v2767
      %v2800 = vld [vmem:[%s1213 + $0x9] sm:$0xff]
      %v2801 = vld [vmem:[%s1213 + $0x11] sm:$0xff]
      %v2802 = vld [vmem:[%s1213 + $0x29] sm:$0xff]
      %v2803 = vld [vmem:[%s1213 + $0x31] sm:$0xff]
      %v2804 = vld [vmem:[%s1213 + $0x49] sm:$0xff]
      %v2805 = vld [vmem:[%s1213 + $0x51] sm:$0xff]
      %v2806 = vld [vmem:[%s1213 + $0x69] sm:$0xff]
      %v2807 = vld [vmem:[%s1213 + $0x71] sm:$0xff]
      %v2808 = vld [vmem:[%s1213 + $0x89] sm:$0xff]
      %v2809 = vld [vmem:[%s1213 + $0x91] sm:$0xff]
      %v2810 = vld [vmem:[%s1213 + $0xa9] sm:$0xff]
      %v2811 = vld [vmem:[%s1213 + $0xb1] sm:$0xff]
      %v2812 = vld [vmem:[%s1213 + $0xc9] sm:$0xff]
      %v2813 = vld [vmem:[%s1213 + $0xd1] sm:$0xff]
      %v2814 = vld [vmem:[%s1213 + $0xe9] sm:$0xff]
      %v2815 = vld [vmem:[%s1213 + $0xf1] sm:$0xff]
      %v2816 = vld [vmem:[%s1213 + $0x109] sm:$0xff]
      %v2817 = vld [vmem:[%s1213 + $0x111] sm:$0xff]
      %v2818 = vld [vmem:[%s1213 + $0x129] sm:$0xff]
      %v2819 = vld [vmem:[%s1213 + $0x131] sm:$0xff]
      %v2820 = vld [vmem:[%s1213 + $0x149] sm:$0xff]
      %v2821 = vld [vmem:[%s1213 + $0x151] sm:$0xff]
      %v2822 = vld [vmem:[%s1213 + $0x169] sm:$0xff]
      %v2823 = vld [vmem:[%s1213 + $0x171] sm:$0xff]
      %v2824 = vld [vmem:[%s1213 + $0x189] sm:$0xff]
      %v2825 = vld [vmem:[%s1213 + $0x191] sm:$0xff]
      %v2826 = vld [vmem:[%s1213 + $0x1a9] sm:$0xff]
      %v2827 = vld [vmem:[%s1213 + $0x1b1] sm:$0xff]
      %v2828 = vld [vmem:[%s1213 + $0x1c9] sm:$0xff]
      %v2829 = vld [vmem:[%s1213 + $0x1d1] sm:$0xff]
      %v2830 = vld [vmem:[%s1213 + $0x1e9] sm:$0xff]
      %v2831 = vld [vmem:[%s1213 + $0x1f1] sm:$0xff]
      %v2832 = vlaneseq
      %v2833 = vshrl.u32 %v2832, 7
      %v2834 = vsub.s32 2, %v2833
      %v2835 = vrot.slane %v2291, %v2834
      %v2836 = vmul.f32 %v2800, %v2835
      %v2837 = vmul.f32 %v2801, %v2835
      %v2838 = vmul.f32 %v2802, %v2835
      %v2839 = vmul.f32 %v2803, %v2835
      %v2840 = vmul.f32 %v2804, %v2835
      %v2841 = vmul.f32 %v2805, %v2835
      %v2842 = vmul.f32 %v2806, %v2835
      %v2843 = vmul.f32 %v2807, %v2835
      %v2844 = vmul.f32 %v2808, %v2835
      %v2845 = vmul.f32 %v2809, %v2835
      %v2846 = vmul.f32 %v2810, %v2835
      %v2847 = vmul.f32 %v2811, %v2835
      %v2848 = vmul.f32 %v2812, %v2835
      %v2849 = vmul.f32 %v2813, %v2835
      %v2850 = vmul.f32 %v2814, %v2835
      %v2851 = vmul.f32 %v2815, %v2835
      %v2852 = vmul.f32 %v2816, %v2835
      %v2853 = vmul.f32 %v2817, %v2835
      %v2854 = vmul.f32 %v2818, %v2835
      %v2855 = vmul.f32 %v2819, %v2835
      %v2856 = vmul.f32 %v2820, %v2835
      %v2857 = vmul.f32 %v2821, %v2835
      %v2858 = vmul.f32 %v2822, %v2835
      %v2859 = vmul.f32 %v2823, %v2835
      %v2860 = vmul.f32 %v2824, %v2835
      %v2861 = vmul.f32 %v2825, %v2835
      %v2862 = vmul.f32 %v2826, %v2835
      %v2863 = vmul.f32 %v2827, %v2835
      %v2864 = vmul.f32 %v2828, %v2835
      %v2865 = vmul.f32 %v2829, %v2835
      %v2866 = vmul.f32 %v2830, %v2835
      %v2867 = vmul.f32 %v2831, %v2835
      %v2868 = vadd.f32 %v2768, %v2836
      %v2869 = vadd.f32 %v2769, %v2837
      %v2870 = vadd.f32 %v2770, %v2838
      %v2871 = vadd.f32 %v2771, %v2839
      %v2872 = vadd.f32 %v2772, %v2840
      %v2873 = vadd.f32 %v2773, %v2841
      %v2874 = vadd.f32 %v2774, %v2842
      %v2875 = vadd.f32 %v2775, %v2843
      %v2876 = vadd.f32 %v2776, %v2844
      %v2877 = vadd.f32 %v2777, %v2845
      %v2878 = vadd.f32 %v2778, %v2846
      %v2879 = vadd.f32 %v2779, %v2847
      %v2880 = vadd.f32 %v2780, %v2848
      %v2881 = vadd.f32 %v2781, %v2849
      %v2882 = vadd.f32 %v2782, %v2850
      %v2883 = vadd.f32 %v2783, %v2851
      %v2884 = vadd.f32 %v2784, %v2852
      %v2885 = vadd.f32 %v2785, %v2853
      %v2886 = vadd.f32 %v2786, %v2854
      %v2887 = vadd.f32 %v2787, %v2855
      %v2888 = vadd.f32 %v2788, %v2856
      %v2889 = vadd.f32 %v2789, %v2857
      %v2890 = vadd.f32 %v2790, %v2858
      %v2891 = vadd.f32 %v2791, %v2859
      %v2892 = vadd.f32 %v2792, %v2860
      %v2893 = vadd.f32 %v2793, %v2861
      %v2894 = vadd.f32 %v2794, %v2862
      %v2895 = vadd.f32 %v2795, %v2863
      %v2896 = vadd.f32 %v2796, %v2864
      %v2897 = vadd.f32 %v2797, %v2865
      %v2898 = vadd.f32 %v2798, %v2866
      %v2899 = vadd.f32 %v2799, %v2867
      %s2900 = scalar_lea.vmem [#allocation3], 64
      %v2901 = vld [vmem:[%s2900 + $0x7] sm:$0xff]
      %v2902 = vld [vmem:[%s2900 + $0xf] sm:$0xff]
      %v2903 = vld [vmem:[%s2900 + $0x27] sm:$0xff]
      %v2904 = vld [vmem:[%s2900 + $0x2f] sm:$0xff]
      %v2905 = vld [vmem:[%s2900 + $0x47] sm:$0xff]
      %v2906 = vld [vmem:[%s2900 + $0x4f] sm:$0xff]
      %v2907 = vld [vmem:[%s2900 + $0x67] sm:$0xff]
      %v2908 = vld [vmem:[%s2900 + $0x6f] sm:$0xff]
      %v2909 = vld [vmem:[%s2900 + $0x87] sm:$0xff]
      %v2910 = vld [vmem:[%s2900 + $0x8f] sm:$0xff]
      %v2911 = vld [vmem:[%s2900 + $0xa7] sm:$0xff]
      %v2912 = vld [vmem:[%s2900 + $0xaf] sm:$0xff]
      %v2913 = vld [vmem:[%s2900 + $0xc7] sm:$0xff]
      %v2914 = vld [vmem:[%s2900 + $0xcf] sm:$0xff]
      %v2915 = vld [vmem:[%s2900 + $0xe7] sm:$0xff]
      %v2916 = vld [vmem:[%s2900 + $0xef] sm:$0xff]
      %v2917 = vld [vmem:[%s2900 + $0x107] sm:$0xff]
      %v2918 = vld [vmem:[%s2900 + $0x10f] sm:$0xff]
      %v2919 = vld [vmem:[%s2900 + $0x127] sm:$0xff]
      %v2920 = vld [vmem:[%s2900 + $0x12f] sm:$0xff]
      %v2921 = vld [vmem:[%s2900 + $0x147] sm:$0xff]
      %v2922 = vld [vmem:[%s2900 + $0x14f] sm:$0xff]
      %v2923 = vld [vmem:[%s2900 + $0x167] sm:$0xff]
      %v2924 = vld [vmem:[%s2900 + $0x16f] sm:$0xff]
      %v2925 = vld [vmem:[%s2900 + $0x187] sm:$0xff]
      %v2926 = vld [vmem:[%s2900 + $0x18f] sm:$0xff]
      %v2927 = vld [vmem:[%s2900 + $0x1a7] sm:$0xff]
      %v2928 = vld [vmem:[%s2900 + $0x1af] sm:$0xff]
      %v2929 = vld [vmem:[%s2900 + $0x1c7] sm:$0xff]
      %v2930 = vld [vmem:[%s2900 + $0x1cf] sm:$0xff]
      %v2931 = vld [vmem:[%s2900 + $0x1e7] sm:$0xff]
      %v2932 = vld [vmem:[%s2900 + $0x1ef] sm:$0xff]
      %v2933 = vlaneseq
      %v2934 = vshrl.u32 %v2933, 7
      %v2935 = vsub.s32 0, %v2934
      %v2936 = vrot.slane %v2292, %v2935
      %v2937 = vmul.f32 %v2901, %v2936
      %v2938 = vmul.f32 %v2902, %v2936
      %v2939 = vmul.f32 %v2903, %v2936
      %v2940 = vmul.f32 %v2904, %v2936
      %v2941 = vmul.f32 %v2905, %v2936
      %v2942 = vmul.f32 %v2906, %v2936
      %v2943 = vmul.f32 %v2907, %v2936
      %v2944 = vmul.f32 %v2908, %v2936
      %v2945 = vmul.f32 %v2909, %v2936
      %v2946 = vmul.f32 %v2910, %v2936
      %v2947 = vmul.f32 %v2911, %v2936
      %v2948 = vmul.f32 %v2912, %v2936
      %v2949 = vmul.f32 %v2913, %v2936
      %v2950 = vmul.f32 %v2914, %v2936
      %v2951 = vmul.f32 %v2915, %v2936
      %v2952 = vmul.f32 %v2916, %v2936
      %v2953 = vmul.f32 %v2917, %v2936
      %v2954 = vmul.f32 %v2918, %v2936
      %v2955 = vmul.f32 %v2919, %v2936
      %v2956 = vmul.f32 %v2920, %v2936
      %v2957 = vmul.f32 %v2921, %v2936
      %v2958 = vmul.f32 %v2922, %v2936
      %v2959 = vmul.f32 %v2923, %v2936
      %v2960 = vmul.f32 %v2924, %v2936
      %v2961 = vmul.f32 %v2925, %v2936
      %v2962 = vmul.f32 %v2926, %v2936
      %v2963 = vmul.f32 %v2927, %v2936
      %v2964 = vmul.f32 %v2928, %v2936
      %v2965 = vmul.f32 %v2929, %v2936
      %v2966 = vmul.f32 %v2930, %v2936
      %v2967 = vmul.f32 %v2931, %v2936
      %v2968 = vmul.f32 %v2932, %v2936
      %v2969 = vadd.f32 %v2868, %v2937
      %v2970 = vadd.f32 %v2869, %v2938
      %v2971 = vadd.f32 %v2870, %v2939
      %v2972 = vadd.f32 %v2871, %v2940
      %v2973 = vadd.f32 %v2872, %v2941
      %v2974 = vadd.f32 %v2873, %v2942
      %v2975 = vadd.f32 %v2874, %v2943
      %v2976 = vadd.f32 %v2875, %v2944
      %v2977 = vadd.f32 %v2876, %v2945
      %v2978 = vadd.f32 %v2877, %v2946
      %v2979 = vadd.f32 %v2878, %v2947
      %v2980 = vadd.f32 %v2879, %v2948
      %v2981 = vadd.f32 %v2880, %v2949
      %v2982 = vadd.f32 %v2881, %v2950
      %v2983 = vadd.f32 %v2882, %v2951
      %v2984 = vadd.f32 %v2883, %v2952
      %v2985 = vadd.f32 %v2884, %v2953
      %v2986 = vadd.f32 %v2885, %v2954
      %v2987 = vadd.f32 %v2886, %v2955
      %v2988 = vadd.f32 %v2887, %v2956
      %v2989 = vadd.f32 %v2888, %v2957
      %v2990 = vadd.f32 %v2889, %v2958
      %v2991 = vadd.f32 %v2890, %v2959
      %v2992 = vadd.f32 %v2891, %v2960
      %v2993 = vadd.f32 %v2892, %v2961
      %v2994 = vadd.f32 %v2893, %v2962
      %v2995 = vadd.f32 %v2894, %v2963
      %v2996 = vadd.f32 %v2895, %v2964
      %v2997 = vadd.f32 %v2896, %v2965
      %v2998 = vadd.f32 %v2897, %v2966
      %v2999 = vadd.f32 %v2898, %v2967
      %v3000 = vadd.f32 %v2899, %v2968
      %v3001 = vld [vmem:[%s2900 + $0x8] sm:$0xff]
      %v3002 = vld [vmem:[%s2900 + $0x10] sm:$0xff]
      %v3003 = vld [vmem:[%s2900 + $0x28] sm:$0xff]
      %v3004 = vld [vmem:[%s2900 + $0x30] sm:$0xff]
      %v3005 = vld [vmem:[%s2900 + $0x48] sm:$0xff]
      %v3006 = vld [vmem:[%s2900 + $0x50] sm:$0xff]
      %v3007 = vld [vmem:[%s2900 + $0x68] sm:$0xff]
      %v3008 = vld [vmem:[%s2900 + $0x70] sm:$0xff]
      %v3009 = vld [vmem:[%s2900 + $0x88] sm:$0xff]
      %v3010 = vld [vmem:[%s2900 + $0x90] sm:$0xff]
      %v3011 = vld [vmem:[%s2900 + $0xa8] sm:$0xff]
      %v3012 = vld [vmem:[%s2900 + $0xb0] sm:$0xff]
      %v3013 = vld [vmem:[%s2900 + $0xc8] sm:$0xff]
      %v3014 = vld [vmem:[%s2900 + $0xd0] sm:$0xff]
      %v3015 = vld [vmem:[%s2900 + $0xe8] sm:$0xff]
      %v3016 = vld [vmem:[%s2900 + $0xf0] sm:$0xff]
      %v3017 = vld [vmem:[%s2900 + $0x108] sm:$0xff]
      %v3018 = vld [vmem:[%s2900 + $0x110] sm:$0xff]
      %v3019 = vld [vmem:[%s2900 + $0x128] sm:$0xff]
      %v3020 = vld [vmem:[%s2900 + $0x130] sm:$0xff]
      %v3021 = vld [vmem:[%s2900 + $0x148] sm:$0xff]
      %v3022 = vld [vmem:[%s2900 + $0x150] sm:$0xff]
      %v3023 = vld [vmem:[%s2900 + $0x168] sm:$0xff]
      %v3024 = vld [vmem:[%s2900 + $0x170] sm:$0xff]
      %v3025 = vld [vmem:[%s2900 + $0x188] sm:$0xff]
      %v3026 = vld [vmem:[%s2900 + $0x190] sm:$0xff]
      %v3027 = vld [vmem:[%s2900 + $0x1a8] sm:$0xff]
      %v3028 = vld [vmem:[%s2900 + $0x1b0] sm:$0xff]
      %v3029 = vld [vmem:[%s2900 + $0x1c8] sm:$0xff]
      %v3030 = vld [vmem:[%s2900 + $0x1d0] sm:$0xff]
      %v3031 = vld [vmem:[%s2900 + $0x1e8] sm:$0xff]
      %v3032 = vld [vmem:[%s2900 + $0x1f0] sm:$0xff]
      %v3033 = vlaneseq
      %v3034 = vshrl.u32 %v3033, 7
      %v3035 = vsub.s32 1, %v3034
      %v3036 = vrot.slane %v2292, %v3035
      %v3037 = vmul.f32 %v3001, %v3036
      %v3038 = vmul.f32 %v3002, %v3036
      %v3039 = vmul.f32 %v3003, %v3036
      %v3040 = vmul.f32 %v3004, %v3036
      %v3041 = vmul.f32 %v3005, %v3036
      %v3042 = vmul.f32 %v3006, %v3036
      %v3043 = vmul.f32 %v3007, %v3036
      %v3044 = vmul.f32 %v3008, %v3036
      %v3045 = vmul.f32 %v3009, %v3036
      %v3046 = vmul.f32 %v3010, %v3036
      %v3047 = vmul.f32 %v3011, %v3036
      %v3048 = vmul.f32 %v3012, %v3036
      %v3049 = vmul.f32 %v3013, %v3036
      %v3050 = vmul.f32 %v3014, %v3036
      %v3051 = vmul.f32 %v3015, %v3036
      %v3052 = vmul.f32 %v3016, %v3036
      %v3053 = vmul.f32 %v3017, %v3036
      %v3054 = vmul.f32 %v3018, %v3036
      %v3055 = vmul.f32 %v3019, %v3036
      %v3056 = vmul.f32 %v3020, %v3036
      %v3057 = vmul.f32 %v3021, %v3036
      %v3058 = vmul.f32 %v3022, %v3036
      %v3059 = vmul.f32 %v3023, %v3036
      %v3060 = vmul.f32 %v3024, %v3036
      %v3061 = vmul.f32 %v3025, %v3036
      %v3062 = vmul.f32 %v3026, %v3036
      %v3063 = vmul.f32 %v3027, %v3036
      %v3064 = vmul.f32 %v3028, %v3036
      %v3065 = vmul.f32 %v3029, %v3036
      %v3066 = vmul.f32 %v3030, %v3036
      %v3067 = vmul.f32 %v3031, %v3036
      %v3068 = vmul.f32 %v3032, %v3036
      %v3069 = vadd.f32 %v2969, %v3037
      %v3070 = vadd.f32 %v2970, %v3038
      %v3071 = vadd.f32 %v2971, %v3039
      %v3072 = vadd.f32 %v2972, %v3040
      %v3073 = vadd.f32 %v2973, %v3041
      %v3074 = vadd.f32 %v2974, %v3042
      %v3075 = vadd.f32 %v2975, %v3043
      %v3076 = vadd.f32 %v2976, %v3044
      %v3077 = vadd.f32 %v2977, %v3045
      %v3078 = vadd.f32 %v2978, %v3046
      %v3079 = vadd.f32 %v2979, %v3047
      %v3080 = vadd.f32 %v2980, %v3048
      %v3081 = vadd.f32 %v2981, %v3049
      %v3082 = vadd.f32 %v2982, %v3050
      %v3083 = vadd.f32 %v2983, %v3051
      %v3084 = vadd.f32 %v2984, %v3052
      %v3085 = vadd.f32 %v2985, %v3053
      %v3086 = vadd.f32 %v2986, %v3054
      %v3087 = vadd.f32 %v2987, %v3055
      %v3088 = vadd.f32 %v2988, %v3056
      %v3089 = vadd.f32 %v2989, %v3057
      %v3090 = vadd.f32 %v2990, %v3058
      %v3091 = vadd.f32 %v2991, %v3059
      %v3092 = vadd.f32 %v2992, %v3060
      %v3093 = vadd.f32 %v2993, %v3061
      %v3094 = vadd.f32 %v2994, %v3062
      %v3095 = vadd.f32 %v2995, %v3063
      %v3096 = vadd.f32 %v2996, %v3064
      %v3097 = vadd.f32 %v2997, %v3065
      %v3098 = vadd.f32 %v2998, %v3066
      %v3099 = vadd.f32 %v2999, %v3067
      %v3100 = vadd.f32 %v3000, %v3068
      %v3101 = vld [vmem:[%s2900 + $0x9] sm:$0xff]
      %v3102 = vld [vmem:[%s2900 + $0x11] sm:$0xff]
      %v3103 = vld [vmem:[%s2900 + $0x29] sm:$0xff]
      %v3104 = vld [vmem:[%s2900 + $0x31] sm:$0xff]
      %v3105 = vld [vmem:[%s2900 + $0x49] sm:$0xff]
      %v3106 = vld [vmem:[%s2900 + $0x51] sm:$0xff]
      %v3107 = vld [vmem:[%s2900 + $0x69] sm:$0xff]
      %v3108 = vld [vmem:[%s2900 + $0x71] sm:$0xff]
      %v3109 = vld [vmem:[%s2900 + $0x89] sm:$0xff]
      %v3110 = vld [vmem:[%s2900 + $0x91] sm:$0xff]
      %v3111 = vld [vmem:[%s2900 + $0xa9] sm:$0xff]
      %v3112 = vld [vmem:[%s2900 + $0xb1] sm:$0xff]
      %v3113 = vld [vmem:[%s2900 + $0xc9] sm:$0xff]
      %v3114 = vld [vmem:[%s2900 + $0xd1] sm:$0xff]
      %v3115 = vld [vmem:[%s2900 + $0xe9] sm:$0xff]
      %v3116 = vld [vmem:[%s2900 + $0xf1] sm:$0xff]
      %v3117 = vld [vmem:[%s2900 + $0x109] sm:$0xff]
      %v3118 = vld [vmem:[%s2900 + $0x111] sm:$0xff]
      %v3119 = vld [vmem:[%s2900 + $0x129] sm:$0xff]
      %v3120 = vld [vmem:[%s2900 + $0x131] sm:$0xff]
      %v3121 = vld [vmem:[%s2900 + $0x149] sm:$0xff]
      %v3122 = vld [vmem:[%s2900 + $0x151] sm:$0xff]
      %v3123 = vld [vmem:[%s2900 + $0x169] sm:$0xff]
      %v3124 = vld [vmem:[%s2900 + $0x171] sm:$0xff]
      %v3125 = vld [vmem:[%s2900 + $0x189] sm:$0xff]
      %v3126 = vld [vmem:[%s2900 + $0x191] sm:$0xff]
      %v3127 = vld [vmem:[%s2900 + $0x1a9] sm:$0xff]
      %v3128 = vld [vmem:[%s2900 + $0x1b1] sm:$0xff]
      %v3129 = vld [vmem:[%s2900 + $0x1c9] sm:$0xff]
      %v3130 = vld [vmem:[%s2900 + $0x1d1] sm:$0xff]
      %v3131 = vld [vmem:[%s2900 + $0x1e9] sm:$0xff]
      %v3132 = vld [vmem:[%s2900 + $0x1f1] sm:$0xff]
      %v3133 = vlaneseq
      %v3134 = vshrl.u32 %v3133, 7
      %v3135 = vsub.s32 2, %v3134
      %v3136 = vrot.slane %v2292, %v3135
      %v3137 = vmul.f32 %v3101, %v3136
      %v3138 = vmul.f32 %v3102, %v3136
      %v3139 = vmul.f32 %v3103, %v3136
      %v3140 = vmul.f32 %v3104, %v3136
      %v3141 = vmul.f32 %v3105, %v3136
      %v3142 = vmul.f32 %v3106, %v3136
      %v3143 = vmul.f32 %v3107, %v3136
      %v3144 = vmul.f32 %v3108, %v3136
      %v3145 = vmul.f32 %v3109, %v3136
      %v3146 = vmul.f32 %v3110, %v3136
      %v3147 = vmul.f32 %v3111, %v3136
      %v3148 = vmul.f32 %v3112, %v3136
      %v3149 = vmul.f32 %v3113, %v3136
      %v3150 = vmul.f32 %v3114, %v3136
      %v3151 = vmul.f32 %v3115, %v3136
      %v3152 = vmul.f32 %v3116, %v3136
      %v3153 = vmul.f32 %v3117, %v3136
      %v3154 = vmul.f32 %v3118, %v3136
      %v3155 = vmul.f32 %v3119, %v3136
      %v3156 = vmul.f32 %v3120, %v3136
      %v3157 = vmul.f32 %v3121, %v3136
      %v3158 = vmul.f32 %v3122, %v3136
      %v3159 = vmul.f32 %v3123, %v3136
      %v3160 = vmul.f32 %v3124, %v3136
      %v3161 = vmul.f32 %v3125, %v3136
      %v3162 = vmul.f32 %v3126, %v3136
      %v3163 = vmul.f32 %v3127, %v3136
      %v3164 = vmul.f32 %v3128, %v3136
      %v3165 = vmul.f32 %v3129, %v3136
      %v3166 = vmul.f32 %v3130, %v3136
      %v3167 = vmul.f32 %v3131, %v3136
      %v3168 = vmul.f32 %v3132, %v3136
      %v3169 = vadd.f32 %v3069, %v3137
      %v3170 = vadd.f32 %v3070, %v3138
      %v3171 = vadd.f32 %v3071, %v3139
      %v3172 = vadd.f32 %v3072, %v3140
      %v3173 = vadd.f32 %v3073, %v3141
      %v3174 = vadd.f32 %v3074, %v3142
      %v3175 = vadd.f32 %v3075, %v3143
      %v3176 = vadd.f32 %v3076, %v3144
      %v3177 = vadd.f32 %v3077, %v3145
      %v3178 = vadd.f32 %v3078, %v3146
      %v3179 = vadd.f32 %v3079, %v3147
      %v3180 = vadd.f32 %v3080, %v3148
      %v3181 = vadd.f32 %v3081, %v3149
      %v3182 = vadd.f32 %v3082, %v3150
      %v3183 = vadd.f32 %v3083, %v3151
      %v3184 = vadd.f32 %v3084, %v3152
      %v3185 = vadd.f32 %v3085, %v3153
      %v3186 = vadd.f32 %v3086, %v3154
      %v3187 = vadd.f32 %v3087, %v3155
      %v3188 = vadd.f32 %v3088, %v3156
      %v3189 = vadd.f32 %v3089, %v3157
      %v3190 = vadd.f32 %v3090, %v3158
      %v3191 = vadd.f32 %v3091, %v3159
      %v3192 = vadd.f32 %v3092, %v3160
      %v3193 = vadd.f32 %v3093, %v3161
      %v3194 = vadd.f32 %v3094, %v3162
      %v3195 = vadd.f32 %v3095, %v3163
      %v3196 = vadd.f32 %v3096, %v3164
      %v3197 = vadd.f32 %v3097, %v3165
      %v3198 = vadd.f32 %v3098, %v3166
      %v3199 = vadd.f32 %v3099, %v3167
      %v3200 = vadd.f32 %v3100, %v3168
      %v3201 = vmul.f32 %v2258, %v3169
      %v3202 = vmul.f32 %v2259, %v3170
      %v3203 = vmul.f32 %v2260, %v3171
      %v3204 = vmul.f32 %v2261, %v3172
      %v3205 = vmul.f32 %v2262, %v3173
      %v3206 = vmul.f32 %v2263, %v3174
      %v3207 = vmul.f32 %v2264, %v3175
      %v3208 = vmul.f32 %v2265, %v3176
      %v3209 = vmul.f32 %v2266, %v3177
      %v3210 = vmul.f32 %v2267, %v3178
      %v3211 = vmul.f32 %v2268, %v3179
      %v3212 = vmul.f32 %v2269, %v3180
      %v3213 = vmul.f32 %v2270, %v3181
      %v3214 = vmul.f32 %v2271, %v3182
      %v3215 = vmul.f32 %v2272, %v3183
      %v3216 = vmul.f32 %v2273, %v3184
      %v3217 = vmul.f32 %v2274, %v3185
      %v3218 = vmul.f32 %v2275, %v3186
      %v3219 = vmul.f32 %v2276, %v3187
      %v3220 = vmul.f32 %v2277, %v3188
      %v3221 = vmul.f32 %v2278, %v3189
      %v3222 = vmul.f32 %v2279, %v3190
      %v3223 = vmul.f32 %v2280, %v3191
      %v3224 = vmul.f32 %v2281, %v3192
      %v3225 = vmul.f32 %v2282, %v3193
      %v3226 = vmul.f32 %v2283, %v3194
      %v3227 = vmul.f32 %v2284, %v3195
      %v3228 = vmul.f32 %v2285, %v3196
      %v3229 = vmul.f32 %v2286, %v3197
      %v3230 = vmul.f32 %v2287, %v3198
      %v3231 = vmul.f32 %v2288, %v3199
      %v3232 = vmul.f32 %v2289, %v3200
      %v3233 = vpack.c.bf16 %v3202, %v3201
      %v3234 = vpack.c.bf16 %v3204, %v3203
      %v3235 = vpack.c.bf16 %v3206, %v3205
      %v3236 = vpack.c.bf16 %v3208, %v3207
      %v3237 = vpack.c.bf16 %v3210, %v3209
      %v3238 = vpack.c.bf16 %v3212, %v3211
      %v3239 = vpack.c.bf16 %v3214, %v3213
      %v3240 = vpack.c.bf16 %v3216, %v3215
      %v3241 = vpack.c.bf16 %v3218, %v3217
      %v3242 = vpack.c.bf16 %v3220, %v3219
      %v3243 = vpack.c.bf16 %v3222, %v3221
      %v3244 = vpack.c.bf16 %v3224, %v3223
      %v3245 = vpack.c.bf16 %v3226, %v3225
      %v3246 = vpack.c.bf16 %v3228, %v3227
      %v3247 = vpack.c.bf16 %v3230, %v3229
      %v3248 = vpack.c.bf16 %v3232, %v3231
      %v3249 = vld [vmem:[%s9] sm:$0xf]
      %v3250 = vld [vmem:[%s9 + $0x4] sm:$0xf]
      %v3251 = vld [vmem:[%s9 + $0x8] sm:$0xf]
      %v3252 = vld [vmem:[%s9 + $0xc] sm:$0xf]
      %v3253 = vld [vmem:[%s9 + $0x10] sm:$0xf]
      %v3254 = vld [vmem:[%s9 + $0x14] sm:$0xf]
      %v3255 = vld [vmem:[%s9 + $0x18] sm:$0xf]
      %v3256 = vld [vmem:[%s9 + $0x1c] sm:$0xf]
      %v3257 = vld [vmem:[%s9 + $0x20] sm:$0xf]
      %v3258 = vld [vmem:[%s9 + $0x24] sm:$0xf]
      %v3259 = vld [vmem:[%s9 + $0x28] sm:$0xf]
      %v3260 = vld [vmem:[%s9 + $0x2c] sm:$0xf]
      %v3261 = vld [vmem:[%s9 + $0x30] sm:$0xf]
      %v3262 = vld [vmem:[%s9 + $0x34] sm:$0xf]
      %v3263 = vld [vmem:[%s9 + $0x38] sm:$0xf]
      %v3264 = vld [vmem:[%s9 + $0x3c] sm:$0xf]
      %v3265 = vld [vmem:[%s10] sm:$0x1]
      %v3267 = vlaneseq
      %v3268 = vshrl.u32 %v3267, 7
      %v3269 = vsub.s32 0, %v3268
      %v3270 = vrot.slane %v3265, %v3269
      %v3288 = vunpack.c.l.b16 %v3249
      %v3289 = vunpack.c.l.b16 %v3250
      %v3290 = vunpack.c.l.b16 %v3251
      %v3291 = vunpack.c.l.b16 %v3252
      %v3292 = vunpack.c.l.b16 %v3253
      %v3293 = vunpack.c.l.b16 %v3254
      %v3294 = vunpack.c.l.b16 %v3255
      %v3295 = vunpack.c.l.b16 %v3256
      %v3296 = vunpack.c.l.b16 %v3257
      %v3297 = vunpack.c.l.b16 %v3258
      %v3298 = vunpack.c.l.b16 %v3259
      %v3299 = vunpack.c.l.b16 %v3260
      %v3300 = vunpack.c.l.b16 %v3261
      %v3301 = vunpack.c.l.b16 %v3262
      %v3302 = vunpack.c.l.b16 %v3263
      %v3303 = vunpack.c.l.b16 %v3264
      %v3304 = vpack.c.b16 %v3289, %v3288
      %v3305 = vpack.c.b16 %v3291, %v3290
      %v3306 = vpack.c.b16 %v3293, %v3292
      %v3307 = vpack.c.b16 %v3295, %v3294
      %v3308 = vpack.c.b16 %v3297, %v3296
      %v3309 = vpack.c.b16 %v3299, %v3298
      %v3310 = vpack.c.b16 %v3301, %v3300
      %v3311 = vpack.c.b16 %v3303, %v3302
      %3320 = vmatprep.subr.bf16.mxu0 0
      %3321 = vmatpush1.bf16.msra.mxu0 %v3311
      %3322 = vmatprep.subr.bf16.mxu0 0
      %3323 = vmatpush1.bf16.msra.mxu0 %v3310
      %3324 = vmatprep.subr.bf16.mxu0 0
      %3325 = vmatpush1.bf16.msra.mxu0 %v3309
      %3326 = vmatprep.subr.bf16.mxu0 0
      %3327 = vmatpush1.bf16.msra.mxu0 %v3308
      %3328 = vmatprep.subr.bf16.mxu0 0
      %3329 = vmatpush1.bf16.msra.mxu0 %v3307
      %3330 = vmatprep.subr.bf16.mxu0 0
      %3331 = vmatpush1.bf16.msra.mxu0 %v3306
      %3332 = vmatprep.subr.bf16.mxu0 0
      %3333 = vmatpush1.bf16.msra.mxu0 %v3305
      %3334 = vmatprep.subr.bf16.mxu0 0
      %3335 = vmatpush1.bf16.msra.mxu0 %v3304
      %3336 = vmatprep.subr.bf16.mxu0 0
      %3337 = vmatpush2.bf16.msra.mxu0 0
      %3338 = vmatprep.subr.bf16.mxu0 0
      %3339 = vmatpush2.bf16.msra.mxu0 0
      %3340 = vmatprep.subr.bf16.mxu0 0
      %3341 = vmatpush2.bf16.msra.mxu0 0
      %3342 = vmatprep.subr.bf16.mxu0 0
      %3343 = vmatpush2.bf16.msra.mxu0 0
      %3344 = vmatprep.subr.bf16.mxu0 0
      %3345 = vmatpush2.bf16.msra.mxu0 0
      %3346 = vmatprep.subr.bf16.mxu0 0
      %3347 = vmatpush2.bf16.msra.mxu0 0
      %3348 = vmatprep.subr.bf16.mxu0 0
      %3349 = vmatpush2.bf16.msra.mxu0 0
      %3350 = vmatprep.subr.bf16.mxu0 0
      %3351 = vmatpush2.bf16.msra.mxu0 0
      %3352 = vmatprep.mubr.bf16.mxu0 0
      %3353 = vmatmul.mubr.bf16.gmra.mxu0 %v3233
      %v3354 = vpop.f32.mrf.mxu0
      %v3355 = vadd.f32 %v3270, %v3354
      %v3356 = vpop.f32.mrf.mxu0
      %v3357 = vpop.f32.mrf.mxu0
      %v3358 = vadd.f32 %v3270, %v3357
      %v3359 = vpop.f32.mrf.mxu0
      %3360 = vmatprep.mubr.bf16.mxu0 0
      %3361 = vmatmul.mubr.bf16.gmra.mxu0 %v3234
      %v3362 = vpop.f32.mrf.mxu0
      %v3363 = vadd.f32 %v3270, %v3362
      %v3364 = vpop.f32.mrf.mxu0
      %v3365 = vpop.f32.mrf.mxu0
      %v3366 = vadd.f32 %v3270, %v3365
      %v3367 = vpop.f32.mrf.mxu0
      %3368 = vmatprep.mubr.bf16.mxu0 0
      %3369 = vmatmul.mubr.bf16.gmra.mxu0 %v3235
      %v3370 = vpop.f32.mrf.mxu0
      %v3371 = vadd.f32 %v3270, %v3370
      %v3372 = vpop.f32.mrf.mxu0
      %v3373 = vpop.f32.mrf.mxu0
      %v3374 = vadd.f32 %v3270, %v3373
      %v3375 = vpop.f32.mrf.mxu0
      %3376 = vmatprep.mubr.bf16.mxu0 0
      %3377 = vmatmul.mubr.bf16.gmra.mxu0 %v3236
      %v3378 = vpop.f32.mrf.mxu0
      %v3379 = vadd.f32 %v3270, %v3378
      %v3380 = vpop.f32.mrf.mxu0
      %v3381 = vpop.f32.mrf.mxu0
      %v3382 = vadd.f32 %v3270, %v3381
      %v3383 = vpop.f32.mrf.mxu0
      %3384 = vmatprep.mubr.bf16.mxu0 0
      %3385 = vmatmul.mubr.bf16.gmra.mxu0 %v3237
      %v3386 = vpop.f32.mrf.mxu0
      %v3387 = vadd.f32 %v3270, %v3386
      %v3388 = vpop.f32.mrf.mxu0
      %v3389 = vpop.f32.mrf.mxu0
      %v3390 = vadd.f32 %v3270, %v3389
      %v3391 = vpop.f32.mrf.mxu0
      %3392 = vmatprep.mubr.bf16.mxu0 0
      %3393 = vmatmul.mubr.bf16.gmra.mxu0 %v3238
      %v3394 = vpop.f32.mrf.mxu0
      %v3395 = vadd.f32 %v3270, %v3394
      %v3396 = vpop.f32.mrf.mxu0
      %v3397 = vpop.f32.mrf.mxu0
      %v3398 = vadd.f32 %v3270, %v3397
      %v3399 = vpop.f32.mrf.mxu0
      %3400 = vmatprep.mubr.bf16.mxu0 0
      %3401 = vmatmul.mubr.bf16.gmra.mxu0 %v3239
      %v3402 = vpop.f32.mrf.mxu0
      %v3403 = vadd.f32 %v3270, %v3402
      %v3404 = vpop.f32.mrf.mxu0
      %v3405 = vpop.f32.mrf.mxu0
      %v3406 = vadd.f32 %v3270, %v3405
      %v3407 = vpop.f32.mrf.mxu0
      %3408 = vmatprep.mubr.bf16.mxu0 0
      %3409 = vmatmul.mubr.bf16.gmra.mxu0 %v3240
      %v3410 = vpop.f32.mrf.mxu0
      %v3411 = vadd.f32 %v3270, %v3410
      %v3412 = vpop.f32.mrf.mxu0
      %v3413 = vpop.f32.mrf.mxu0
      %v3414 = vadd.f32 %v3270, %v3413
      %v3415 = vpop.f32.mrf.mxu0
      %3416 = vmatprep.mubr.bf16.mxu0 0
      %3417 = vmatmul.mubr.bf16.gmra.mxu0 %v3241
      %v3418 = vpop.f32.mrf.mxu0
      %v3419 = vadd.f32 %v3270, %v3418
      %v3420 = vpop.f32.mrf.mxu0
      %v3421 = vpop.f32.mrf.mxu0
      %v3422 = vadd.f32 %v3270, %v3421
      %v3423 = vpop.f32.mrf.mxu0
      %3424 = vmatprep.mubr.bf16.mxu0 0
      %3425 = vmatmul.mubr.bf16.gmra.mxu0 %v3242
      %v3426 = vpop.f32.mrf.mxu0
      %v3427 = vadd.f32 %v3270, %v3426
      %v3428 = vpop.f32.mrf.mxu0
      %v3429 = vpop.f32.mrf.mxu0
      %v3430 = vadd.f32 %v3270, %v3429
      %v3431 = vpop.f32.mrf.mxu0
      %3432 = vmatprep.mubr.bf16.mxu0 0
      %3433 = vmatmul.mubr.bf16.gmra.mxu0 %v3243
      %v3434 = vpop.f32.mrf.mxu0
      %v3435 = vadd.f32 %v3270, %v3434
      %v3436 = vpop.f32.mrf.mxu0
      %v3437 = vpop.f32.mrf.mxu0
      %v3438 = vadd.f32 %v3270, %v3437
      %v3439 = vpop.f32.mrf.mxu0
      %3440 = vmatprep.mubr.bf16.mxu0 0
      %3441 = vmatmul.mubr.bf16.gmra.mxu0 %v3244
      %v3442 = vpop.f32.mrf.mxu0
      %v3443 = vadd.f32 %v3270, %v3442
      %v3444 = vpop.f32.mrf.mxu0
      %v3445 = vpop.f32.mrf.mxu0
      %v3446 = vadd.f32 %v3270, %v3445
      %v3447 = vpop.f32.mrf.mxu0
      %3448 = vmatprep.mubr.bf16.mxu0 0
      %3449 = vmatmul.mubr.bf16.gmra.mxu0 %v3245
      %v3450 = vpop.f32.mrf.mxu0
      %v3451 = vadd.f32 %v3270, %v3450
      %v3452 = vpop.f32.mrf.mxu0
      %v3453 = vpop.f32.mrf.mxu0
      %v3454 = vadd.f32 %v3270, %v3453
      %v3455 = vpop.f32.mrf.mxu0
      %3456 = vmatprep.mubr.bf16.mxu0 0
      %3457 = vmatmul.mubr.bf16.gmra.mxu0 %v3246
      %v3458 = vpop.f32.mrf.mxu0
      %v3459 = vadd.f32 %v3270, %v3458
      %v3460 = vpop.f32.mrf.mxu0
      %v3461 = vpop.f32.mrf.mxu0
      %v3462 = vadd.f32 %v3270, %v3461
      %v3463 = vpop.f32.mrf.mxu0
      %3464 = vmatprep.mubr.bf16.mxu0 0
      %3465 = vmatmul.mubr.bf16.gmra.mxu0 %v3247
      %v3466 = vpop.f32.mrf.mxu0
      %v3467 = vadd.f32 %v3270, %v3466
      %v3468 = vpop.f32.mrf.mxu0
      %v3469 = vpop.f32.mrf.mxu0
      %v3470 = vadd.f32 %v3270, %v3469
      %v3471 = vpop.f32.mrf.mxu0
      %3472 = vmatprep.mubr.bf16.mxu0 0
      %3473 = vmatmul.mubr.bf16.gmra.mxu0 %v3248
      %v3474 = vpop.f32.mrf.mxu0
      %v3475 = vadd.f32 %v3270, %v3474
      %v3476 = vpop.f32.mrf.mxu0
      %v3477 = vpop.f32.mrf.mxu0
      %v3478 = vadd.f32 %v3270, %v3477
      %v3479 = vpop.f32.mrf.mxu0
      %3480 = vdwg.mxu0
      %3481 = vst [vmem:[%s553] sm:$0xff] %v3355
      %3482 = vst [vmem:[%s553 + $0x8] sm:$0xff] %v3358
      %3483 = vst [vmem:[%s553 + $0x10] sm:$0xff] %v3363
      %3484 = vst [vmem:[%s553 + $0x18] sm:$0xff] %v3366
      %3485 = vst [vmem:[%s553 + $0x20] sm:$0xff] %v3371
      %3486 = vst [vmem:[%s553 + $0x28] sm:$0xff] %v3374
      %3487 = vst [vmem:[%s553 + $0x30] sm:$0xff] %v3379
      %3488 = vst [vmem:[%s553 + $0x38] sm:$0xff] %v3382
      %3489 = vst [vmem:[%s553 + $0x40] sm:$0xff] %v3387
      %3490 = vst [vmem:[%s553 + $0x48] sm:$0xff] %v3390
      %3491 = vst [vmem:[%s553 + $0x50] sm:$0xff] %v3395
      %3492 = vst [vmem:[%s553 + $0x58] sm:$0xff] %v3398
      %3493 = vst [vmem:[%s553 + $0x60] sm:$0xff] %v3403
      %3494 = vst [vmem:[%s553 + $0x68] sm:$0xff] %v3406
      %3495 = vst [vmem:[%s553 + $0x70] sm:$0xff] %v3411
      %3496 = vst [vmem:[%s553 + $0x78] sm:$0xff] %v3414
      %3497 = vst [vmem:[%s553 + $0x80] sm:$0xff] %v3419
      %3498 = vst [vmem:[%s553 + $0x88] sm:$0xff] %v3422
      %3499 = vst [vmem:[%s553 + $0x90] sm:$0xff] %v3427
      %3500 = vst [vmem:[%s553 + $0x98] sm:$0xff] %v3430
      %3501 = vst [vmem:[%s553 + $0xa0] sm:$0xff] %v3435
      %3502 = vst [vmem:[%s553 + $0xa8] sm:$0xff] %v3438
      %3503 = vst [vmem:[%s553 + $0xb0] sm:$0xff] %v3443
      %3504 = vst [vmem:[%s553 + $0xb8] sm:$0xff] %v3446
      %3505 = vst [vmem:[%s553 + $0xc0] sm:$0xff] %v3451
      %3506 = vst [vmem:[%s553 + $0xc8] sm:$0xff] %v3454
      %3507 = vst [vmem:[%s553 + $0xd0] sm:$0xff] %v3459
      %3508 = vst [vmem:[%s553 + $0xd8] sm:$0xff] %v3462
      %3509 = vst [vmem:[%s553 + $0xe0] sm:$0xff] %v3467
      %3510 = vst [vmem:[%s553 + $0xe8] sm:$0xff] %v3470
      %3511 = vst [vmem:[%s553 + $0xf0] sm:$0xff] %v3475
      %3512 = vst [vmem:[%s553 + $0xf8] sm:$0xff] %v3478
      %s3513 = smul.u32 16, %s27
      %p3514 = scmp.lt.s32.totalorder %s26, 1
      %s3515 = scalar_select %p3514, %s26, 1
      %p3516 = scmp.lt.s32.totalorder %s3513, 15
      %s3517 = scalar_select %p3516, %s3513, 15
      %s3518 = smul.addr %s3517, 2
      %s3519 = smul.addr %s3515, 32
      %s3520 = sadd.s32 %s3518, %s3519
      %s3521 = smul.addr %s3520, 8
      %s3522 = scalar_lea.vmem %s11, %s3521
      // Predicated region
      $region65: #{_lambda_.1} parent=63 // pred_check
        %p3523 = pneg %p322
      $region66: #{_lambda_.1} parent=63 // pred_check_branch
        %3525 = sbr.rel (%p3523) target = $region68
      $region67: #{_lambda_.1} parent=63 // pred_region
        %s3526 = smul.u32 16, %s27
      $region68: #{_lambda_.1} parent=63 // pred_fallthru
        _
    $region64: #{_lambda_.1} parent=5 // pred_fallthru
      _
    %p3527 = scmp.le.s32.totalorder 2, %s17
    // Predicated region
    $region69: #{_lambda_.1} parent=5 // pred_check
      %p3528 = pneg %p3527
    $region70: #{_lambda_.1} parent=5 // pred_check_branch
      %3530 = sbr.rel (%p3528) target = $region72
    $region71: #{_lambda_.1} parent=5 // pred_region
      %s3531 = ssub.s32 %s17, 2
      // Predicated region
      $region73: #{_lambda_.1} parent=71 // pred_check
        %p3532 = pneg %p328
      $region74: #{_lambda_.1} parent=71 // pred_check_branch
        %3534 = sbr.rel (%p3532) target = $region76
      $region75: #{_lambda_.1} parent=71 // pred_region
        %s3535 = smul.u32 16, %s29
        %p3536 = scmp.lt.s32.totalorder %s28, 1
        %s3537 = scalar_select %p3536, %s28, 1
        %p3538 = scmp.lt.s32.totalorder %s3535, 15
        %s3539 = scalar_select %p3538, %s3535, 15
        %s3540 = smul.addr %s3539, 2
        %s3541 = smul.addr %s3537, 32
        %s3542 = sadd.s32 %s3540, %s3541
        %s3543 = smul.addr %s3542, 8
        %s3544 = scalar_lea.vmem %s11, %s3543
      $region76: #{_lambda_.1} parent=71 // pred_fallthru
        _
    $region72: #{_lambda_.1} parent=5 // pred_fallthru
      _
  $region6: #{_lambda_.1} parent=0 // loop_footer
    %s21 = sadd.s32 1, %s17
  $region7: #{_lambda_.1} parent=0 // loop_footer_branch
    %16 = sbr.rel target = $region3
  $region8: #{_lambda_.1} parent=0 // loop_exit
    _

</llo_original>
